<compile_context>
chip_gen: v5e
topology: v5e:2x2
jax: 0.10.0
libtpu: 0.0.40
codegen_flags: <defaults>
</compile_context>

<pallas_src>
import numpy as np

import jax
import jax.numpy as jnp
from jax.experimental import pallas as pl
from jax.experimental.pallas import tpu as pltpu


def _round_up(x, m):
    return ((x + m - 1) // m) * m


# --------------------------------------------------------------------------
# Pallas kernel: fused, fully interleaved RoPE rotation-matrix slab
# --------------------------------------------------------------------------
def _rope_interleaved_kernel(pos_ref, w_ref, ph_ref, out_ref):
    # pos_ref : (T, 3)     int32 position ids (cast to f32 in-kernel)
    # w_ref   : (3, 4*Dh)  f32 signed / axis-masked inverse frequencies
    # ph_ref  : (1, 4*Dh)  f32 phase row (pi/2 on cos columns, 0 elsewhere)
    # out_ref : (T, 4*Dh)  f32, columns already ordered as (..., Dh, 2, 2)
    pos = pos_ref[...].astype(jnp.float32)                  # (T, 3)
    w = w_ref[...]                                          # (3, 4*Dh)
    # For every column exactly one of the three rows of `w` is non-zero, so
    # the masked sum reproduces pos[:, axis(k)] * (+/-)omega_k exactly in f32
    # (adding 0.0 is exact).  Kept on the VPU rather than the MXU so no
    # bf16-pass precision concern arises for large position ids.
    ang = (pos[:, 0:1] * w[0:1, :]
           + pos[:, 1:2] * w[1:2, :]
           + pos[:, 2:3] * w[2:3, :]
           + ph_ref[...])                                   # (T, 4*Dh)
    # One transcendental pass, one lane-dense store; no in-kernel relayout.
    out_ref[...] = jnp.sin(ang)


# --------------------------------------------------------------------------
# Host-side table / index-map helpers
# --------------------------------------------------------------------------
def _axis_omegas(axes_dim, theta):
    """Per-axis inverse frequencies, computed in f64 like the torch rope()."""
    oms = []
    for d in axes_dim:
        half = d // 2
        scale = np.linspace(0.0, (d - 2) / d, num=half, dtype=np.float64)
        oms.append((1.0 / (float(theta) ** scale)).astype(np.float32))
    return oms


def _interleaved_tables(axes_dim, theta):
    """Signed omega table (3, 4*Dh) + phase row (1, 4*Dh).

    For frequency k living on axis a(k) with omega w_k, the four output
    columns 4k + j become:
      j=0 -> cos(ang)   : w[a,4k+0] = +w_k, phase = pi/2   (sin(x+pi/2)=cos x)
      j=1 -> -sin(ang)  : w[a,4k+1] = -w_k, phase = 0      (sin(-x) = -sin x)
      j=2 ->  sin(ang)  : w[a,4k+2] = +w_k, phase = 0
      j=3 -> cos(ang)   : w[a,4k+3] = +w_k, phase = pi/2
    """
    oms = _axis_omegas(axes_dim, theta)
    Dh = sum(d // 2 for d in axes_dim)
    w = np.zeros((3, 4 * Dh), np.float32)
    ph = np.zeros((1, 4 * Dh), np.float32)
    half_pi = np.float32(np.pi / 2)
    k = 0
    for a, om in enumerate(oms):
        for v in om:
            w[a, 4 * k + 0] = v
            ph[0, 4 * k + 0] = half_pi
            w[a, 4 * k + 1] = -v
            w[a, 4 * k + 2] = v
            w[a, 4 * k + 3] = v
            ph[0, 4 * k + 3] = half_pi
            k += 1
    return w, ph


def _build_position_ids(batch_size, l_effective_cap_len, l_effective_ref_img_len,
                        l_effective_img_len, ref_img_sizes, img_sizes, patch_size):
    """Mirrors the PyTorch position_ids construction (host-side, numpy)."""
    p = patch_size
    seq_lengths = [cap + sum(ref) + img for cap, ref, img in
                   zip(l_effective_cap_len, l_effective_ref_img_len,
                       l_effective_img_len)]
    max_seq_len = max(seq_lengths)
    pos = np.zeros((batch_size, max_seq_len, 3), np.int32)
    for i, (cap_len, seq_len) in enumerate(zip(l_effective_cap_len, seq_lengths)):
        pos[i, :cap_len, :] = np.arange(cap_len, dtype=np.int32)[:, None]
        pe_shift = cap_len
        pe_shift_len = cap_len
        if ref_img_sizes[i] is not None:
            for (H, W), ref_len in zip(ref_img_sizes[i], l_effective_ref_img_len[i]):
                rH, rW = H // p, W // p
                row_ids = np.repeat(np.arange(rH, dtype=np.int32), rW)
                col_ids = np.tile(np.arange(rW, dtype=np.int32), rH)
                pos[i, pe_shift_len:pe_shift_len + ref_len, 0] = pe_shift
                pos[i, pe_shift_len:pe_shift_len + ref_len, 1] = row_ids
                pos[i, pe_shift_len:pe_shift_len + ref_len, 2] = col_ids
                pe_shift += max(rH, rW)
                pe_shift_len += ref_len
        H, W = img_sizes[i]
        Ht, Wt = H // p, W // p
        row_ids = np.repeat(np.arange(Ht, dtype=np.int32), Wt)
        col_ids = np.tile(np.arange(Wt, dtype=np.int32), Ht)
        pos[i, pe_shift_len:seq_len, 0] = pe_shift
        pos[i, pe_shift_len:seq_len, 1] = row_ids
        pos[i, pe_shift_len:seq_len, 2] = col_ids
    return pos, seq_lengths, max_seq_len


def _build_gather_maps(B, L, encoder_seq_len, max_ref_img_len, max_img_len,
                       l_effective_cap_len, l_effective_ref_img_len,
                       l_effective_img_len):
    """Host-side flat row index + validity mask for the cap/ref/img splits."""
    def _new(n):
        return np.zeros((B, n), np.int32), np.zeros((B, n), np.float32)
    cap_idx, cap_msk = _new(encoder_seq_len)
    ref_idx, ref_msk = _new(max_ref_img_len)
    img_idx, img_msk = _new(max_img_len)
    for i in range(B):
        cl = int(l_effective_cap_len[i])
        rt = int(sum(l_effective_ref_img_len[i]))
        il = int(l_effective_img_len[i])
        base = i * L
        if cl > 0:
            cap_idx[i, :cl] = base + np.arange(cl, dtype=np.int32)
            cap_msk[i, :cl] = 1.0
        if rt > 0:
            ref_idx[i, :rt] = base + cl + np.arange(rt, dtype=np.int32)
            ref_msk[i, :rt] = 1.0
        if il > 0:
            img_idx[i, :il] = base + cl + rt + np.arange(il, dtype=np.int32)
            img_msk[i, :il] = 1.0
    return (cap_idx, cap_msk), (ref_idx, ref_msk), (img_idx, img_msk)


def _gather_rows(slab, idx, msk, B, out_len, Dh):
    """One XLA gather + mask instead of B dynamic-update-slices."""
    if out_len == 0:
        return jnp.zeros((B, 0, 1, Dh, 2, 2), slab.dtype)
    g = jnp.take(slab, jnp.asarray(idx.reshape(-1)), axis=0)      # (B*out_len, 4Dh)
    g = g * jnp.asarray(msk.reshape(-1, 1))
    return g.reshape(B, out_len, Dh, 2, 2)[:, :, None]


# --------------------------------------------------------------------------
# Pallas-backed EmbedND(position_ids).movedim(1, 2), fully interleaved
# --------------------------------------------------------------------------
def _pick_row_tile(total_rows, row_tile):
    tile = max(8, min(_round_up(min(row_tile, 2048), 8), _round_up(total_rows, 8)))
    # Keep >= 2 grid steps whenever there is enough work so the "parallel"
    # grid axis can shard across v7x's two TensorCores (no-op on v5e/v6e).
    if _round_up(total_rows, tile) == tile and total_rows > 8:
        tile = max(8, _round_up((tile + 1) // 2, 8))
    return tile


def _rope_freqs_cis_pallas(position_ids_np, axes_dim, theta, row_tile=1024):
    B, L, _ = position_ids_np.shape
    Dh = sum(d // 2 for d in axes_dim)
    D4 = 4 * Dh
    total = B * L

    # int32 -> f32 cast inside the kernel is exact only up to 2^24.
    assert int(position_ids_np.max(initial=0)) < (1 << 24)

    tile = _pick_row_tile(total, row_tile)
    rows_pad = _round_up(total, tile)

    pos_flat = position_ids_np.reshape(total, 3).astype(np.int32)
    if rows_pad > total:
        pos_flat = np.concatenate(
            [pos_flat, np.zeros((rows_pad - total, 3), np.int32)], axis=0)

    w_np, ph_np = _interleaved_tables(axes_dim, theta)

    pos_dev = jnp.asarray(pos_flat)                  # (rows_pad, 3)
    w_dev = jnp.asarray(w_np)                        # (3, 4*Dh)
    ph_dev = jnp.asarray(ph_np)                      # (1, 4*Dh)

    cost = pl.CostEstimate(
        flops=6 * rows_pad * D4,
        transcendentals=rows_pad * D4,
        bytes_accessed=(rows_pad * 3 * 4) + ((3 + 1) * D4 * 4) + (rows_pad * D4 * 4),
    )

    slab = pl.pallas_call(
        _rope_interleaved_kernel,
        out_shape=jax.ShapeDtypeStruct((rows_pad, D4), jnp.float32),
        grid=(rows_pad // tile,),
        in_specs=[pl.BlockSpec((tile, 3), lambda i: (i, 0)),
                  pl.BlockSpec((3, D4), lambda i: (0, 0)),
                  pl.BlockSpec((1, D4), lambda i: (0, 0))],
        out_specs=pl.BlockSpec((tile, D4), lambda i: (i, 0)),
        compiler_params=pltpu.CompilerParams(
            dimension_semantics=("parallel",)),
        cost_estimate=cost,
    )(pos_dev, w_dev, ph_dev)

    # Columns of `slab` are already in (..., Dh, 2, 2) row-major order, so the
    # reshape below is pure metadata (no extra HBM pass).
    freqs_cis = slab[:total].reshape(B, L, Dh, 2, 2)[:, :, None]
    return slab, freqs_cis


# --------------------------------------------------------------------------
# Full module forward
# --------------------------------------------------------------------------
def omnigen2_rotary_pos_embed(batch_size, encoder_seq_len,
                              l_effective_cap_len, l_effective_ref_img_len,
                              l_effective_img_len, ref_img_sizes, img_sizes,
                              *, theta, axes_dim, patch_size=2, row_tile=1024):
    # TODO(synk): position_ids construction is data-dependent Python over
    # per-sample lengths / image sizes (defines output shapes) -> host numpy.
    position_ids, seq_lengths, max_seq_len = _build_position_ids(
        batch_size, l_effective_cap_len, l_effective_ref_img_len,
        l_effective_img_len, ref_img_sizes, img_sizes, patch_size)

    max_ref_img_len = max(sum(r) for r in l_effective_ref_img_len)
    max_img_len = max(l_effective_img_len)
    Dh = sum(d // 2 for d in axes_dim)

    slab, freqs_cis = _rope_freqs_cis_pallas(position_ids, axes_dim, theta, row_tile)

    # Ragged cap/ref/img split: one gather per output from host index maps
    # (replaces 3*B dynamic-update-slices).
    (ci, cm), (ri, rm), (ii, im) = _build_gather_maps(
        batch_size, max_seq_len, encoder_seq_len, max_ref_img_len, max_img_len,
        l_effective_cap_len, l_effective_ref_img_len, l_effective_img_len)

    cap_freqs_cis = _gather_rows(slab, ci, cm, batch_size, encoder_seq_len, Dh)
    ref_img_freqs_cis = _gather_rows(slab, ri, rm, batch_size, max_ref_img_len, Dh)
    img_freqs_cis = _gather_rows(slab, ii, im, batch_size, max_img_len, Dh)

    return (cap_freqs_cis, ref_img_freqs_cis, img_freqs_cis, freqs_cis,
            list(l_effective_cap_len), seq_lengths)


# --------------------------------------------------------------------------
# Pure-JAX reference (mirrors flux EmbedND / rope + the torch forward)
# --------------------------------------------------------------------------
def _reference_freqs_cis(position_ids, axes_dim, theta):
    oms = _axis_omegas(axes_dim, theta)
    parts = []
    for a in range(3):
        pos = jnp.asarray(position_ids[..., a], jnp.float32)     # (B, L)
        om = jnp.asarray(oms[a])                                  # (half,)
        ang = pos[..., None] * om                                 # (B, L, half)
        part = jnp.stack([jnp.cos(ang), -jnp.sin(ang),
                          jnp.sin(ang), jnp.cos(ang)], axis=-1)
        parts.append(part.reshape(*ang.shape, 2, 2))
    emb = jnp.concatenate(parts, axis=-3)                         # (B, L, Dh, 2, 2)
    return emb[:, :, None]                                        # movedim(1, 2)


if __name__ == "__main__":
    # Small config consistent with the module: 3 rope axes, patch_size=2.
    THETA = 10000
    AXES_DIM = (64, 96, 96)      # sum(axes_dim)//2 = 128 -> 4*Dh = 512 lanes
    PATCH = 2

    B = 2
    l_effective_cap_len = [8, 6]
    ref_img_sizes = [[(8, 8)], None]
    l_effective_ref_img_len = [[(8 // PATCH) * (8 // PATCH)], [0]]          # [[16],[0]]
    img_sizes = [(8, 16), (8, 8)]
    l_effective_img_len = [(8 // PATCH) * (16 // PATCH),
                           (8 // PATCH) * (8 // PATCH)]                     # [32, 16]
    encoder_seq_len = 10

    # No learned weights / random tensor inputs; key kept only so the harness
    # contract (deterministic PRNGKey(0)) holds.
    _ = jax.random.PRNGKey(0)

    (cap_f, ref_f, img_f, freqs_cis,
     cap_lens, seq_lengths) = omnigen2_rotary_pos_embed(
        B, encoder_seq_len, l_effective_cap_len, l_effective_ref_img_len,
        l_effective_img_len, ref_img_sizes, img_sizes,
        theta=THETA, axes_dim=AXES_DIM, patch_size=PATCH, row_tile=1024)
    jax.block_until_ready((cap_f, ref_f, img_f, freqs_cis))

    # ---------------- reference check ----------------
    position_ids, ref_seq_lengths, max_seq_len = _build_position_ids(
        B, l_effective_cap_len, l_effective_ref_img_len, l_effective_img_len,
        ref_img_sizes, img_sizes, PATCH)
    ref_freqs = _reference_freqs_cis(position_ids, AXES_DIM, THETA)

    Dh = sum(d // 2 for d in AXES_DIM)
    max_ref_img_len = max(sum(r) for r in l_effective_ref_img_len)
    max_img_len = max(l_effective_img_len)
    ref_cap = jnp.zeros((B, encoder_seq_len, 1, Dh, 2, 2), jnp.float32)
    ref_ref = jnp.zeros((B, max_ref_img_len, 1, Dh, 2, 2), jnp.float32)
    ref_img = jnp.zeros((B, max_img_len, 1, Dh, 2, 2), jnp.float32)
    for i, (cl, rl, il, sl) in enumerate(zip(l_effective_cap_len,
                                             l_effective_ref_img_len,
                                             l_effective_img_len,
                                             ref_seq_lengths)):
        rt = sum(rl)
        ref_cap = ref_cap.at[i, :cl].set(ref_freqs[i, :cl])
        if rt > 0:
            ref_ref = ref_ref.at[i, :rt].set(ref_freqs[i, cl:cl + rt])
        ref_img = ref_img.at[i, :il].set(ref_freqs[i, cl + rt:cl + rt + il])

    assert seq_lengths == ref_seq_lengths == [56, 22]
    assert freqs_cis.shape == (B, max_seq_len, 1, Dh, 2, 2)
    assert cap_f.shape == (B, encoder_seq_len, 1, Dh, 2, 2)
    assert ref_f.shape == (B, max_ref_img_len, 1, Dh, 2, 2)
    assert img_f.shape == (B, max_img_len, 1, Dh, 2, 2)
    assert jnp.allclose(freqs_cis, ref_freqs, rtol=1e-4, atol=1e-4)
    assert jnp.allclose(cap_f, ref_cap, rtol=1e-4, atol=1e-4)
    assert jnp.allclose(ref_f, ref_ref, rtol=1e-4, atol=1e-4)
    assert jnp.allclose(img_f, ref_img, rtol=1e-4, atol=1e-4)

    print("KERNEL_OK")
</pallas_src>

<mosaic_0001>
module attributes {stable_mosaic.version = 11 : i64} {
  func.func @_rope_interleaved_kernel(%arg0: i32, %arg1: memref<56x3xi32, #tpu.memory_space<vmem>>, %arg2: memref<3x512xf32, #tpu.memory_space<vmem>>, %arg3: memref<1x512xf32, #tpu.memory_space<vmem>>, %arg4: memref<56x512xf32, #tpu.memory_space<vmem>>) attributes {dimension_semantics = [#tpu.dimension_semantics<parallel>], iteration_bounds = array<i64: 2>, scalar_prefetch = 0 : i64, scratch_operands = 0 : i64, tpu.core_type = #tpu.core_type<tc>, window_params = [{transform_indices = @transform_0, window_bounds = array<i64: 56, 3>}, {pipeline_mode = #tpu.pipeline_mode<synchronous>, transform_indices = @transform_1, window_bounds = array<i64: 3, 512>}, {pipeline_mode = #tpu.pipeline_mode<synchronous>, transform_indices = @transform_2, window_bounds = array<i64: 1, 512>}, {transform_indices = @transform_3, window_bounds = array<i64: 56, 512>}]} {
    %c0 = arith.constant 0 : index
    %c0_0 = arith.constant 0 : index
    %0 = vector.load %arg1[%c0, %c0_0] : memref<56x3xi32, #tpu.memory_space<vmem>>, vector<56x3xi32>
    %1 = arith.sitofp %0 : vector<56x3xi32> to vector<56x3xf32>
    %c0_1 = arith.constant 0 : index
    %c0_2 = arith.constant 0 : index
    %2 = vector.load %arg2[%c0_1, %c0_2] : memref<3x512xf32, #tpu.memory_space<vmem>>, vector<3x512xf32>
    %3 = vector.extract_strided_slice %1 {offsets = [0, 0], sizes = [56, 1], strides = [1, 1]} : vector<56x3xf32> to vector<56x1xf32>
    %4 = vector.extract_strided_slice %2 {offsets = [0, 0], sizes = [1, 512], strides = [1, 1]} : vector<3x512xf32> to vector<1x512xf32>
    %5 = vector.broadcast %3 : vector<56x1xf32> to vector<56x512xf32>
    %6 = vector.broadcast %4 : vector<1x512xf32> to vector<56x512xf32>
    %7 = arith.mulf %5, %6 : vector<56x512xf32>
    %8 = vector.extract_strided_slice %1 {offsets = [0, 1], sizes = [56, 1], strides = [1, 1]} : vector<56x3xf32> to vector<56x1xf32>
    %9 = vector.extract_strided_slice %2 {offsets = [1, 0], sizes = [1, 512], strides = [1, 1]} : vector<3x512xf32> to vector<1x512xf32>
    %10 = vector.broadcast %8 : vector<56x1xf32> to vector<56x512xf32>
    %11 = vector.broadcast %9 : vector<1x512xf32> to vector<56x512xf32>
    %12 = arith.mulf %10, %11 : vector<56x512xf32>
    %13 = arith.addf %7, %12 : vector<56x512xf32>
    %14 = vector.extract_strided_slice %1 {offsets = [0, 2], sizes = [56, 1], strides = [1, 1]} : vector<56x3xf32> to vector<56x1xf32>
    %15 = vector.extract_strided_slice %2 {offsets = [2, 0], sizes = [1, 512], strides = [1, 1]} : vector<3x512xf32> to vector<1x512xf32>
    %16 = vector.broadcast %14 : vector<56x1xf32> to vector<56x512xf32>
    %17 = vector.broadcast %15 : vector<1x512xf32> to vector<56x512xf32>
    %18 = arith.mulf %16, %17 : vector<56x512xf32>
    %19 = arith.addf %13, %18 : vector<56x512xf32>
    %c0_3 = arith.constant 0 : index
    %c0_4 = arith.constant 0 : index
    %20 = vector.load %arg3[%c0_3, %c0_4] : memref<1x512xf32, #tpu.memory_space<vmem>>, vector<1x512xf32>
    %21 = vector.broadcast %20 : vector<1x512xf32> to vector<56x512xf32>
    %22 = arith.addf %19, %21 : vector<56x512xf32>
    %23 = math.sin %22 : vector<56x512xf32>
    %c0_5 = arith.constant 0 : index
    %c0_6 = arith.constant 0 : index
    %24 = vector.load %arg4[%c0_5, %c0_6] : memref<56x512xf32, #tpu.memory_space<vmem>>, vector<56x512xf32>
    tpu.vector_store %arg4[%c0_5, %c0_6], %23 {strides = array<i32>} : memref<56x512xf32, #tpu.memory_space<vmem>>, vector<56x512xf32>,
    return
  }
  func.func @transform_0(%arg0: i32) -> (i32, i32) {
    %c0_i32 = arith.constant 0 : i32
    %c0_i32_0 = arith.constant 0 : i32
    return %arg0, %c0_i32 : i32, i32
  }
  func.func @transform_1(%arg0: i32) -> (i32, i32) {
    %c0_i32 = arith.constant 0 : i32
    %c0_i32_0 = arith.constant 0 : i32
    %c0_i32_1 = arith.constant 0 : i32
    return %c0_i32, %c0_i32_0 : i32, i32
  }
  func.func @transform_2(%arg0: i32) -> (i32, i32) {
    %c0_i32 = arith.constant 0 : i32
    %c0_i32_0 = arith.constant 0 : i32
    %c0_i32_1 = arith.constant 0 : i32
    return %c0_i32, %c0_i32_0 : i32, i32
  }
  func.func @transform_3(%arg0: i32) -> (i32, i32) {
    %c0_i32 = arith.constant 0 : i32
    %c0_i32_0 = arith.constant 0 : i32
    return %arg0, %c0_i32 : i32, i32
  }
}

</mosaic_0001>

<llo_original>
// kernel: tpu_custom_call.1
$region0: #{tpu_custom_call.1}
  #allocation0 [shape = 'u32[]', space=smem, size = 0x4, offset = 0x4, fixed_abs, tag = 'smem constant byte address 0x4 - core index']
  #allocation1 [shape = 'u32[72,128]{1,0:T(1,128)}', space=vmem, size = 0x9000, scoped, tag = 'internal scratch']
  %s0 = inlined_call_operand.vmem [shape: s32[112,3], index: 0, kind: input, shape index: {}]
  %s1 = inlined_call_operand.vmem [shape: f32[3,512], index: 1, kind: input, shape index: {}]
  %s2 = inlined_call_operand.vmem [shape: f32[1,512], index: 2, kind: input, shape index: {}]
  %s3 = inlined_call_operand.hbm [shape: f32[112,512], index: 3, kind: output, shape index: {}]
  %s4 = sld [smem:[#allocation0]]
  $region45: #{tpu_custom_call.1} parent=0
    _
  %s6 = ssub.s32 1, %s4
  %s7 = scalar_select 0, %s6, %s4
  $region1: #{tpu_custom_call.1} parent=0
    #allocation2 [shape = 'u8[229376]{0}', space=vmem, size = 0x38000, scoped, tag = 'output window, operand 0']
    #allocation3 [shape = 's32[2]{0}', space=sflag, size = 0x8, scoped, tag = 'scoped memory for tpu_custom_call.1']
    %8 = vsyncpa [#allocation3], 0
    %s9 = scalar_lea.sflag [#allocation3], 1
    %10 = vsyncpa %s9, 0
    loop: start=0, step=1, limit=4
    $region2: #{tpu_custom_call.1} parent=1 // loop_pre_header
      _
    $region3: #{tpu_custom_call.1} parent=1 // loop_header
      %s12 = sphi 0, %s16
      %p13 = scmp.ge.s32.totalorder %s12, 4
      %s22 = sphi 0, %s24
      %s25 = sphi 0, %s22
      %s26 = sphi 0, %s25
      %s42 = sphi 0, %s26
      %s46 = sphi 0, %s46
      %s48 = sphi 0, %s46
      %s49 = sphi 0, %s48
      %s63 = sphi 0, %s49
      %s67 = sphi 0, %s67
      %s69 = sphi 0, %s67
      %s70 = sphi 0, %s69
      %s84 = sphi 0, %s70
      %s90 = sphi 0, %s92
      %s93 = sphi 0, %s90
      %s94 = sphi 0, %s93
      %s110 = sphi 0, %s94
    $region4: #{tpu_custom_call.1} parent=1 // loop_header_branch
      %15 = sbr.rel (%p13) target = $region8
    $region5: #{tpu_custom_call.1} parent=1 // loop_body
      %s17 = ssub.s32 %s12, 1
      %s18 = ssub.s32 %s12, 2
      %s19 = sadd.s32 %s12, 1
      %s20 = ssub.s32 %s12, %s19
      %p21 = scmp.eq.s32.totalorder %s20, 0
      %s23 = sadd.s32 %s22, 1
      %s24 = scalar_select %p21, %s22, %s23
      %p27 = pneg %p21
      %p28 = scmp.eq.s32.totalorder %s12, 1
      %p29 = por %p27, %p28
      %p30 = scmp.ne.s32.totalorder %s22, %s25
      %p31 = scmp.eq.s32.totalorder %s12, 0
      %p32 = por %p30, %p31
      %p33 = scmp.ne.s32.totalorder %s22, %s25
      %p34 = scmp.eq.s32.totalorder %s17, 1
      %p35 = por %p33, %p34
      %p36 = scmp.ne.s32.totalorder %s25, %s26
      %p37 = scmp.eq.s32.totalorder %s17, 0
      %p38 = por %p36, %p37
      %p39 = scmp.ne.s32.totalorder %s25, %s26
      %p40 = scmp.eq.s32.totalorder %s18, 1
      %p41 = por %p39, %p40
      %p43 = scmp.ne.s32.totalorder %s26, %s42
      %p44 = scmp.eq.s32.totalorder %s18, 0
      %p45 = por %p43, %p44
      %s47 = sadd.s32 %s46, 1
      %p50 = scmp.eq.s32.totalorder %s12, 1
      %p51 = scmp.ne.s32.totalorder %s46, %s48
      %p52 = scmp.eq.s32.totalorder %s12, 0
      %p53 = por %p51, %p52
      %p54 = scmp.ne.s32.totalorder %s46, %s48
      %p55 = scmp.eq.s32.totalorder %s17, 1
      %p56 = por %p54, %p55
      %p57 = scmp.ne.s32.totalorder %s48, %s49
      %p58 = scmp.eq.s32.totalorder %s17, 0
      %p59 = por %p57, %p58
      %p60 = scmp.ne.s32.totalorder %s48, %s49
      %p61 = scmp.eq.s32.totalorder %s18, 1
      %p62 = por %p60, %p61
      %p64 = scmp.ne.s32.totalorder %s49, %s63
      %p65 = scmp.eq.s32.totalorder %s18, 0
      %p66 = por %p64, %p65
      %s68 = sadd.s32 %s67, 1
      %p71 = scmp.eq.s32.totalorder %s12, 1
      %p72 = scmp.ne.s32.totalorder %s67, %s69
      %p73 = scmp.eq.s32.totalorder %s12, 0
      %p74 = por %p72, %p73
      %p75 = scmp.ne.s32.totalorder %s67, %s69
      %p76 = scmp.eq.s32.totalorder %s17, 1
      %p77 = por %p75, %p76
      %p78 = scmp.ne.s32.totalorder %s69, %s70
      %p79 = scmp.eq.s32.totalorder %s17, 0
      %p80 = por %p78, %p79
      %p81 = scmp.ne.s32.totalorder %s69, %s70
      %p82 = scmp.eq.s32.totalorder %s18, 1
      %p83 = por %p81, %p82
      %p85 = scmp.ne.s32.totalorder %s70, %s84
      %p86 = scmp.eq.s32.totalorder %s18, 0
      %p87 = por %p85, %p86
      %s88 = ssub.s32 %s12, %s19
      %p89 = scmp.eq.s32.totalorder %s88, 0
      %s91 = sadd.s32 %s90, 1
      %s92 = scalar_select %p89, %s90, %s91
      %p95 = pneg %p89
      %p96 = scmp.eq.s32.totalorder %s12, 1
      %p97 = por %p95, %p96
      %p98 = scmp.ne.s32.totalorder %s90, %s93
      %p99 = scmp.eq.s32.totalorder %s12, 0
      %p100 = por %p98, %p99
      %p101 = scmp.ne.s32.totalorder %s90, %s93
      %p102 = scmp.eq.s32.totalorder %s17, 1
      %p103 = por %p101, %p102
      %p104 = scmp.ne.s32.totalorder %s93, %s94
      %p105 = scmp.eq.s32.totalorder %s17, 0
      %p106 = por %p104, %p105
      %p107 = scmp.ne.s32.totalorder %s93, %s94
      %p108 = scmp.eq.s32.totalorder %s18, 1
      %p109 = por %p107, %p108
      %p111 = scmp.ne.s32.totalorder %s94, %s110
      %p112 = scmp.eq.s32.totalorder %s18, 0
      %p113 = por %p111, %p112
      %p114 = scmp.le.s32.totalorder 1, %s12
      %p115 = scmp.lt.s32.totalorder %s12, 3
      %p116 = pnand %p114, %p115
      %p117 = pneg %p116
      // Predicated region
      $region9: #{tpu_custom_call.1} parent=5 // pred_check
        _
      $region10: #{tpu_custom_call.1} parent=5 // pred_check_branch
        %119 = sbr.rel (%p116) target = $region12
      $region11: #{tpu_custom_call.1} parent=5 // pred_region
        %s120 = ssub.s32 %s12, 1
        // Predicated region
        $region13: #{tpu_custom_call.1} parent=11 // pred_check
          %p121 = pneg %p59
        $region14: #{tpu_custom_call.1} parent=11 // pred_check_branch
          %123 = sbr.rel (%p121) target = $region16
        $region15: #{tpu_custom_call.1} parent=11 // pred_region
          _
        $region16: #{tpu_custom_call.1} parent=11 // pred_fallthru
          _
        // Predicated region
        $region17: #{tpu_custom_call.1} parent=11 // pred_check
          %p124 = pneg %p80
        $region18: #{tpu_custom_call.1} parent=11 // pred_check_branch
          %126 = sbr.rel (%p124) target = $region20
        $region19: #{tpu_custom_call.1} parent=11 // pred_region
          _
        $region20: #{tpu_custom_call.1} parent=11 // pred_fallthru
          _
      $region12: #{tpu_custom_call.1} parent=5 // pred_fallthru
        _
      %p127 = scmp.lt.s32.totalorder %s12, 2
      // Predicated region
      $region21: #{tpu_custom_call.1} parent=5 // pred_check
        %p128 = pneg %p127
      $region22: #{tpu_custom_call.1} parent=5 // pred_check_branch
        %130 = sbr.rel (%p128) target = $region24
      $region23: #{tpu_custom_call.1} parent=5 // pred_region
        // Predicated region
        $region25: #{tpu_custom_call.1} parent=23 // pred_check
          %p131 = pneg %p32
        $region26: #{tpu_custom_call.1} parent=23 // pred_check_branch
          %133 = sbr.rel (%p131) target = $region28
        $region27: #{tpu_custom_call.1} parent=23 // pred_region
          %s134 = smul.u32 7, %s12
          %p135 = scmp.lt.s32.totalorder %s134, 13
          %s136 = scalar_select %p135, %s134, 13
          %s137 = smul.addr %s136, 8
          %s138 = scalar_lea.vmem %s0, %s137
          %s139 = smul.u32 7, %s12
        $region28: #{tpu_custom_call.1} parent=23 // pred_fallthru
          _
      $region24: #{tpu_custom_call.1} parent=5 // pred_fallthru
        _
      %p140 = scmp.le.s32.totalorder 1, %s12
      %p141 = scmp.lt.s32.totalorder %s12, 3
      %p142 = pnand %p140, %p141
      %p143 = pneg %p142
      // Predicated region
      $region29: #{tpu_custom_call.1} parent=5 // pred_check
        _
      $region30: #{tpu_custom_call.1} parent=5 // pred_check_branch
        %145 = sbr.rel (%p142) target = $region32
      $region31: #{tpu_custom_call.1} parent=5 // pred_region
        %s146 = ssub.s32 %s12, 1
        %s147 = smul.u32 7, %s17
        %p148 = scmp.lt.s32.totalorder %s147, 13
        %s149 = scalar_select %p148, %s147, 13
        %s150 = smul.addr %s149, 8
        %s151 = scalar_lea.vmem %s0, %s150
        %p152 = pneg %p38
        %p153 = pneg %p35
        %p154 = pneg %p59
        %p155 = pneg %p56
        %p156 = pneg %p80
        %p157 = pneg %p77
        %p158 = pneg %p106
        %p159 = pneg %p103
        %s160 = sand.u32 %s93, 1
        %s161 = scalar_lea.sflag [#allocation3], %s160
        %s162 = sand.u32 %s93, 1
        %s163 = smul.addr %s162, 224
        %s164 = scalar_lea.vmem [#allocation2], %s163
        %s165 = smul.u32 7, %s17
        %p166 = scmp.lt.s32.totalorder %s165, 13
        %s167 = scalar_select %p166, %s165, 13
        %s168 = smul.addr %s167, 8
        %s169 = scalar_lea.vmem %s0, %s168
        %s170 = smul.u32 7, %s17
        %s171 = smul.u32 7, %s17
        %v172 = vld [vmem:[%s169] sm:$0xff]
        %v173 = vld [vmem:[%s169 + $0x8] sm:$0xff]
        %v174 = vld [vmem:[%s169 + $0x10] sm:$0xff]
        %v175 = vld [vmem:[%s169 + $0x18] sm:$0xff]
        %v176 = vld [vmem:[%s169 + $0x20] sm:$0xff]
        %v177 = vld [vmem:[%s169 + $0x28] sm:$0xff]
        %v178 = vld [vmem:[%s169 + $0x30] sm:$0xff]
        %v179 = vcvt.s32.f32 %v172
        %v180 = vcvt.s32.f32 %v173
        %v181 = vcvt.s32.f32 %v174
        %v182 = vcvt.s32.f32 %v175
        %v183 = vcvt.s32.f32 %v176
        %v184 = vcvt.s32.f32 %v177
        %v185 = vcvt.s32.f32 %v178
        %v186 = vld [vmem:[%s1] sm:$0x77]
        %v187 = vld [vmem:[%s1 + $0x8] sm:$0x77]
        %189 = vset.pattern.permute.xlu0 0
        %190 = vperm.xlu0 %189, %v179
        %v191 = vpop.permute.xlu0 %190
        %194 = vset.pattern.permute.xlu0 0
        %195 = vperm.xlu0 %194, %v180
        %v196 = vpop.permute.xlu0 %195
        %199 = vset.pattern.permute.xlu0 0
        %200 = vperm.xlu0 %199, %v181
        %v201 = vpop.permute.xlu0 %200
        %204 = vset.pattern.permute.xlu0 0
        %205 = vperm.xlu0 %204, %v182
        %v206 = vpop.permute.xlu0 %205
        %209 = vset.pattern.permute.xlu0 0
        %210 = vperm.xlu0 %209, %v183
        %v211 = vpop.permute.xlu0 %210
        %214 = vset.pattern.permute.xlu0 0
        %215 = vperm.xlu0 %214, %v184
        %v216 = vpop.permute.xlu0 %215
        %219 = vset.pattern.permute.xlu0 0
        %220 = vperm.xlu0 %219, %v185
        %v221 = vpop.permute.xlu0 %220
        %v225 = vperm.slane %v186, 0
        %v226 = vperm.slane %v186, 4
        %v227 = vperm.slane %v187, 0
        %v228 = vperm.slane %v187, 4
        %v233 = vperm.slane %v225, 0
        %v234 = vperm.slane %v226, 0
        %v235 = vperm.slane %v227, 0
        %v236 = vperm.slane %v228, 0
        %v237 = vmul.f32 %v191, %v233
        %v238 = vmul.f32 %v191, %v234
        %v239 = vmul.f32 %v191, %v235
        %v240 = vmul.f32 %v191, %v236
        %v241 = vmul.f32 %v196, %v233
        %v242 = vmul.f32 %v196, %v234
        %v243 = vmul.f32 %v196, %v235
        %v244 = vmul.f32 %v196, %v236
        %v245 = vmul.f32 %v201, %v233
        %v246 = vmul.f32 %v201, %v234
        %v247 = vmul.f32 %v201, %v235
        %v248 = vmul.f32 %v201, %v236
        %v249 = vmul.f32 %v206, %v233
        %v250 = vmul.f32 %v206, %v234
        %v251 = vmul.f32 %v206, %v235
        %v252 = vmul.f32 %v206, %v236
        %v253 = vmul.f32 %v211, %v233
        %v254 = vmul.f32 %v211, %v234
        %v255 = vmul.f32 %v211, %v235
        %v256 = vmul.f32 %v211, %v236
        %v257 = vmul.f32 %v216, %v233
        %v258 = vmul.f32 %v216, %v234
        %v259 = vmul.f32 %v216, %v235
        %v260 = vmul.f32 %v216, %v236
        %v261 = vmul.f32 %v221, %v233
        %v262 = vmul.f32 %v221, %v234
        %v263 = vmul.f32 %v221, %v235
        %v264 = vmul.f32 %v221, %v236
        %265 = vset.pattern.permute.xlu0 1
        %266 = vperm.xlu0 %265, %v179
        %v267 = vpop.permute.xlu0 %266
        %269 = vset.pattern.permute.xlu0 1
        %270 = vperm.xlu0 %269, %v180
        %v271 = vpop.permute.xlu0 %270
        %273 = vset.pattern.permute.xlu0 1
        %274 = vperm.xlu0 %273, %v181
        %v275 = vpop.permute.xlu0 %274
        %277 = vset.pattern.permute.xlu0 1
        %278 = vperm.xlu0 %277, %v182
        %v279 = vpop.permute.xlu0 %278
        %281 = vset.pattern.permute.xlu0 1
        %282 = vperm.xlu0 %281, %v183
        %v283 = vpop.permute.xlu0 %282
        %285 = vset.pattern.permute.xlu0 1
        %286 = vperm.xlu0 %285, %v184
        %v287 = vpop.permute.xlu0 %286
        %289 = vset.pattern.permute.xlu0 1
        %290 = vperm.xlu0 %289, %v185
        %v291 = vpop.permute.xlu0 %290
        %v293 = vperm.slane %v186, 1
        %v294 = vperm.slane %v186, 5
        %v295 = vperm.slane %v187, 1
        %v296 = vperm.slane %v187, 5
        %v301 = vperm.slane %v293, 1
        %v302 = vperm.slane %v294, 1
        %v303 = vperm.slane %v295, 1
        %v304 = vperm.slane %v296, 1
        %v305 = vmul.f32 %v267, %v301
        %v306 = vmul.f32 %v267, %v302
        %v307 = vmul.f32 %v267, %v303
        %v308 = vmul.f32 %v267, %v304
        %v309 = vmul.f32 %v271, %v301
        %v310 = vmul.f32 %v271, %v302
        %v311 = vmul.f32 %v271, %v303
        %v312 = vmul.f32 %v271, %v304
        %v313 = vmul.f32 %v275, %v301
        %v314 = vmul.f32 %v275, %v302
        %v315 = vmul.f32 %v275, %v303
        %v316 = vmul.f32 %v275, %v304
        %v317 = vmul.f32 %v279, %v301
        %v318 = vmul.f32 %v279, %v302
        %v319 = vmul.f32 %v279, %v303
        %v320 = vmul.f32 %v279, %v304
        %v321 = vmul.f32 %v283, %v301
        %v322 = vmul.f32 %v283, %v302
        %v323 = vmul.f32 %v283, %v303
        %v324 = vmul.f32 %v283, %v304
        %v325 = vmul.f32 %v287, %v301
        %v326 = vmul.f32 %v287, %v302
        %v327 = vmul.f32 %v287, %v303
        %v328 = vmul.f32 %v287, %v304
        %v329 = vmul.f32 %v291, %v301
        %v330 = vmul.f32 %v291, %v302
        %v331 = vmul.f32 %v291, %v303
        %v332 = vmul.f32 %v291, %v304
        %v333 = vadd.f32 %v237, %v305
        %v334 = vadd.f32 %v238, %v306
        %v335 = vadd.f32 %v239, %v307
        %v336 = vadd.f32 %v240, %v308
        %v337 = vadd.f32 %v241, %v309
        %v338 = vadd.f32 %v242, %v310
        %v339 = vadd.f32 %v243, %v311
        %v340 = vadd.f32 %v244, %v312
        %v341 = vadd.f32 %v245, %v313
        %v342 = vadd.f32 %v246, %v314
        %v343 = vadd.f32 %v247, %v315
        %v344 = vadd.f32 %v248, %v316
        %v345 = vadd.f32 %v249, %v317
        %v346 = vadd.f32 %v250, %v318
        %v347 = vadd.f32 %v251, %v319
        %v348 = vadd.f32 %v252, %v320
        %v349 = vadd.f32 %v253, %v321
        %v350 = vadd.f32 %v254, %v322
        %v351 = vadd.f32 %v255, %v323
        %v352 = vadd.f32 %v256, %v324
        %v353 = vadd.f32 %v257, %v325
        %v354 = vadd.f32 %v258, %v326
        %v355 = vadd.f32 %v259, %v327
        %v356 = vadd.f32 %v260, %v328
        %v357 = vadd.f32 %v261, %v329
        %v358 = vadd.f32 %v262, %v330
        %v359 = vadd.f32 %v263, %v331
        %v360 = vadd.f32 %v264, %v332
        %361 = vset.pattern.permute.xlu0 2
        %362 = vperm.xlu0 %361, %v179
        %v363 = vpop.permute.xlu0 %362
        %365 = vset.pattern.permute.xlu0 2
        %366 = vperm.xlu0 %365, %v180
        %v367 = vpop.permute.xlu0 %366
        %369 = vset.pattern.permute.xlu0 2
        %370 = vperm.xlu0 %369, %v181
        %v371 = vpop.permute.xlu0 %370
        %373 = vset.pattern.permute.xlu0 2
        %374 = vperm.xlu0 %373, %v182
        %v375 = vpop.permute.xlu0 %374
        %377 = vset.pattern.permute.xlu0 2
        %378 = vperm.xlu0 %377, %v183
        %v379 = vpop.permute.xlu0 %378
        %381 = vset.pattern.permute.xlu0 2
        %382 = vperm.xlu0 %381, %v184
        %v383 = vpop.permute.xlu0 %382
        %385 = vset.pattern.permute.xlu0 2
        %386 = vperm.xlu0 %385, %v185
        %v387 = vpop.permute.xlu0 %386
        %v389 = vperm.slane %v186, 2
        %v390 = vperm.slane %v186, 6
        %v391 = vperm.slane %v187, 2
        %v392 = vperm.slane %v187, 6
        %v397 = vperm.slane %v389, 2
        %v398 = vperm.slane %v390, 2
        %v399 = vperm.slane %v391, 2
        %v400 = vperm.slane %v392, 2
        %v401 = vmul.f32 %v363, %v397
        %v402 = vmul.f32 %v363, %v398
        %v403 = vmul.f32 %v363, %v399
        %v404 = vmul.f32 %v363, %v400
        %v405 = vmul.f32 %v367, %v397
        %v406 = vmul.f32 %v367, %v398
        %v407 = vmul.f32 %v367, %v399
        %v408 = vmul.f32 %v367, %v400
        %v409 = vmul.f32 %v371, %v397
        %v410 = vmul.f32 %v371, %v398
        %v411 = vmul.f32 %v371, %v399
        %v412 = vmul.f32 %v371, %v400
        %v413 = vmul.f32 %v375, %v397
        %v414 = vmul.f32 %v375, %v398
        %v415 = vmul.f32 %v375, %v399
        %v416 = vmul.f32 %v375, %v400
        %v417 = vmul.f32 %v379, %v397
        %v418 = vmul.f32 %v379, %v398
        %v419 = vmul.f32 %v379, %v399
        %v420 = vmul.f32 %v379, %v400
        %v421 = vmul.f32 %v383, %v397
        %v422 = vmul.f32 %v383, %v398
        %v423 = vmul.f32 %v383, %v399
        %v424 = vmul.f32 %v383, %v400
        %v425 = vmul.f32 %v387, %v397
        %v426 = vmul.f32 %v387, %v398
        %v427 = vmul.f32 %v387, %v399
        %v428 = vmul.f32 %v387, %v400
        %v429 = vadd.f32 %v333, %v401
        %v430 = vadd.f32 %v334, %v402
        %v431 = vadd.f32 %v335, %v403
        %v432 = vadd.f32 %v336, %v404
        %v433 = vadd.f32 %v337, %v405
        %v434 = vadd.f32 %v338, %v406
        %v435 = vadd.f32 %v339, %v407
        %v436 = vadd.f32 %v340, %v408
        %v437 = vadd.f32 %v341, %v409
        %v438 = vadd.f32 %v342, %v410
        %v439 = vadd.f32 %v343, %v411
        %v440 = vadd.f32 %v344, %v412
        %v441 = vadd.f32 %v345, %v413
        %v442 = vadd.f32 %v346, %v414
        %v443 = vadd.f32 %v347, %v415
        %v444 = vadd.f32 %v348, %v416
        %v445 = vadd.f32 %v349, %v417
        %v446 = vadd.f32 %v350, %v418
        %v447 = vadd.f32 %v351, %v419
        %v448 = vadd.f32 %v352, %v420
        %v449 = vadd.f32 %v353, %v421
        %v450 = vadd.f32 %v354, %v422
        %v451 = vadd.f32 %v355, %v423
        %v452 = vadd.f32 %v356, %v424
        %v453 = vadd.f32 %v357, %v425
        %v454 = vadd.f32 %v358, %v426
        %v455 = vadd.f32 %v359, %v427
        %v456 = vadd.f32 %v360, %v428
        %v457 = vld [vmem:[%s2] sm:$0xf]
        %v459 = vperm.slane %v457, 0
        %v460 = vperm.slane %v457, 1
        %v461 = vperm.slane %v457, 2
        %v462 = vperm.slane %v457, 3
        %v467 = vadd.f32 %v429, %v459
        %v468 = vadd.f32 %v430, %v460
        %v469 = vadd.f32 %v431, %v461
        %v470 = vadd.f32 %v432, %v462
        %v471 = vadd.f32 %v433, %v459
        %v472 = vadd.f32 %v434, %v460
        %v473 = vadd.f32 %v435, %v461
        %v474 = vadd.f32 %v436, %v462
        %v475 = vadd.f32 %v437, %v459
        %v476 = vadd.f32 %v438, %v460
        %v477 = vadd.f32 %v439, %v461
        %v478 = vadd.f32 %v440, %v462
        %v479 = vadd.f32 %v441, %v459
        %v480 = vadd.f32 %v442, %v460
        %v481 = vadd.f32 %v443, %v461
        %v482 = vadd.f32 %v444, %v462
        %v483 = vadd.f32 %v445, %v459
        %v484 = vadd.f32 %v446, %v460
        %v485 = vadd.f32 %v447, %v461
        %v486 = vadd.f32 %v448, %v462
        %v487 = vadd.f32 %v449, %v459
        %v488 = vadd.f32 %v450, %v460
        %v489 = vadd.f32 %v451, %v461
        %v490 = vadd.f32 %v452, %v462
        %v491 = vadd.f32 %v453, %v459
        %v492 = vadd.f32 %v454, %v460
        %v493 = vadd.f32 %v455, %v461
        %v494 = vadd.f32 %v456, %v462
        %v495 = vand.u32 2147483647, %v467
        %vm496 = vcmp.le.f32.partialorder %v495, 0.7853982
        %vm497 = vcmp.lt.s32.totalorder %v467, 0
        %v498 = vand.u32 %v467, 2139095040
        %v499 = vshrl.u32 %v498, 23
        %v500 = vsub.s32 %v499, 127
        %v501 = vand.u32 2147483647, %v467
        %v502 = vand.u32 %v501, 8388607
        %v503 = vor.u32 %v502, 8388608
        %v504 = vsub.s32 0, %v503
        %v505 = vadd.s32 %v500, 1
        %vm506 = vcmp.gt.s32.totalorder %v505, 0
        %v507 = vsel %vm506, %v505, 0
        %v508 = vshrl.u32 %v507, 5
        %v509 = vand.u32 %v507, 31
        %v510 = vsub.s32 32, %v509
        %v511 = vshrl.u32 683565275, %v510
        %v512 = vshll.u32 683565275, %v509
        %v513 = vshrl.u32 2475754826, %v510
        %v514 = vor.u32 %v512, %v513
        %v515 = vshll.u32 2475754826, %v509
        %v516 = vshrl.u32 2131351028, %v510
        %v517 = vor.u32 %v515, %v516
        %v518 = vshll.u32 2131351028, %v509
        %v519 = vshrl.u32 2102212464, %v510
        %v520 = vor.u32 %v518, %v519
        %v521 = vshll.u32 2102212464, %v509
        %v522 = vshrl.u32 920167782, %v510
        %v523 = vor.u32 %v521, %v522
        %v524 = vshll.u32 920167782, %v509
        %v525 = vshrl.u32 1326507024, %v510
        %v526 = vor.u32 %v524, %v525
        %vm527 = vcmp.lt.s32.totalorder %v508, 1
        %vm528 = vcmp.lt.s32.totalorder %v508, 2
        %vm529 = vcmp.lt.s32.totalorder %v508, 3
        %vm530 = vcmp.lt.s32.totalorder %v508, 4
        %v531 = vsel %vm527, %v511, %v514
        %v532 = vsel %vm530, %v520, 2102212464
        %v533 = vsel %vm529, %v517, %v532
        %v534 = vsel %vm528, %v531, %v533
        %v535 = vsel %vm527, %v514, %v517
        %v536 = vsel %vm530, %v523, 920167782
        %v537 = vsel %vm529, %v520, %v536
        %v538 = vsel %vm528, %v535, %v537
        %v539 = vsel %vm527, %v517, %v520
        %v540 = vsel %vm530, %v526, 1326507024
        %v541 = vsel %vm529, %v523, %v540
        %v542 = vsel %vm528, %v539, %v541
        %v543 = vshll.u32 %v503, 8
        %v544 = vand.u32 %v543, 65535
        %v545 = vshrl.u32 %v543, 16
        %v546 = vand.u32 %v542, 65535
        %v547 = vshrl.u32 %v542, 16
        %v548 = vmul.u32 %v544, %v546
        %v549 = vmul.u32 %v544, %v547
        %v550 = vmul.u32 %v545, %v546
        %v551 = vmul.u32 %v545, %v547
        %v552 = vshll.u32 %v549, 16
        %v553 = vshrl.u32 %v549, 16
        %v554 = vshll.u32 %v550, 16
        %v555 = vshrl.u32 %v550, 16
        %vm556 = vc.u32 %v548, %v552
        %v557 = vsel %vm556, 1, 0
        %v558 = vadd.s32 %v548, %v552
        %v559 = vadd.s32 %v551, %v557
        %vm560 = vc.u32 %v558, %v554
        %v561 = vsel %vm560, 1, 0
        %v562 = vadd.s32 %v558, %v554
        %v563 = vadd.s32 %v559, %v561
        %v564 = vadd.s32 %v563, %v553
        %v565 = vadd.s32 %v564, %v555
        %v566 = vand.u32 %v543, 65535
        %v567 = vshrl.u32 %v543, 16
        %v568 = vand.u32 %v538, 65535
        %v569 = vshrl.u32 %v538, 16
        %v570 = vmul.u32 %v566, %v568
        %v571 = vmul.u32 %v566, %v569
        %v572 = vmul.u32 %v567, %v568
        %v573 = vmul.u32 %v567, %v569
        %v574 = vshll.u32 %v571, 16
        %v575 = vshrl.u32 %v571, 16
        %v576 = vshll.u32 %v572, 16
        %v577 = vshrl.u32 %v572, 16
        %vm578 = vc.u32 %v570, %v574
        %v579 = vsel %vm578, 1, 0
        %v580 = vadd.s32 %v570, %v574
        %v581 = vadd.s32 %v573, %v579
        %vm582 = vc.u32 %v580, %v576
        %v583 = vsel %vm582, 1, 0
        %v584 = vadd.s32 %v580, %v576
        %v585 = vadd.s32 %v581, %v583
        %v586 = vadd.s32 %v585, %v575
        %v587 = vadd.s32 %v586, %v577
        %v588 = vmul.u32 %v543, %v534
        %v589 = vadd.s32 %v565, %v584
        %vm590 = vc.u32 %v565, %v584
        %v591 = vadd.s32 %v587, 1
        %v592 = vsel %vm590, %v591, %v587
        %v593 = vadd.s32 %v588, %v592
        %v594 = vadd.s32 %v593, 536870912
        %v595 = vshrl.u32 %v594, 30
        %v596 = vshll.u32 %v595, 30
        %v597 = vsub.s32 %v593, %v596
        %vm598 = vcmp.lt.s32.totalorder %v597, 0
        %v599 = vsub.s32 0, %v597
        %v600 = vsel %vm598, %v599, %v597
        %v601 = vclz %v600
        %v602 = vsub.s32 %v601, 2
        %vm603 = vcmp.gt.s32.totalorder 0, %v602
        %v604 = vsel %vm603, 0, %v602
        %v605 = vsub.s32 32, %v604
        %v606 = vshll.u32 %v597, %v604
        %v607 = vshrl.u32 %v589, %v605
        %v608 = vor.u32 %v606, %v607
        %v609 = vsub.s32 4294967266, %v604
        %v610 = vadd.s32 %v609, 127
        %v611 = vshll.u32 %v610, 23
        %v612 = vor.u32 4788187, %v611
        %v613 = vand.u32 2147483647, %v612
        %v615 = vcvt.s32.f32 %v608
        %v616 = vmul.f32 %v615, %v613
        %v617 = vxor.u32 %v616, 2147483648
        %v618 = vsel %vm497, %v617, %v616
        %v619 = vsub.s32 4, %v595
        %v620 = vsel %vm497, %v619, %v595
        %v621 = vsel %vm496, %v467, %v618
        %v622 = vsel %vm496, 0, %v620
        %v623 = vmul.f32 %v621, %v621
        %v624 = vmul.f32 %v623, -0.001358992
        %v625 = vadd.f32 %v624, 0.041655596
        %v626 = vmul.f32 %v623, %v625
        %v627 = vadd.f32 %v626, -0.4999988
        %v628 = vmul.f32 %v623, %v627
        %v629 = vadd.f32 1.0, %v628
        %v630 = vmul.f32 %v621, %v621
        %v631 = vmul.f32 %v630, -0.00019511016
        %v632 = vadd.f32 %v631, 0.008332121
        %v633 = vmul.f32 %v630, %v632
        %v634 = vadd.f32 %v633, -0.16666654
        %v635 = vmul.f32 %v630, %v634
        %v636 = vadd.f32 %v635, 1.0
        %v637 = vmul.f32 %v636, %v621
        %vm638 = vweird.f32 %v467
        %v639 = vadd.s32 %v622, 3
        %v640 = vand.u32 %v639, 3
        %vm641 = vcmp.lt.s32.totalorder %v640, 2
        %vm642 = vcmp.eq.s32.totalorder %v640, 0
        %v643 = vxor.u32 %v637, 2147483648
        %v644 = vsel %vm642, %v629, %v643
        %vm645 = vcmp.eq.s32.totalorder %v640, 2
        %v646 = vxor.u32 %v629, 2147483648
        %v647 = vsel %vm645, %v646, %v637
        %v648 = vsel %vm641, %v644, %v647
        %v649 = vsel %vm638, nan, %v648
        %v650 = vand.u32 2147483647, %v468
        %vm651 = vcmp.le.f32.partialorder %v650, 0.7853982
        %vm652 = vcmp.lt.s32.totalorder %v468, 0
        %v653 = vand.u32 %v468, 2139095040
        %v654 = vshrl.u32 %v653, 23
        %v655 = vsub.s32 %v654, 127
        %v656 = vand.u32 2147483647, %v468
        %v657 = vand.u32 %v656, 8388607
        %v658 = vor.u32 %v657, 8388608
        %v659 = vsub.s32 0, %v658
        %v660 = vadd.s32 %v655, 1
        %vm661 = vcmp.gt.s32.totalorder %v660, 0
        %v662 = vsel %vm661, %v660, 0
        %v663 = vshrl.u32 %v662, 5
        %v664 = vand.u32 %v662, 31
        %v665 = vsub.s32 32, %v664
        %v666 = vshrl.u32 683565275, %v665
        %v667 = vshll.u32 683565275, %v664
        %v668 = vshrl.u32 2475754826, %v665
        %v669 = vor.u32 %v667, %v668
        %v670 = vshll.u32 2475754826, %v664
        %v671 = vshrl.u32 2131351028, %v665
        %v672 = vor.u32 %v670, %v671
        %v673 = vshll.u32 2131351028, %v664
        %v674 = vshrl.u32 2102212464, %v665
        %v675 = vor.u32 %v673, %v674
        %v676 = vshll.u32 2102212464, %v664
        %v677 = vshrl.u32 920167782, %v665
        %v678 = vor.u32 %v676, %v677
        %v679 = vshll.u32 920167782, %v664
        %v680 = vshrl.u32 1326507024, %v665
        %v681 = vor.u32 %v679, %v680
        %vm682 = vcmp.lt.s32.totalorder %v663, 1
        %vm683 = vcmp.lt.s32.totalorder %v663, 2
        %vm684 = vcmp.lt.s32.totalorder %v663, 3
        %vm685 = vcmp.lt.s32.totalorder %v663, 4
        %v686 = vsel %vm682, %v666, %v669
        %v687 = vsel %vm685, %v675, 2102212464
        %v688 = vsel %vm684, %v672, %v687
        %v689 = vsel %vm683, %v686, %v688
        %v690 = vsel %vm682, %v669, %v672
        %v691 = vsel %vm685, %v678, 920167782
        %v692 = vsel %vm684, %v675, %v691
        %v693 = vsel %vm683, %v690, %v692
        %v694 = vsel %vm682, %v672, %v675
        %v695 = vsel %vm685, %v681, 1326507024
        %v696 = vsel %vm684, %v678, %v695
        %v697 = vsel %vm683, %v694, %v696
        %v698 = vshll.u32 %v658, 8
        %v699 = vand.u32 %v698, 65535
        %v700 = vshrl.u32 %v698, 16
        %v701 = vand.u32 %v697, 65535
        %v702 = vshrl.u32 %v697, 16
        %v703 = vmul.u32 %v699, %v701
        %v704 = vmul.u32 %v699, %v702
        %v705 = vmul.u32 %v700, %v701
        %v706 = vmul.u32 %v700, %v702
        %v707 = vshll.u32 %v704, 16
        %v708 = vshrl.u32 %v704, 16
        %v709 = vshll.u32 %v705, 16
        %v710 = vshrl.u32 %v705, 16
        %vm711 = vc.u32 %v703, %v707
        %v712 = vsel %vm711, 1, 0
        %v713 = vadd.s32 %v703, %v707
        %v714 = vadd.s32 %v706, %v712
        %vm715 = vc.u32 %v713, %v709
        %v716 = vsel %vm715, 1, 0
        %v717 = vadd.s32 %v713, %v709
        %v718 = vadd.s32 %v714, %v716
        %v719 = vadd.s32 %v718, %v708
        %v720 = vadd.s32 %v719, %v710
        %v721 = vand.u32 %v698, 65535
        %v722 = vshrl.u32 %v698, 16
        %v723 = vand.u32 %v693, 65535
        %v724 = vshrl.u32 %v693, 16
        %v725 = vmul.u32 %v721, %v723
        %v726 = vmul.u32 %v721, %v724
        %v727 = vmul.u32 %v722, %v723
        %v728 = vmul.u32 %v722, %v724
        %v729 = vshll.u32 %v726, 16
        %v730 = vshrl.u32 %v726, 16
        %v731 = vshll.u32 %v727, 16
        %v732 = vshrl.u32 %v727, 16
        %vm733 = vc.u32 %v725, %v729
        %v734 = vsel %vm733, 1, 0
        %v735 = vadd.s32 %v725, %v729
        %v736 = vadd.s32 %v728, %v734
        %vm737 = vc.u32 %v735, %v731
        %v738 = vsel %vm737, 1, 0
        %v739 = vadd.s32 %v735, %v731
        %v740 = vadd.s32 %v736, %v738
        %v741 = vadd.s32 %v740, %v730
        %v742 = vadd.s32 %v741, %v732
        %v743 = vmul.u32 %v698, %v689
        %v744 = vadd.s32 %v720, %v739
        %vm745 = vc.u32 %v720, %v739
        %v746 = vadd.s32 %v742, 1
        %v747 = vsel %vm745, %v746, %v742
        %v748 = vadd.s32 %v743, %v747
        %v749 = vadd.s32 %v748, 536870912
        %v750 = vshrl.u32 %v749, 30
        %v751 = vshll.u32 %v750, 30
        %v752 = vsub.s32 %v748, %v751
        %vm753 = vcmp.lt.s32.totalorder %v752, 0
        %v754 = vsub.s32 0, %v752
        %v755 = vsel %vm753, %v754, %v752
        %v756 = vclz %v755
        %v757 = vsub.s32 %v756, 2
        %vm758 = vcmp.gt.s32.totalorder 0, %v757
        %v759 = vsel %vm758, 0, %v757
        %v760 = vsub.s32 32, %v759
        %v761 = vshll.u32 %v752, %v759
        %v762 = vshrl.u32 %v744, %v760
        %v763 = vor.u32 %v761, %v762
        %v764 = vsub.s32 4294967266, %v759
        %v765 = vadd.s32 %v764, 127
        %v766 = vshll.u32 %v765, 23
        %v767 = vor.u32 4788187, %v766
        %v768 = vand.u32 2147483647, %v767
        %v770 = vcvt.s32.f32 %v763
        %v771 = vmul.f32 %v770, %v768
        %v772 = vxor.u32 %v771, 2147483648
        %v773 = vsel %vm652, %v772, %v771
        %v774 = vsub.s32 4, %v750
        %v775 = vsel %vm652, %v774, %v750
        %v776 = vsel %vm651, %v468, %v773
        %v777 = vsel %vm651, 0, %v775
        %v778 = vmul.f32 %v776, %v776
        %v779 = vmul.f32 %v778, -0.001358992
        %v780 = vadd.f32 %v779, 0.041655596
        %v781 = vmul.f32 %v778, %v780
        %v782 = vadd.f32 %v781, -0.4999988
        %v783 = vmul.f32 %v778, %v782
        %v784 = vadd.f32 1.0, %v783
        %v785 = vmul.f32 %v776, %v776
        %v786 = vmul.f32 %v785, -0.00019511016
        %v787 = vadd.f32 %v786, 0.008332121
        %v788 = vmul.f32 %v785, %v787
        %v789 = vadd.f32 %v788, -0.16666654
        %v790 = vmul.f32 %v785, %v789
        %v791 = vadd.f32 %v790, 1.0
        %v792 = vmul.f32 %v791, %v776
        %vm793 = vweird.f32 %v468
        %v794 = vadd.s32 %v777, 3
        %v795 = vand.u32 %v794, 3
        %vm796 = vcmp.lt.s32.totalorder %v795, 2
        %vm797 = vcmp.eq.s32.totalorder %v795, 0
        %v798 = vxor.u32 %v792, 2147483648
        %v799 = vsel %vm797, %v784, %v798
        %vm800 = vcmp.eq.s32.totalorder %v795, 2
        %v801 = vxor.u32 %v784, 2147483648
        %v802 = vsel %vm800, %v801, %v792
        %v803 = vsel %vm796, %v799, %v802
        %v804 = vsel %vm793, nan, %v803
        %v805 = vand.u32 2147483647, %v469
        %vm806 = vcmp.le.f32.partialorder %v805, 0.7853982
        %vm807 = vcmp.lt.s32.totalorder %v469, 0
        %v808 = vand.u32 %v469, 2139095040
        %v809 = vshrl.u32 %v808, 23
        %v810 = vsub.s32 %v809, 127
        %v811 = vand.u32 2147483647, %v469
        %v812 = vand.u32 %v811, 8388607
        %v813 = vor.u32 %v812, 8388608
        %v814 = vsub.s32 0, %v813
        %v815 = vadd.s32 %v810, 1
        %vm816 = vcmp.gt.s32.totalorder %v815, 0
        %v817 = vsel %vm816, %v815, 0
        %v818 = vshrl.u32 %v817, 5
        %v819 = vand.u32 %v817, 31
        %v820 = vsub.s32 32, %v819
        %v821 = vshrl.u32 683565275, %v820
        %v822 = vshll.u32 683565275, %v819
        %v823 = vshrl.u32 2475754826, %v820
        %v824 = vor.u32 %v822, %v823
        %v825 = vshll.u32 2475754826, %v819
        %v826 = vshrl.u32 2131351028, %v820
        %v827 = vor.u32 %v825, %v826
        %v828 = vshll.u32 2131351028, %v819
        %v829 = vshrl.u32 2102212464, %v820
        %v830 = vor.u32 %v828, %v829
        %v831 = vshll.u32 2102212464, %v819
        %v832 = vshrl.u32 920167782, %v820
        %v833 = vor.u32 %v831, %v832
        %v834 = vshll.u32 920167782, %v819
        %v835 = vshrl.u32 1326507024, %v820
        %v836 = vor.u32 %v834, %v835
        %vm837 = vcmp.lt.s32.totalorder %v818, 1
        %vm838 = vcmp.lt.s32.totalorder %v818, 2
        %vm839 = vcmp.lt.s32.totalorder %v818, 3
        %vm840 = vcmp.lt.s32.totalorder %v818, 4
        %v841 = vsel %vm837, %v821, %v824
        %v842 = vsel %vm840, %v830, 2102212464
        %v843 = vsel %vm839, %v827, %v842
        %v844 = vsel %vm838, %v841, %v843
        %v845 = vsel %vm837, %v824, %v827
        %v846 = vsel %vm840, %v833, 920167782
        %v847 = vsel %vm839, %v830, %v846
        %v848 = vsel %vm838, %v845, %v847
        %v849 = vsel %vm837, %v827, %v830
        %v850 = vsel %vm840, %v836, 1326507024
        %v851 = vsel %vm839, %v833, %v850
        %v852 = vsel %vm838, %v849, %v851
        %v853 = vshll.u32 %v813, 8
        %v854 = vand.u32 %v853, 65535
        %v855 = vshrl.u32 %v853, 16
        %v856 = vand.u32 %v852, 65535
        %v857 = vshrl.u32 %v852, 16
        %v858 = vmul.u32 %v854, %v856
        %v859 = vmul.u32 %v854, %v857
        %v860 = vmul.u32 %v855, %v856
        %v861 = vmul.u32 %v855, %v857
        %v862 = vshll.u32 %v859, 16
        %v863 = vshrl.u32 %v859, 16
        %v864 = vshll.u32 %v860, 16
        %v865 = vshrl.u32 %v860, 16
        %vm866 = vc.u32 %v858, %v862
        %v867 = vsel %vm866, 1, 0
        %v868 = vadd.s32 %v858, %v862
        %v869 = vadd.s32 %v861, %v867
        %vm870 = vc.u32 %v868, %v864
        %v871 = vsel %vm870, 1, 0
        %v872 = vadd.s32 %v868, %v864
        %v873 = vadd.s32 %v869, %v871
        %v874 = vadd.s32 %v873, %v863
        %v875 = vadd.s32 %v874, %v865
        %v876 = vand.u32 %v853, 65535
        %v877 = vshrl.u32 %v853, 16
        %v878 = vand.u32 %v848, 65535
        %v879 = vshrl.u32 %v848, 16
        %v880 = vmul.u32 %v876, %v878
        %v881 = vmul.u32 %v876, %v879
        %v882 = vmul.u32 %v877, %v878
        %v883 = vmul.u32 %v877, %v879
        %v884 = vshll.u32 %v881, 16
        %v885 = vshrl.u32 %v881, 16
        %v886 = vshll.u32 %v882, 16
        %v887 = vshrl.u32 %v882, 16
        %vm888 = vc.u32 %v880, %v884
        %v889 = vsel %vm888, 1, 0
        %v890 = vadd.s32 %v880, %v884
        %v891 = vadd.s32 %v883, %v889
        %vm892 = vc.u32 %v890, %v886
        %v893 = vsel %vm892, 1, 0
        %v894 = vadd.s32 %v890, %v886
        %v895 = vadd.s32 %v891, %v893
        %v896 = vadd.s32 %v895, %v885
        %v897 = vadd.s32 %v896, %v887
        %v898 = vmul.u32 %v853, %v844
        %v899 = vadd.s32 %v875, %v894
        %vm900 = vc.u32 %v875, %v894
        %v901 = vadd.s32 %v897, 1
        %v902 = vsel %vm900, %v901, %v897
        %v903 = vadd.s32 %v898, %v902
        %v904 = vadd.s32 %v903, 536870912
        %v905 = vshrl.u32 %v904, 30
        %v906 = vshll.u32 %v905, 30
        %v907 = vsub.s32 %v903, %v906
        %vm908 = vcmp.lt.s32.totalorder %v907, 0
        %v909 = vsub.s32 0, %v907
        %v910 = vsel %vm908, %v909, %v907
        %v911 = vclz %v910
        %v912 = vsub.s32 %v911, 2
        %vm913 = vcmp.gt.s32.totalorder 0, %v912
        %v914 = vsel %vm913, 0, %v912
        %v915 = vsub.s32 32, %v914
        %v916 = vshll.u32 %v907, %v914
        %v917 = vshrl.u32 %v899, %v915
        %v918 = vor.u32 %v916, %v917
        %v919 = vsub.s32 4294967266, %v914
        %v920 = vadd.s32 %v919, 127
        %v921 = vshll.u32 %v920, 23
        %v922 = vor.u32 4788187, %v921
        %v923 = vand.u32 2147483647, %v922
        %v925 = vcvt.s32.f32 %v918
        %v926 = vmul.f32 %v925, %v923
        %v927 = vxor.u32 %v926, 2147483648
        %v928 = vsel %vm807, %v927, %v926
        %v929 = vsub.s32 4, %v905
        %v930 = vsel %vm807, %v929, %v905
        %v931 = vsel %vm806, %v469, %v928
        %v932 = vsel %vm806, 0, %v930
        %v933 = vmul.f32 %v931, %v931
        %v934 = vmul.f32 %v933, -0.001358992
        %v935 = vadd.f32 %v934, 0.041655596
        %v936 = vmul.f32 %v933, %v935
        %v937 = vadd.f32 %v936, -0.4999988
        %v938 = vmul.f32 %v933, %v937
        %v939 = vadd.f32 1.0, %v938
        %v940 = vmul.f32 %v931, %v931
        %v941 = vmul.f32 %v940, -0.00019511016
        %v942 = vadd.f32 %v941, 0.008332121
        %v943 = vmul.f32 %v940, %v942
        %v944 = vadd.f32 %v943, -0.16666654
        %v945 = vmul.f32 %v940, %v944
        %v946 = vadd.f32 %v945, 1.0
        %v947 = vmul.f32 %v946, %v931
        %vm948 = vweird.f32 %v469
        %v949 = vadd.s32 %v932, 3
        %v950 = vand.u32 %v949, 3
        %vm951 = vcmp.lt.s32.totalorder %v950, 2
        %vm952 = vcmp.eq.s32.totalorder %v950, 0
        %v953 = vxor.u32 %v947, 2147483648
        %v954 = vsel %vm952, %v939, %v953
        %vm955 = vcmp.eq.s32.totalorder %v950, 2
        %v956 = vxor.u32 %v939, 2147483648
        %v957 = vsel %vm955, %v956, %v947
        %v958 = vsel %vm951, %v954, %v957
        %v959 = vsel %vm948, nan, %v958
        %v960 = vand.u32 2147483647, %v470
        %vm961 = vcmp.le.f32.partialorder %v960, 0.7853982
        %vm962 = vcmp.lt.s32.totalorder %v470, 0
        %v963 = vand.u32 %v470, 2139095040
        %v964 = vshrl.u32 %v963, 23
        %v965 = vsub.s32 %v964, 127
        %v966 = vand.u32 2147483647, %v470
        %v967 = vand.u32 %v966, 8388607
        %v968 = vor.u32 %v967, 8388608
        %v969 = vsub.s32 0, %v968
        %v970 = vadd.s32 %v965, 1
        %vm971 = vcmp.gt.s32.totalorder %v970, 0
        %v972 = vsel %vm971, %v970, 0
        %v973 = vshrl.u32 %v972, 5
        %v974 = vand.u32 %v972, 31
        %v975 = vsub.s32 32, %v974
        %v976 = vshrl.u32 683565275, %v975
        %v977 = vshll.u32 683565275, %v974
        %v978 = vshrl.u32 2475754826, %v975
        %v979 = vor.u32 %v977, %v978
        %v980 = vshll.u32 2475754826, %v974
        %v981 = vshrl.u32 2131351028, %v975
        %v982 = vor.u32 %v980, %v981
        %v983 = vshll.u32 2131351028, %v974
        %v984 = vshrl.u32 2102212464, %v975
        %v985 = vor.u32 %v983, %v984
        %v986 = vshll.u32 2102212464, %v974
        %v987 = vshrl.u32 920167782, %v975
        %v988 = vor.u32 %v986, %v987
        %v989 = vshll.u32 920167782, %v974
        %v990 = vshrl.u32 1326507024, %v975
        %v991 = vor.u32 %v989, %v990
        %vm992 = vcmp.lt.s32.totalorder %v973, 1
        %vm993 = vcmp.lt.s32.totalorder %v973, 2
        %vm994 = vcmp.lt.s32.totalorder %v973, 3
        %vm995 = vcmp.lt.s32.totalorder %v973, 4
        %v996 = vsel %vm992, %v976, %v979
        %v997 = vsel %vm995, %v985, 2102212464
        %v998 = vsel %vm994, %v982, %v997
        %v999 = vsel %vm993, %v996, %v998
        %v1000 = vsel %vm992, %v979, %v982
        %v1001 = vsel %vm995, %v988, 920167782
        %v1002 = vsel %vm994, %v985, %v1001
        %v1003 = vsel %vm993, %v1000, %v1002
        %v1004 = vsel %vm992, %v982, %v985
        %v1005 = vsel %vm995, %v991, 1326507024
        %v1006 = vsel %vm994, %v988, %v1005
        %v1007 = vsel %vm993, %v1004, %v1006
        %v1008 = vshll.u32 %v968, 8
        %v1009 = vand.u32 %v1008, 65535
        %v1010 = vshrl.u32 %v1008, 16
        %v1011 = vand.u32 %v1007, 65535
        %v1012 = vshrl.u32 %v1007, 16
        %v1013 = vmul.u32 %v1009, %v1011
        %v1014 = vmul.u32 %v1009, %v1012
        %v1015 = vmul.u32 %v1010, %v1011
        %v1016 = vmul.u32 %v1010, %v1012
        %v1017 = vshll.u32 %v1014, 16
        %v1018 = vshrl.u32 %v1014, 16
        %v1019 = vshll.u32 %v1015, 16
        %v1020 = vshrl.u32 %v1015, 16
        %vm1021 = vc.u32 %v1013, %v1017
        %v1022 = vsel %vm1021, 1, 0
        %v1023 = vadd.s32 %v1013, %v1017
        %v1024 = vadd.s32 %v1016, %v1022
        %vm1025 = vc.u32 %v1023, %v1019
        %v1026 = vsel %vm1025, 1, 0
        %v1027 = vadd.s32 %v1023, %v1019
        %v1028 = vadd.s32 %v1024, %v1026
        %v1029 = vadd.s32 %v1028, %v1018
        %v1030 = vadd.s32 %v1029, %v1020
        %v1031 = vand.u32 %v1008, 65535
        %v1032 = vshrl.u32 %v1008, 16
        %v1033 = vand.u32 %v1003, 65535
        %v1034 = vshrl.u32 %v1003, 16
        %v1035 = vmul.u32 %v1031, %v1033
        %v1036 = vmul.u32 %v1031, %v1034
        %v1037 = vmul.u32 %v1032, %v1033
        %v1038 = vmul.u32 %v1032, %v1034
        %v1039 = vshll.u32 %v1036, 16
        %v1040 = vshrl.u32 %v1036, 16
        %v1041 = vshll.u32 %v1037, 16
        %v1042 = vshrl.u32 %v1037, 16
        %vm1043 = vc.u32 %v1035, %v1039
        %v1044 = vsel %vm1043, 1, 0
        %v1045 = vadd.s32 %v1035, %v1039
        %v1046 = vadd.s32 %v1038, %v1044
        %vm1047 = vc.u32 %v1045, %v1041
        %v1048 = vsel %vm1047, 1, 0
        %v1049 = vadd.s32 %v1045, %v1041
        %v1050 = vadd.s32 %v1046, %v1048
        %v1051 = vadd.s32 %v1050, %v1040
        %v1052 = vadd.s32 %v1051, %v1042
        %v1053 = vmul.u32 %v1008, %v999
        %v1054 = vadd.s32 %v1030, %v1049
        %vm1055 = vc.u32 %v1030, %v1049
        %v1056 = vadd.s32 %v1052, 1
        %v1057 = vsel %vm1055, %v1056, %v1052
        %v1058 = vadd.s32 %v1053, %v1057
        %v1059 = vadd.s32 %v1058, 536870912
        %v1060 = vshrl.u32 %v1059, 30
        %v1061 = vshll.u32 %v1060, 30
        %v1062 = vsub.s32 %v1058, %v1061
        %vm1063 = vcmp.lt.s32.totalorder %v1062, 0
        %v1064 = vsub.s32 0, %v1062
        %v1065 = vsel %vm1063, %v1064, %v1062
        %v1066 = vclz %v1065
        %v1067 = vsub.s32 %v1066, 2
        %vm1068 = vcmp.gt.s32.totalorder 0, %v1067
        %v1069 = vsel %vm1068, 0, %v1067
        %v1070 = vsub.s32 32, %v1069
        %v1071 = vshll.u32 %v1062, %v1069
        %v1072 = vshrl.u32 %v1054, %v1070
        %v1073 = vor.u32 %v1071, %v1072
        %v1074 = vsub.s32 4294967266, %v1069
        %v1075 = vadd.s32 %v1074, 127
        %v1076 = vshll.u32 %v1075, 23
        %v1077 = vor.u32 4788187, %v1076
        %v1078 = vand.u32 2147483647, %v1077
        %v1080 = vcvt.s32.f32 %v1073
        %v1081 = vmul.f32 %v1080, %v1078
        %v1082 = vxor.u32 %v1081, 2147483648
        %v1083 = vsel %vm962, %v1082, %v1081
        %v1084 = vsub.s32 4, %v1060
        %v1085 = vsel %vm962, %v1084, %v1060
        %v1086 = vsel %vm961, %v470, %v1083
        %v1087 = vsel %vm961, 0, %v1085
        %v1088 = vmul.f32 %v1086, %v1086
        %v1089 = vmul.f32 %v1088, -0.001358992
        %v1090 = vadd.f32 %v1089, 0.041655596
        %v1091 = vmul.f32 %v1088, %v1090
        %v1092 = vadd.f32 %v1091, -0.4999988
        %v1093 = vmul.f32 %v1088, %v1092
        %v1094 = vadd.f32 1.0, %v1093
        %v1095 = vmul.f32 %v1086, %v1086
        %v1096 = vmul.f32 %v1095, -0.00019511016
        %v1097 = vadd.f32 %v1096, 0.008332121
        %v1098 = vmul.f32 %v1095, %v1097
        %v1099 = vadd.f32 %v1098, -0.16666654
        %v1100 = vmul.f32 %v1095, %v1099
        %v1101 = vadd.f32 %v1100, 1.0
        %v1102 = vmul.f32 %v1101, %v1086
        %vm1103 = vweird.f32 %v470
        %v1104 = vadd.s32 %v1087, 3
        %v1105 = vand.u32 %v1104, 3
        %vm1106 = vcmp.lt.s32.totalorder %v1105, 2
        %vm1107 = vcmp.eq.s32.totalorder %v1105, 0
        %v1108 = vxor.u32 %v1102, 2147483648
        %v1109 = vsel %vm1107, %v1094, %v1108
        %vm1110 = vcmp.eq.s32.totalorder %v1105, 2
        %v1111 = vxor.u32 %v1094, 2147483648
        %v1112 = vsel %vm1110, %v1111, %v1102
        %v1113 = vsel %vm1106, %v1109, %v1112
        %v1114 = vsel %vm1103, nan, %v1113
        %v1115 = vand.u32 2147483647, %v471
        %vm1116 = vcmp.le.f32.partialorder %v1115, 0.7853982
        %vm1117 = vcmp.lt.s32.totalorder %v471, 0
        %v1118 = vand.u32 %v471, 2139095040
        %v1119 = vshrl.u32 %v1118, 23
        %v1120 = vsub.s32 %v1119, 127
        %v1121 = vand.u32 2147483647, %v471
        %v1122 = vand.u32 %v1121, 8388607
        %v1123 = vor.u32 %v1122, 8388608
        %v1124 = vsub.s32 0, %v1123
        %v1125 = vadd.s32 %v1120, 1
        %vm1126 = vcmp.gt.s32.totalorder %v1125, 0
        %v1127 = vsel %vm1126, %v1125, 0
        %v1128 = vshrl.u32 %v1127, 5
        %v1129 = vand.u32 %v1127, 31
        %v1130 = vsub.s32 32, %v1129
        %v1131 = vshrl.u32 683565275, %v1130
        %v1132 = vshll.u32 683565275, %v1129
        %v1133 = vshrl.u32 2475754826, %v1130
        %v1134 = vor.u32 %v1132, %v1133
        %v1135 = vshll.u32 2475754826, %v1129
        %v1136 = vshrl.u32 2131351028, %v1130
        %v1137 = vor.u32 %v1135, %v1136
        %v1138 = vshll.u32 2131351028, %v1129
        %v1139 = vshrl.u32 2102212464, %v1130
        %v1140 = vor.u32 %v1138, %v1139
        %v1141 = vshll.u32 2102212464, %v1129
        %v1142 = vshrl.u32 920167782, %v1130
        %v1143 = vor.u32 %v1141, %v1142
        %v1144 = vshll.u32 920167782, %v1129
        %v1145 = vshrl.u32 1326507024, %v1130
        %v1146 = vor.u32 %v1144, %v1145
        %vm1147 = vcmp.lt.s32.totalorder %v1128, 1
        %vm1148 = vcmp.lt.s32.totalorder %v1128, 2
        %vm1149 = vcmp.lt.s32.totalorder %v1128, 3
        %vm1150 = vcmp.lt.s32.totalorder %v1128, 4
        %v1151 = vsel %vm1147, %v1131, %v1134
        %v1152 = vsel %vm1150, %v1140, 2102212464
        %v1153 = vsel %vm1149, %v1137, %v1152
        %v1154 = vsel %vm1148, %v1151, %v1153
        %v1155 = vsel %vm1147, %v1134, %v1137
        %v1156 = vsel %vm1150, %v1143, 920167782
        %v1157 = vsel %vm1149, %v1140, %v1156
        %v1158 = vsel %vm1148, %v1155, %v1157
        %v1159 = vsel %vm1147, %v1137, %v1140
        %v1160 = vsel %vm1150, %v1146, 1326507024
        %v1161 = vsel %vm1149, %v1143, %v1160
        %v1162 = vsel %vm1148, %v1159, %v1161
        %v1163 = vshll.u32 %v1123, 8
        %v1164 = vand.u32 %v1163, 65535
        %v1165 = vshrl.u32 %v1163, 16
        %v1166 = vand.u32 %v1162, 65535
        %v1167 = vshrl.u32 %v1162, 16
        %v1168 = vmul.u32 %v1164, %v1166
        %v1169 = vmul.u32 %v1164, %v1167
        %v1170 = vmul.u32 %v1165, %v1166
        %v1171 = vmul.u32 %v1165, %v1167
        %v1172 = vshll.u32 %v1169, 16
        %v1173 = vshrl.u32 %v1169, 16
        %v1174 = vshll.u32 %v1170, 16
        %v1175 = vshrl.u32 %v1170, 16
        %vm1176 = vc.u32 %v1168, %v1172
        %v1177 = vsel %vm1176, 1, 0
        %v1178 = vadd.s32 %v1168, %v1172
        %v1179 = vadd.s32 %v1171, %v1177
        %vm1180 = vc.u32 %v1178, %v1174
        %v1181 = vsel %vm1180, 1, 0
        %v1182 = vadd.s32 %v1178, %v1174
        %v1183 = vadd.s32 %v1179, %v1181
        %v1184 = vadd.s32 %v1183, %v1173
        %v1185 = vadd.s32 %v1184, %v1175
        %v1186 = vand.u32 %v1163, 65535
        %v1187 = vshrl.u32 %v1163, 16
        %v1188 = vand.u32 %v1158, 65535
        %v1189 = vshrl.u32 %v1158, 16
        %v1190 = vmul.u32 %v1186, %v1188
        %v1191 = vmul.u32 %v1186, %v1189
        %v1192 = vmul.u32 %v1187, %v1188
        %v1193 = vmul.u32 %v1187, %v1189
        %v1194 = vshll.u32 %v1191, 16
        %v1195 = vshrl.u32 %v1191, 16
        %v1196 = vshll.u32 %v1192, 16
        %v1197 = vshrl.u32 %v1192, 16
        %vm1198 = vc.u32 %v1190, %v1194
        %v1199 = vsel %vm1198, 1, 0
        %v1200 = vadd.s32 %v1190, %v1194
        %v1201 = vadd.s32 %v1193, %v1199
        %vm1202 = vc.u32 %v1200, %v1196
        %v1203 = vsel %vm1202, 1, 0
        %v1204 = vadd.s32 %v1200, %v1196
        %v1205 = vadd.s32 %v1201, %v1203
        %v1206 = vadd.s32 %v1205, %v1195
        %v1207 = vadd.s32 %v1206, %v1197
        %v1208 = vmul.u32 %v1163, %v1154
        %v1209 = vadd.s32 %v1185, %v1204
        %vm1210 = vc.u32 %v1185, %v1204
        %v1211 = vadd.s32 %v1207, 1
        %v1212 = vsel %vm1210, %v1211, %v1207
        %v1213 = vadd.s32 %v1208, %v1212
        %v1214 = vadd.s32 %v1213, 536870912
        %v1215 = vshrl.u32 %v1214, 30
        %v1216 = vshll.u32 %v1215, 30
        %v1217 = vsub.s32 %v1213, %v1216
        %vm1218 = vcmp.lt.s32.totalorder %v1217, 0
        %v1219 = vsub.s32 0, %v1217
        %v1220 = vsel %vm1218, %v1219, %v1217
        %v1221 = vclz %v1220
        %v1222 = vsub.s32 %v1221, 2
        %vm1223 = vcmp.gt.s32.totalorder 0, %v1222
        %v1224 = vsel %vm1223, 0, %v1222
        %v1225 = vsub.s32 32, %v1224
        %v1226 = vshll.u32 %v1217, %v1224
        %v1227 = vshrl.u32 %v1209, %v1225
        %v1228 = vor.u32 %v1226, %v1227
        %v1229 = vsub.s32 4294967266, %v1224
        %v1230 = vadd.s32 %v1229, 127
        %v1231 = vshll.u32 %v1230, 23
        %v1232 = vor.u32 4788187, %v1231
        %v1233 = vand.u32 2147483647, %v1232
        %v1235 = vcvt.s32.f32 %v1228
        %v1236 = vmul.f32 %v1235, %v1233
        %v1237 = vxor.u32 %v1236, 2147483648
        %v1238 = vsel %vm1117, %v1237, %v1236
        %v1239 = vsub.s32 4, %v1215
        %v1240 = vsel %vm1117, %v1239, %v1215
        %v1241 = vsel %vm1116, %v471, %v1238
        %v1242 = vsel %vm1116, 0, %v1240
        %v1243 = vmul.f32 %v1241, %v1241
        %v1244 = vmul.f32 %v1243, -0.001358992
        %v1245 = vadd.f32 %v1244, 0.041655596
        %v1246 = vmul.f32 %v1243, %v1245
        %v1247 = vadd.f32 %v1246, -0.4999988
        %v1248 = vmul.f32 %v1243, %v1247
        %v1249 = vadd.f32 1.0, %v1248
        %v1250 = vmul.f32 %v1241, %v1241
        %v1251 = vmul.f32 %v1250, -0.00019511016
        %v1252 = vadd.f32 %v1251, 0.008332121
        %v1253 = vmul.f32 %v1250, %v1252
        %v1254 = vadd.f32 %v1253, -0.16666654
        %v1255 = vmul.f32 %v1250, %v1254
        %v1256 = vadd.f32 %v1255, 1.0
        %v1257 = vmul.f32 %v1256, %v1241
        %vm1258 = vweird.f32 %v471
        %v1259 = vadd.s32 %v1242, 3
        %v1260 = vand.u32 %v1259, 3
        %vm1261 = vcmp.lt.s32.totalorder %v1260, 2
        %vm1262 = vcmp.eq.s32.totalorder %v1260, 0
        %v1263 = vxor.u32 %v1257, 2147483648
        %v1264 = vsel %vm1262, %v1249, %v1263
        %vm1265 = vcmp.eq.s32.totalorder %v1260, 2
        %v1266 = vxor.u32 %v1249, 2147483648
        %v1267 = vsel %vm1265, %v1266, %v1257
        %v1268 = vsel %vm1261, %v1264, %v1267
        %v1269 = vsel %vm1258, nan, %v1268
        %v1270 = vand.u32 2147483647, %v472
        %vm1271 = vcmp.le.f32.partialorder %v1270, 0.7853982
        %vm1272 = vcmp.lt.s32.totalorder %v472, 0
        %v1273 = vand.u32 %v472, 2139095040
        %v1274 = vshrl.u32 %v1273, 23
        %v1275 = vsub.s32 %v1274, 127
        %v1276 = vand.u32 2147483647, %v472
        %v1277 = vand.u32 %v1276, 8388607
        %v1278 = vor.u32 %v1277, 8388608
        %v1279 = vsub.s32 0, %v1278
        %v1280 = vadd.s32 %v1275, 1
        %vm1281 = vcmp.gt.s32.totalorder %v1280, 0
        %v1282 = vsel %vm1281, %v1280, 0
        %v1283 = vshrl.u32 %v1282, 5
        %v1284 = vand.u32 %v1282, 31
        %v1285 = vsub.s32 32, %v1284
        %v1286 = vshrl.u32 683565275, %v1285
        %v1287 = vshll.u32 683565275, %v1284
        %v1288 = vshrl.u32 2475754826, %v1285
        %v1289 = vor.u32 %v1287, %v1288
        %v1290 = vshll.u32 2475754826, %v1284
        %v1291 = vshrl.u32 2131351028, %v1285
        %v1292 = vor.u32 %v1290, %v1291
        %v1293 = vshll.u32 2131351028, %v1284
        %v1294 = vshrl.u32 2102212464, %v1285
        %v1295 = vor.u32 %v1293, %v1294
        %v1296 = vshll.u32 2102212464, %v1284
        %v1297 = vshrl.u32 920167782, %v1285
        %v1298 = vor.u32 %v1296, %v1297
        %v1299 = vshll.u32 920167782, %v1284
        %v1300 = vshrl.u32 1326507024, %v1285
        %v1301 = vor.u32 %v1299, %v1300
        %vm1302 = vcmp.lt.s32.totalorder %v1283, 1
        %vm1303 = vcmp.lt.s32.totalorder %v1283, 2
        %vm1304 = vcmp.lt.s32.totalorder %v1283, 3
        %vm1305 = vcmp.lt.s32.totalorder %v1283, 4
        %v1306 = vsel %vm1302, %v1286, %v1289
        %v1307 = vsel %vm1305, %v1295, 2102212464
        %v1308 = vsel %vm1304, %v1292, %v1307
        %v1309 = vsel %vm1303, %v1306, %v1308
        %v1310 = vsel %vm1302, %v1289, %v1292
        %v1311 = vsel %vm1305, %v1298, 920167782
        %v1312 = vsel %vm1304, %v1295, %v1311
        %v1313 = vsel %vm1303, %v1310, %v1312
        %v1314 = vsel %vm1302, %v1292, %v1295
        %v1315 = vsel %vm1305, %v1301, 1326507024
        %v1316 = vsel %vm1304, %v1298, %v1315
        %v1317 = vsel %vm1303, %v1314, %v1316
        %v1318 = vshll.u32 %v1278, 8
        %v1319 = vand.u32 %v1318, 65535
        %v1320 = vshrl.u32 %v1318, 16
        %v1321 = vand.u32 %v1317, 65535
        %v1322 = vshrl.u32 %v1317, 16
        %v1323 = vmul.u32 %v1319, %v1321
        %v1324 = vmul.u32 %v1319, %v1322
        %v1325 = vmul.u32 %v1320, %v1321
        %v1326 = vmul.u32 %v1320, %v1322
        %v1327 = vshll.u32 %v1324, 16
        %v1328 = vshrl.u32 %v1324, 16
        %v1329 = vshll.u32 %v1325, 16
        %v1330 = vshrl.u32 %v1325, 16
        %vm1331 = vc.u32 %v1323, %v1327
        %v1332 = vsel %vm1331, 1, 0
        %v1333 = vadd.s32 %v1323, %v1327
        %v1334 = vadd.s32 %v1326, %v1332
        %vm1335 = vc.u32 %v1333, %v1329
        %v1336 = vsel %vm1335, 1, 0
        %v1337 = vadd.s32 %v1333, %v1329
        %v1338 = vadd.s32 %v1334, %v1336
        %v1339 = vadd.s32 %v1338, %v1328
        %v1340 = vadd.s32 %v1339, %v1330
        %v1341 = vand.u32 %v1318, 65535
        %v1342 = vshrl.u32 %v1318, 16
        %v1343 = vand.u32 %v1313, 65535
        %v1344 = vshrl.u32 %v1313, 16
        %v1345 = vmul.u32 %v1341, %v1343
        %v1346 = vmul.u32 %v1341, %v1344
        %v1347 = vmul.u32 %v1342, %v1343
        %v1348 = vmul.u32 %v1342, %v1344
        %v1349 = vshll.u32 %v1346, 16
        %v1350 = vshrl.u32 %v1346, 16
        %v1351 = vshll.u32 %v1347, 16
        %v1352 = vshrl.u32 %v1347, 16
        %vm1353 = vc.u32 %v1345, %v1349
        %v1354 = vsel %vm1353, 1, 0
        %v1355 = vadd.s32 %v1345, %v1349
        %v1356 = vadd.s32 %v1348, %v1354
        %vm1357 = vc.u32 %v1355, %v1351
        %v1358 = vsel %vm1357, 1, 0
        %v1359 = vadd.s32 %v1355, %v1351
        %v1360 = vadd.s32 %v1356, %v1358
        %v1361 = vadd.s32 %v1360, %v1350
        %v1362 = vadd.s32 %v1361, %v1352
        %v1363 = vmul.u32 %v1318, %v1309
        %v1364 = vadd.s32 %v1340, %v1359
        %vm1365 = vc.u32 %v1340, %v1359
        %v1366 = vadd.s32 %v1362, 1
        %v1367 = vsel %vm1365, %v1366, %v1362
        %v1368 = vadd.s32 %v1363, %v1367
        %v1369 = vadd.s32 %v1368, 536870912
        %v1370 = vshrl.u32 %v1369, 30
        %v1371 = vshll.u32 %v1370, 30
        %v1372 = vsub.s32 %v1368, %v1371
        %vm1373 = vcmp.lt.s32.totalorder %v1372, 0
        %v1374 = vsub.s32 0, %v1372
        %v1375 = vsel %vm1373, %v1374, %v1372
        %v1376 = vclz %v1375
        %v1377 = vsub.s32 %v1376, 2
        %vm1378 = vcmp.gt.s32.totalorder 0, %v1377
        %v1379 = vsel %vm1378, 0, %v1377
        %v1380 = vsub.s32 32, %v1379
        %v1381 = vshll.u32 %v1372, %v1379
        %v1382 = vshrl.u32 %v1364, %v1380
        %v1383 = vor.u32 %v1381, %v1382
        %v1384 = vsub.s32 4294967266, %v1379
        %v1385 = vadd.s32 %v1384, 127
        %v1386 = vshll.u32 %v1385, 23
        %v1387 = vor.u32 4788187, %v1386
        %v1388 = vand.u32 2147483647, %v1387
        %v1390 = vcvt.s32.f32 %v1383
        %v1391 = vmul.f32 %v1390, %v1388
        %v1392 = vxor.u32 %v1391, 2147483648
        %v1393 = vsel %vm1272, %v1392, %v1391
        %v1394 = vsub.s32 4, %v1370
        %v1395 = vsel %vm1272, %v1394, %v1370
        %v1396 = vsel %vm1271, %v472, %v1393
        %v1397 = vsel %vm1271, 0, %v1395
        %v1398 = vmul.f32 %v1396, %v1396
        %v1399 = vmul.f32 %v1398, -0.001358992
        %v1400 = vadd.f32 %v1399, 0.041655596
        %v1401 = vmul.f32 %v1398, %v1400
        %v1402 = vadd.f32 %v1401, -0.4999988
        %v1403 = vmul.f32 %v1398, %v1402
        %v1404 = vadd.f32 1.0, %v1403
        %v1405 = vmul.f32 %v1396, %v1396
        %v1406 = vmul.f32 %v1405, -0.00019511016
        %v1407 = vadd.f32 %v1406, 0.008332121
        %v1408 = vmul.f32 %v1405, %v1407
        %v1409 = vadd.f32 %v1408, -0.16666654
        %v1410 = vmul.f32 %v1405, %v1409
        %v1411 = vadd.f32 %v1410, 1.0
        %v1412 = vmul.f32 %v1411, %v1396
        %vm1413 = vweird.f32 %v472
        %v1414 = vadd.s32 %v1397, 3
        %v1415 = vand.u32 %v1414, 3
        %vm1416 = vcmp.lt.s32.totalorder %v1415, 2
        %vm1417 = vcmp.eq.s32.totalorder %v1415, 0
        %v1418 = vxor.u32 %v1412, 2147483648
        %v1419 = vsel %vm1417, %v1404, %v1418
        %vm1420 = vcmp.eq.s32.totalorder %v1415, 2
        %v1421 = vxor.u32 %v1404, 2147483648
        %v1422 = vsel %vm1420, %v1421, %v1412
        %v1423 = vsel %vm1416, %v1419, %v1422
        %v1424 = vsel %vm1413, nan, %v1423
        %v1425 = vand.u32 2147483647, %v473
        %vm1426 = vcmp.le.f32.partialorder %v1425, 0.7853982
        %vm1427 = vcmp.lt.s32.totalorder %v473, 0
        %v1428 = vand.u32 %v473, 2139095040
        %v1429 = vshrl.u32 %v1428, 23
        %v1430 = vsub.s32 %v1429, 127
        %v1431 = vand.u32 2147483647, %v473
        %v1432 = vand.u32 %v1431, 8388607
        %v1433 = vor.u32 %v1432, 8388608
        %v1434 = vsub.s32 0, %v1433
        %v1435 = vadd.s32 %v1430, 1
        %vm1436 = vcmp.gt.s32.totalorder %v1435, 0
        %v1437 = vsel %vm1436, %v1435, 0
        %v1438 = vshrl.u32 %v1437, 5
        %v1439 = vand.u32 %v1437, 31
        %v1440 = vsub.s32 32, %v1439
        %v1441 = vshrl.u32 683565275, %v1440
        %v1442 = vshll.u32 683565275, %v1439
        %v1443 = vshrl.u32 2475754826, %v1440
        %v1444 = vor.u32 %v1442, %v1443
        %v1445 = vshll.u32 2475754826, %v1439
        %v1446 = vshrl.u32 2131351028, %v1440
        %v1447 = vor.u32 %v1445, %v1446
        %v1448 = vshll.u32 2131351028, %v1439
        %v1449 = vshrl.u32 2102212464, %v1440
        %v1450 = vor.u32 %v1448, %v1449
        %v1451 = vshll.u32 2102212464, %v1439
        %v1452 = vshrl.u32 920167782, %v1440
        %v1453 = vor.u32 %v1451, %v1452
        %v1454 = vshll.u32 920167782, %v1439
        %v1455 = vshrl.u32 1326507024, %v1440
        %v1456 = vor.u32 %v1454, %v1455
        %vm1457 = vcmp.lt.s32.totalorder %v1438, 1
        %vm1458 = vcmp.lt.s32.totalorder %v1438, 2
        %vm1459 = vcmp.lt.s32.totalorder %v1438, 3
        %vm1460 = vcmp.lt.s32.totalorder %v1438, 4
        %v1461 = vsel %vm1457, %v1441, %v1444
        %v1462 = vsel %vm1460, %v1450, 2102212464
        %v1463 = vsel %vm1459, %v1447, %v1462
        %v1464 = vsel %vm1458, %v1461, %v1463
        %v1465 = vsel %vm1457, %v1444, %v1447
        %v1466 = vsel %vm1460, %v1453, 920167782
        %v1467 = vsel %vm1459, %v1450, %v1466
        %v1468 = vsel %vm1458, %v1465, %v1467
        %v1469 = vsel %vm1457, %v1447, %v1450
        %v1470 = vsel %vm1460, %v1456, 1326507024
        %v1471 = vsel %vm1459, %v1453, %v1470
        %v1472 = vsel %vm1458, %v1469, %v1471
        %v1473 = vshll.u32 %v1433, 8
        %v1474 = vand.u32 %v1473, 65535
        %v1475 = vshrl.u32 %v1473, 16
        %v1476 = vand.u32 %v1472, 65535
        %v1477 = vshrl.u32 %v1472, 16
        %v1478 = vmul.u32 %v1474, %v1476
        %v1479 = vmul.u32 %v1474, %v1477
        %v1480 = vmul.u32 %v1475, %v1476
        %v1481 = vmul.u32 %v1475, %v1477
        %v1482 = vshll.u32 %v1479, 16
        %v1483 = vshrl.u32 %v1479, 16
        %v1484 = vshll.u32 %v1480, 16
        %v1485 = vshrl.u32 %v1480, 16
        %vm1486 = vc.u32 %v1478, %v1482
        %v1487 = vsel %vm1486, 1, 0
        %v1488 = vadd.s32 %v1478, %v1482
        %v1489 = vadd.s32 %v1481, %v1487
        %vm1490 = vc.u32 %v1488, %v1484
        %v1491 = vsel %vm1490, 1, 0
        %v1492 = vadd.s32 %v1488, %v1484
        %v1493 = vadd.s32 %v1489, %v1491
        %v1494 = vadd.s32 %v1493, %v1483
        %v1495 = vadd.s32 %v1494, %v1485
        %v1496 = vand.u32 %v1473, 65535
        %v1497 = vshrl.u32 %v1473, 16
        %v1498 = vand.u32 %v1468, 65535
        %v1499 = vshrl.u32 %v1468, 16
        %v1500 = vmul.u32 %v1496, %v1498
        %v1501 = vmul.u32 %v1496, %v1499
        %v1502 = vmul.u32 %v1497, %v1498
        %v1503 = vmul.u32 %v1497, %v1499
        %v1504 = vshll.u32 %v1501, 16
        %v1505 = vshrl.u32 %v1501, 16
        %v1506 = vshll.u32 %v1502, 16
        %v1507 = vshrl.u32 %v1502, 16
        %vm1508 = vc.u32 %v1500, %v1504
        %v1509 = vsel %vm1508, 1, 0
        %v1510 = vadd.s32 %v1500, %v1504
        %v1511 = vadd.s32 %v1503, %v1509
        %vm1512 = vc.u32 %v1510, %v1506
        %v1513 = vsel %vm1512, 1, 0
        %v1514 = vadd.s32 %v1510, %v1506
        %v1515 = vadd.s32 %v1511, %v1513
        %v1516 = vadd.s32 %v1515, %v1505
        %v1517 = vadd.s32 %v1516, %v1507
        %v1518 = vmul.u32 %v1473, %v1464
        %v1519 = vadd.s32 %v1495, %v1514
        %vm1520 = vc.u32 %v1495, %v1514
        %v1521 = vadd.s32 %v1517, 1
        %v1522 = vsel %vm1520, %v1521, %v1517
        %v1523 = vadd.s32 %v1518, %v1522
        %v1524 = vadd.s32 %v1523, 536870912
        %v1525 = vshrl.u32 %v1524, 30
        %v1526 = vshll.u32 %v1525, 30
        %v1527 = vsub.s32 %v1523, %v1526
        %vm1528 = vcmp.lt.s32.totalorder %v1527, 0
        %v1529 = vsub.s32 0, %v1527
        %v1530 = vsel %vm1528, %v1529, %v1527
        %v1531 = vclz %v1530
        %v1532 = vsub.s32 %v1531, 2
        %vm1533 = vcmp.gt.s32.totalorder 0, %v1532
        %v1534 = vsel %vm1533, 0, %v1532
        %v1535 = vsub.s32 32, %v1534
        %v1536 = vshll.u32 %v1527, %v1534
        %v1537 = vshrl.u32 %v1519, %v1535
        %v1538 = vor.u32 %v1536, %v1537
        %v1539 = vsub.s32 4294967266, %v1534
        %v1540 = vadd.s32 %v1539, 127
        %v1541 = vshll.u32 %v1540, 23
        %v1542 = vor.u32 4788187, %v1541
        %v1543 = vand.u32 2147483647, %v1542
        %v1545 = vcvt.s32.f32 %v1538
        %v1546 = vmul.f32 %v1545, %v1543
        %v1547 = vxor.u32 %v1546, 2147483648
        %v1548 = vsel %vm1427, %v1547, %v1546
        %v1549 = vsub.s32 4, %v1525
        %v1550 = vsel %vm1427, %v1549, %v1525
        %v1551 = vsel %vm1426, %v473, %v1548
        %v1552 = vsel %vm1426, 0, %v1550
        %v1553 = vmul.f32 %v1551, %v1551
        %v1554 = vmul.f32 %v1553, -0.001358992
        %v1555 = vadd.f32 %v1554, 0.041655596
        %v1556 = vmul.f32 %v1553, %v1555
        %v1557 = vadd.f32 %v1556, -0.4999988
        %v1558 = vmul.f32 %v1553, %v1557
        %v1559 = vadd.f32 1.0, %v1558
        %v1560 = vmul.f32 %v1551, %v1551
        %v1561 = vmul.f32 %v1560, -0.00019511016
        %v1562 = vadd.f32 %v1561, 0.008332121
        %v1563 = vmul.f32 %v1560, %v1562
        %v1564 = vadd.f32 %v1563, -0.16666654
        %v1565 = vmul.f32 %v1560, %v1564
        %v1566 = vadd.f32 %v1565, 1.0
        %v1567 = vmul.f32 %v1566, %v1551
        %vm1568 = vweird.f32 %v473
        %v1569 = vadd.s32 %v1552, 3
        %v1570 = vand.u32 %v1569, 3
        %vm1571 = vcmp.lt.s32.totalorder %v1570, 2
        %vm1572 = vcmp.eq.s32.totalorder %v1570, 0
        %v1573 = vxor.u32 %v1567, 2147483648
        %v1574 = vsel %vm1572, %v1559, %v1573
        %vm1575 = vcmp.eq.s32.totalorder %v1570, 2
        %v1576 = vxor.u32 %v1559, 2147483648
        %v1577 = vsel %vm1575, %v1576, %v1567
        %v1578 = vsel %vm1571, %v1574, %v1577
        %v1579 = vsel %vm1568, nan, %v1578
        %v1580 = vand.u32 2147483647, %v474
        %vm1581 = vcmp.le.f32.partialorder %v1580, 0.7853982
        %vm1582 = vcmp.lt.s32.totalorder %v474, 0
        %v1583 = vand.u32 %v474, 2139095040
        %v1584 = vshrl.u32 %v1583, 23
        %v1585 = vsub.s32 %v1584, 127
        %v1586 = vand.u32 2147483647, %v474
        %v1587 = vand.u32 %v1586, 8388607
        %v1588 = vor.u32 %v1587, 8388608
        %v1589 = vsub.s32 0, %v1588
        %v1590 = vadd.s32 %v1585, 1
        %vm1591 = vcmp.gt.s32.totalorder %v1590, 0
        %v1592 = vsel %vm1591, %v1590, 0
        %v1593 = vshrl.u32 %v1592, 5
        %v1594 = vand.u32 %v1592, 31
        %v1595 = vsub.s32 32, %v1594
        %v1596 = vshrl.u32 683565275, %v1595
        %v1597 = vshll.u32 683565275, %v1594
        %v1598 = vshrl.u32 2475754826, %v1595
        %v1599 = vor.u32 %v1597, %v1598
        %v1600 = vshll.u32 2475754826, %v1594
        %v1601 = vshrl.u32 2131351028, %v1595
        %v1602 = vor.u32 %v1600, %v1601
        %v1603 = vshll.u32 2131351028, %v1594
        %v1604 = vshrl.u32 2102212464, %v1595
        %v1605 = vor.u32 %v1603, %v1604
        %v1606 = vshll.u32 2102212464, %v1594
        %v1607 = vshrl.u32 920167782, %v1595
        %v1608 = vor.u32 %v1606, %v1607
        %v1609 = vshll.u32 920167782, %v1594
        %v1610 = vshrl.u32 1326507024, %v1595
        %v1611 = vor.u32 %v1609, %v1610
        %vm1612 = vcmp.lt.s32.totalorder %v1593, 1
        %vm1613 = vcmp.lt.s32.totalorder %v1593, 2
        %vm1614 = vcmp.lt.s32.totalorder %v1593, 3
        %vm1615 = vcmp.lt.s32.totalorder %v1593, 4
        %v1616 = vsel %vm1612, %v1596, %v1599
        %v1617 = vsel %vm1615, %v1605, 2102212464
        %v1618 = vsel %vm1614, %v1602, %v1617
        %v1619 = vsel %vm1613, %v1616, %v1618
        %v1620 = vsel %vm1612, %v1599, %v1602
        %v1621 = vsel %vm1615, %v1608, 920167782
        %v1622 = vsel %vm1614, %v1605, %v1621
        %v1623 = vsel %vm1613, %v1620, %v1622
        %v1624 = vsel %vm1612, %v1602, %v1605
        %v1625 = vsel %vm1615, %v1611, 1326507024
        %v1626 = vsel %vm1614, %v1608, %v1625
        %v1627 = vsel %vm1613, %v1624, %v1626
        %v1628 = vshll.u32 %v1588, 8
        %v1629 = vand.u32 %v1628, 65535
        %v1630 = vshrl.u32 %v1628, 16
        %v1631 = vand.u32 %v1627, 65535
        %v1632 = vshrl.u32 %v1627, 16
        %v1633 = vmul.u32 %v1629, %v1631
        %v1634 = vmul.u32 %v1629, %v1632
        %v1635 = vmul.u32 %v1630, %v1631
        %v1636 = vmul.u32 %v1630, %v1632
        %v1637 = vshll.u32 %v1634, 16
        %v1638 = vshrl.u32 %v1634, 16
        %v1639 = vshll.u32 %v1635, 16
        %v1640 = vshrl.u32 %v1635, 16
        %vm1641 = vc.u32 %v1633, %v1637
        %v1642 = vsel %vm1641, 1, 0
        %v1643 = vadd.s32 %v1633, %v1637
        %v1644 = vadd.s32 %v1636, %v1642
        %vm1645 = vc.u32 %v1643, %v1639
        %v1646 = vsel %vm1645, 1, 0
        %v1647 = vadd.s32 %v1643, %v1639
        %v1648 = vadd.s32 %v1644, %v1646
        %v1649 = vadd.s32 %v1648, %v1638
        %v1650 = vadd.s32 %v1649, %v1640
        %v1651 = vand.u32 %v1628, 65535
        %v1652 = vshrl.u32 %v1628, 16
        %v1653 = vand.u32 %v1623, 65535
        %v1654 = vshrl.u32 %v1623, 16
        %v1655 = vmul.u32 %v1651, %v1653
        %v1656 = vmul.u32 %v1651, %v1654
        %v1657 = vmul.u32 %v1652, %v1653
        %v1658 = vmul.u32 %v1652, %v1654
        %v1659 = vshll.u32 %v1656, 16
        %v1660 = vshrl.u32 %v1656, 16
        %v1661 = vshll.u32 %v1657, 16
        %v1662 = vshrl.u32 %v1657, 16
        %vm1663 = vc.u32 %v1655, %v1659
        %v1664 = vsel %vm1663, 1, 0
        %v1665 = vadd.s32 %v1655, %v1659
        %v1666 = vadd.s32 %v1658, %v1664
        %vm1667 = vc.u32 %v1665, %v1661
        %v1668 = vsel %vm1667, 1, 0
        %v1669 = vadd.s32 %v1665, %v1661
        %v1670 = vadd.s32 %v1666, %v1668
        %v1671 = vadd.s32 %v1670, %v1660
        %v1672 = vadd.s32 %v1671, %v1662
        %v1673 = vmul.u32 %v1628, %v1619
        %v1674 = vadd.s32 %v1650, %v1669
        %vm1675 = vc.u32 %v1650, %v1669
        %v1676 = vadd.s32 %v1672, 1
        %v1677 = vsel %vm1675, %v1676, %v1672
        %v1678 = vadd.s32 %v1673, %v1677
        %v1679 = vadd.s32 %v1678, 536870912
        %v1680 = vshrl.u32 %v1679, 30
        %v1681 = vshll.u32 %v1680, 30
        %v1682 = vsub.s32 %v1678, %v1681
        %vm1683 = vcmp.lt.s32.totalorder %v1682, 0
        %v1684 = vsub.s32 0, %v1682
        %v1685 = vsel %vm1683, %v1684, %v1682
        %v1686 = vclz %v1685
        %v1687 = vsub.s32 %v1686, 2
        %vm1688 = vcmp.gt.s32.totalorder 0, %v1687
        %v1689 = vsel %vm1688, 0, %v1687
        %v1690 = vsub.s32 32, %v1689
        %v1691 = vshll.u32 %v1682, %v1689
        %v1692 = vshrl.u32 %v1674, %v1690
        %v1693 = vor.u32 %v1691, %v1692
        %v1694 = vsub.s32 4294967266, %v1689
        %v1695 = vadd.s32 %v1694, 127
        %v1696 = vshll.u32 %v1695, 23
        %v1697 = vor.u32 4788187, %v1696
        %v1698 = vand.u32 2147483647, %v1697
        %v1700 = vcvt.s32.f32 %v1693
        %v1701 = vmul.f32 %v1700, %v1698
        %v1702 = vxor.u32 %v1701, 2147483648
        %v1703 = vsel %vm1582, %v1702, %v1701
        %v1704 = vsub.s32 4, %v1680
        %v1705 = vsel %vm1582, %v1704, %v1680
        %v1706 = vsel %vm1581, %v474, %v1703
        %v1707 = vsel %vm1581, 0, %v1705
        %v1708 = vmul.f32 %v1706, %v1706
        %v1709 = vmul.f32 %v1708, -0.001358992
        %v1710 = vadd.f32 %v1709, 0.041655596
        %v1711 = vmul.f32 %v1708, %v1710
        %v1712 = vadd.f32 %v1711, -0.4999988
        %v1713 = vmul.f32 %v1708, %v1712
        %v1714 = vadd.f32 1.0, %v1713
        %v1715 = vmul.f32 %v1706, %v1706
        %v1716 = vmul.f32 %v1715, -0.00019511016
        %v1717 = vadd.f32 %v1716, 0.008332121
        %v1718 = vmul.f32 %v1715, %v1717
        %v1719 = vadd.f32 %v1718, -0.16666654
        %v1720 = vmul.f32 %v1715, %v1719
        %v1721 = vadd.f32 %v1720, 1.0
        %v1722 = vmul.f32 %v1721, %v1706
        %vm1723 = vweird.f32 %v474
        %v1724 = vadd.s32 %v1707, 3
        %v1725 = vand.u32 %v1724, 3
        %vm1726 = vcmp.lt.s32.totalorder %v1725, 2
        %vm1727 = vcmp.eq.s32.totalorder %v1725, 0
        %v1728 = vxor.u32 %v1722, 2147483648
        %v1729 = vsel %vm1727, %v1714, %v1728
        %vm1730 = vcmp.eq.s32.totalorder %v1725, 2
        %v1731 = vxor.u32 %v1714, 2147483648
        %v1732 = vsel %vm1730, %v1731, %v1722
        %v1733 = vsel %vm1726, %v1729, %v1732
        %v1734 = vsel %vm1723, nan, %v1733
        %v1735 = vand.u32 2147483647, %v475
        %vm1736 = vcmp.le.f32.partialorder %v1735, 0.7853982
        %vm1737 = vcmp.lt.s32.totalorder %v475, 0
        %v1738 = vand.u32 %v475, 2139095040
        %v1739 = vshrl.u32 %v1738, 23
        %v1740 = vsub.s32 %v1739, 127
        %v1741 = vand.u32 2147483647, %v475
        %v1742 = vand.u32 %v1741, 8388607
        %v1743 = vor.u32 %v1742, 8388608
        %v1744 = vsub.s32 0, %v1743
        %v1745 = vadd.s32 %v1740, 1
        %vm1746 = vcmp.gt.s32.totalorder %v1745, 0
        %v1747 = vsel %vm1746, %v1745, 0
        %v1748 = vshrl.u32 %v1747, 5
        %v1749 = vand.u32 %v1747, 31
        %v1750 = vsub.s32 32, %v1749
        %v1751 = vshrl.u32 683565275, %v1750
        %v1752 = vshll.u32 683565275, %v1749
        %v1753 = vshrl.u32 2475754826, %v1750
        %v1754 = vor.u32 %v1752, %v1753
        %v1755 = vshll.u32 2475754826, %v1749
        %v1756 = vshrl.u32 2131351028, %v1750
        %v1757 = vor.u32 %v1755, %v1756
        %v1758 = vshll.u32 2131351028, %v1749
        %v1759 = vshrl.u32 2102212464, %v1750
        %v1760 = vor.u32 %v1758, %v1759
        %v1761 = vshll.u32 2102212464, %v1749
        %v1762 = vshrl.u32 920167782, %v1750
        %v1763 = vor.u32 %v1761, %v1762
        %v1764 = vshll.u32 920167782, %v1749
        %v1765 = vshrl.u32 1326507024, %v1750
        %v1766 = vor.u32 %v1764, %v1765
        %vm1767 = vcmp.lt.s32.totalorder %v1748, 1
        %vm1768 = vcmp.lt.s32.totalorder %v1748, 2
        %vm1769 = vcmp.lt.s32.totalorder %v1748, 3
        %vm1770 = vcmp.lt.s32.totalorder %v1748, 4
        %v1771 = vsel %vm1767, %v1751, %v1754
        %v1772 = vsel %vm1770, %v1760, 2102212464
        %v1773 = vsel %vm1769, %v1757, %v1772
        %v1774 = vsel %vm1768, %v1771, %v1773
        %v1775 = vsel %vm1767, %v1754, %v1757
        %v1776 = vsel %vm1770, %v1763, 920167782
        %v1777 = vsel %vm1769, %v1760, %v1776
        %v1778 = vsel %vm1768, %v1775, %v1777
        %v1779 = vsel %vm1767, %v1757, %v1760
        %v1780 = vsel %vm1770, %v1766, 1326507024
        %v1781 = vsel %vm1769, %v1763, %v1780
        %v1782 = vsel %vm1768, %v1779, %v1781
        %v1783 = vshll.u32 %v1743, 8
        %v1784 = vand.u32 %v1783, 65535
        %v1785 = vshrl.u32 %v1783, 16
        %v1786 = vand.u32 %v1782, 65535
        %v1787 = vshrl.u32 %v1782, 16
        %v1788 = vmul.u32 %v1784, %v1786
        %v1789 = vmul.u32 %v1784, %v1787
        %v1790 = vmul.u32 %v1785, %v1786
        %v1791 = vmul.u32 %v1785, %v1787
        %v1792 = vshll.u32 %v1789, 16
        %v1793 = vshrl.u32 %v1789, 16
        %v1794 = vshll.u32 %v1790, 16
        %v1795 = vshrl.u32 %v1790, 16
        %vm1796 = vc.u32 %v1788, %v1792
        %v1797 = vsel %vm1796, 1, 0
        %v1798 = vadd.s32 %v1788, %v1792
        %v1799 = vadd.s32 %v1791, %v1797
        %vm1800 = vc.u32 %v1798, %v1794
        %v1801 = vsel %vm1800, 1, 0
        %v1802 = vadd.s32 %v1798, %v1794
        %v1803 = vadd.s32 %v1799, %v1801
        %v1804 = vadd.s32 %v1803, %v1793
        %v1805 = vadd.s32 %v1804, %v1795
        %v1806 = vand.u32 %v1783, 65535
        %v1807 = vshrl.u32 %v1783, 16
        %v1808 = vand.u32 %v1778, 65535
        %v1809 = vshrl.u32 %v1778, 16
        %v1810 = vmul.u32 %v1806, %v1808
        %v1811 = vmul.u32 %v1806, %v1809
        %v1812 = vmul.u32 %v1807, %v1808
        %v1813 = vmul.u32 %v1807, %v1809
        %v1814 = vshll.u32 %v1811, 16
        %v1815 = vshrl.u32 %v1811, 16
        %v1816 = vshll.u32 %v1812, 16
        %v1817 = vshrl.u32 %v1812, 16
        %vm1818 = vc.u32 %v1810, %v1814
        %v1819 = vsel %vm1818, 1, 0
        %v1820 = vadd.s32 %v1810, %v1814
        %v1821 = vadd.s32 %v1813, %v1819
        %vm1822 = vc.u32 %v1820, %v1816
        %v1823 = vsel %vm1822, 1, 0
        %v1824 = vadd.s32 %v1820, %v1816
        %v1825 = vadd.s32 %v1821, %v1823
        %v1826 = vadd.s32 %v1825, %v1815
        %v1827 = vadd.s32 %v1826, %v1817
        %v1828 = vmul.u32 %v1783, %v1774
        %v1829 = vadd.s32 %v1805, %v1824
        %vm1830 = vc.u32 %v1805, %v1824
        %v1831 = vadd.s32 %v1827, 1
        %v1832 = vsel %vm1830, %v1831, %v1827
        %v1833 = vadd.s32 %v1828, %v1832
        %v1834 = vadd.s32 %v1833, 536870912
        %v1835 = vshrl.u32 %v1834, 30
        %v1836 = vshll.u32 %v1835, 30
        %v1837 = vsub.s32 %v1833, %v1836
        %vm1838 = vcmp.lt.s32.totalorder %v1837, 0
        %v1839 = vsub.s32 0, %v1837
        %v1840 = vsel %vm1838, %v1839, %v1837
        %v1841 = vclz %v1840
        %v1842 = vsub.s32 %v1841, 2
        %vm1843 = vcmp.gt.s32.totalorder 0, %v1842
        %v1844 = vsel %vm1843, 0, %v1842
        %v1845 = vsub.s32 32, %v1844
        %v1846 = vshll.u32 %v1837, %v1844
        %v1847 = vshrl.u32 %v1829, %v1845
        %v1848 = vor.u32 %v1846, %v1847
        %v1849 = vsub.s32 4294967266, %v1844
        %v1850 = vadd.s32 %v1849, 127
        %v1851 = vshll.u32 %v1850, 23
        %v1852 = vor.u32 4788187, %v1851
        %v1853 = vand.u32 2147483647, %v1852
        %v1855 = vcvt.s32.f32 %v1848
        %v1856 = vmul.f32 %v1855, %v1853
        %v1857 = vxor.u32 %v1856, 2147483648
        %v1858 = vsel %vm1737, %v1857, %v1856
        %v1859 = vsub.s32 4, %v1835
        %v1860 = vsel %vm1737, %v1859, %v1835
        %v1861 = vsel %vm1736, %v475, %v1858
        %v1862 = vsel %vm1736, 0, %v1860
        %v1863 = vmul.f32 %v1861, %v1861
        %v1864 = vmul.f32 %v1863, -0.001358992
        %v1865 = vadd.f32 %v1864, 0.041655596
        %v1866 = vmul.f32 %v1863, %v1865
        %v1867 = vadd.f32 %v1866, -0.4999988
        %v1868 = vmul.f32 %v1863, %v1867
        %v1869 = vadd.f32 1.0, %v1868
        %v1870 = vmul.f32 %v1861, %v1861
        %v1871 = vmul.f32 %v1870, -0.00019511016
        %v1872 = vadd.f32 %v1871, 0.008332121
        %v1873 = vmul.f32 %v1870, %v1872
        %v1874 = vadd.f32 %v1873, -0.16666654
        %v1875 = vmul.f32 %v1870, %v1874
        %v1876 = vadd.f32 %v1875, 1.0
        %v1877 = vmul.f32 %v1876, %v1861
        %vm1878 = vweird.f32 %v475
        %v1879 = vadd.s32 %v1862, 3
        %v1880 = vand.u32 %v1879, 3
        %vm1881 = vcmp.lt.s32.totalorder %v1880, 2
        %vm1882 = vcmp.eq.s32.totalorder %v1880, 0
        %v1883 = vxor.u32 %v1877, 2147483648
        %v1884 = vsel %vm1882, %v1869, %v1883
        %vm1885 = vcmp.eq.s32.totalorder %v1880, 2
        %v1886 = vxor.u32 %v1869, 2147483648
        %v1887 = vsel %vm1885, %v1886, %v1877
        %v1888 = vsel %vm1881, %v1884, %v1887
        %v1889 = vsel %vm1878, nan, %v1888
        %v1890 = vand.u32 2147483647, %v476
        %vm1891 = vcmp.le.f32.partialorder %v1890, 0.7853982
        %vm1892 = vcmp.lt.s32.totalorder %v476, 0
        %v1893 = vand.u32 %v476, 2139095040
        %v1894 = vshrl.u32 %v1893, 23
        %v1895 = vsub.s32 %v1894, 127
        %v1896 = vand.u32 2147483647, %v476
        %v1897 = vand.u32 %v1896, 8388607
        %v1898 = vor.u32 %v1897, 8388608
        %v1899 = vsub.s32 0, %v1898
        %v1900 = vadd.s32 %v1895, 1
        %vm1901 = vcmp.gt.s32.totalorder %v1900, 0
        %v1902 = vsel %vm1901, %v1900, 0
        %v1903 = vshrl.u32 %v1902, 5
        %v1904 = vand.u32 %v1902, 31
        %v1905 = vsub.s32 32, %v1904
        %v1906 = vshrl.u32 683565275, %v1905
        %v1907 = vshll.u32 683565275, %v1904
        %v1908 = vshrl.u32 2475754826, %v1905
        %v1909 = vor.u32 %v1907, %v1908
        %v1910 = vshll.u32 2475754826, %v1904
        %v1911 = vshrl.u32 2131351028, %v1905
        %v1912 = vor.u32 %v1910, %v1911
        %v1913 = vshll.u32 2131351028, %v1904
        %v1914 = vshrl.u32 2102212464, %v1905
        %v1915 = vor.u32 %v1913, %v1914
        %v1916 = vshll.u32 2102212464, %v1904
        %v1917 = vshrl.u32 920167782, %v1905
        %v1918 = vor.u32 %v1916, %v1917
        %v1919 = vshll.u32 920167782, %v1904
        %v1920 = vshrl.u32 1326507024, %v1905
        %v1921 = vor.u32 %v1919, %v1920
        %vm1922 = vcmp.lt.s32.totalorder %v1903, 1
        %vm1923 = vcmp.lt.s32.totalorder %v1903, 2
        %vm1924 = vcmp.lt.s32.totalorder %v1903, 3
        %vm1925 = vcmp.lt.s32.totalorder %v1903, 4
        %v1926 = vsel %vm1922, %v1906, %v1909
        %v1927 = vsel %vm1925, %v1915, 2102212464
        %v1928 = vsel %vm1924, %v1912, %v1927
        %v1929 = vsel %vm1923, %v1926, %v1928
        %v1930 = vsel %vm1922, %v1909, %v1912
        %v1931 = vsel %vm1925, %v1918, 920167782
        %v1932 = vsel %vm1924, %v1915, %v1931
        %v1933 = vsel %vm1923, %v1930, %v1932
        %v1934 = vsel %vm1922, %v1912, %v1915
        %v1935 = vsel %vm1925, %v1921, 1326507024
        %v1936 = vsel %vm1924, %v1918, %v1935
        %v1937 = vsel %vm1923, %v1934, %v1936
        %v1938 = vshll.u32 %v1898, 8
        %v1939 = vand.u32 %v1938, 65535
        %v1940 = vshrl.u32 %v1938, 16
        %v1941 = vand.u32 %v1937, 65535
        %v1942 = vshrl.u32 %v1937, 16
        %v1943 = vmul.u32 %v1939, %v1941
        %v1944 = vmul.u32 %v1939, %v1942
        %v1945 = vmul.u32 %v1940, %v1941
        %v1946 = vmul.u32 %v1940, %v1942
        %v1947 = vshll.u32 %v1944, 16
        %v1948 = vshrl.u32 %v1944, 16
        %v1949 = vshll.u32 %v1945, 16
        %v1950 = vshrl.u32 %v1945, 16
        %vm1951 = vc.u32 %v1943, %v1947
        %v1952 = vsel %vm1951, 1, 0
        %v1953 = vadd.s32 %v1943, %v1947
        %v1954 = vadd.s32 %v1946, %v1952
        %vm1955 = vc.u32 %v1953, %v1949
        %v1956 = vsel %vm1955, 1, 0
        %v1957 = vadd.s32 %v1953, %v1949
        %v1958 = vadd.s32 %v1954, %v1956
        %v1959 = vadd.s32 %v1958, %v1948
        %v1960 = vadd.s32 %v1959, %v1950
        %v1961 = vand.u32 %v1938, 65535
        %v1962 = vshrl.u32 %v1938, 16
        %v1963 = vand.u32 %v1933, 65535
        %v1964 = vshrl.u32 %v1933, 16
        %v1965 = vmul.u32 %v1961, %v1963
        %v1966 = vmul.u32 %v1961, %v1964
        %v1967 = vmul.u32 %v1962, %v1963
        %v1968 = vmul.u32 %v1962, %v1964
        %v1969 = vshll.u32 %v1966, 16
        %v1970 = vshrl.u32 %v1966, 16
        %v1971 = vshll.u32 %v1967, 16
        %v1972 = vshrl.u32 %v1967, 16
        %vm1973 = vc.u32 %v1965, %v1969
        %v1974 = vsel %vm1973, 1, 0
        %v1975 = vadd.s32 %v1965, %v1969
        %v1976 = vadd.s32 %v1968, %v1974
        %vm1977 = vc.u32 %v1975, %v1971
        %v1978 = vsel %vm1977, 1, 0
        %v1979 = vadd.s32 %v1975, %v1971
        %v1980 = vadd.s32 %v1976, %v1978
        %v1981 = vadd.s32 %v1980, %v1970
        %v1982 = vadd.s32 %v1981, %v1972
        %v1983 = vmul.u32 %v1938, %v1929
        %v1984 = vadd.s32 %v1960, %v1979
        %vm1985 = vc.u32 %v1960, %v1979
        %v1986 = vadd.s32 %v1982, 1
        %v1987 = vsel %vm1985, %v1986, %v1982
        %v1988 = vadd.s32 %v1983, %v1987
        %v1989 = vadd.s32 %v1988, 536870912
        %v1990 = vshrl.u32 %v1989, 30
        %v1991 = vshll.u32 %v1990, 30
        %v1992 = vsub.s32 %v1988, %v1991
        %vm1993 = vcmp.lt.s32.totalorder %v1992, 0
        %v1994 = vsub.s32 0, %v1992
        %v1995 = vsel %vm1993, %v1994, %v1992
        %v1996 = vclz %v1995
        %v1997 = vsub.s32 %v1996, 2
        %vm1998 = vcmp.gt.s32.totalorder 0, %v1997
        %v1999 = vsel %vm1998, 0, %v1997
        %v2000 = vsub.s32 32, %v1999
        %v2001 = vshll.u32 %v1992, %v1999
        %v2002 = vshrl.u32 %v1984, %v2000
        %v2003 = vor.u32 %v2001, %v2002
        %v2004 = vsub.s32 4294967266, %v1999
        %v2005 = vadd.s32 %v2004, 127
        %v2006 = vshll.u32 %v2005, 23
        %v2007 = vor.u32 4788187, %v2006
        %v2008 = vand.u32 2147483647, %v2007
        %v2010 = vcvt.s32.f32 %v2003
        %v2011 = vmul.f32 %v2010, %v2008
        %v2012 = vxor.u32 %v2011, 2147483648
        %v2013 = vsel %vm1892, %v2012, %v2011
        %v2014 = vsub.s32 4, %v1990
        %v2015 = vsel %vm1892, %v2014, %v1990
        %v2016 = vsel %vm1891, %v476, %v2013
        %v2017 = vsel %vm1891, 0, %v2015
        %v2018 = vmul.f32 %v2016, %v2016
        %v2019 = vmul.f32 %v2018, -0.001358992
        %v2020 = vadd.f32 %v2019, 0.041655596
        %v2021 = vmul.f32 %v2018, %v2020
        %v2022 = vadd.f32 %v2021, -0.4999988
        %v2023 = vmul.f32 %v2018, %v2022
        %v2024 = vadd.f32 1.0, %v2023
        %v2025 = vmul.f32 %v2016, %v2016
        %v2026 = vmul.f32 %v2025, -0.00019511016
        %v2027 = vadd.f32 %v2026, 0.008332121
        %v2028 = vmul.f32 %v2025, %v2027
        %v2029 = vadd.f32 %v2028, -0.16666654
        %v2030 = vmul.f32 %v2025, %v2029
        %v2031 = vadd.f32 %v2030, 1.0
        %v2032 = vmul.f32 %v2031, %v2016
        %vm2033 = vweird.f32 %v476
        %v2034 = vadd.s32 %v2017, 3
        %v2035 = vand.u32 %v2034, 3
        %vm2036 = vcmp.lt.s32.totalorder %v2035, 2
        %vm2037 = vcmp.eq.s32.totalorder %v2035, 0
        %v2038 = vxor.u32 %v2032, 2147483648
        %v2039 = vsel %vm2037, %v2024, %v2038
        %vm2040 = vcmp.eq.s32.totalorder %v2035, 2
        %v2041 = vxor.u32 %v2024, 2147483648
        %v2042 = vsel %vm2040, %v2041, %v2032
        %v2043 = vsel %vm2036, %v2039, %v2042
        %v2044 = vsel %vm2033, nan, %v2043
        %v2045 = vand.u32 2147483647, %v477
        %vm2046 = vcmp.le.f32.partialorder %v2045, 0.7853982
        %vm2047 = vcmp.lt.s32.totalorder %v477, 0
        %v2048 = vand.u32 %v477, 2139095040
        %v2049 = vshrl.u32 %v2048, 23
        %v2050 = vsub.s32 %v2049, 127
        %v2051 = vand.u32 2147483647, %v477
        %v2052 = vand.u32 %v2051, 8388607
        %v2053 = vor.u32 %v2052, 8388608
        %v2054 = vsub.s32 0, %v2053
        %v2055 = vadd.s32 %v2050, 1
        %vm2056 = vcmp.gt.s32.totalorder %v2055, 0
        %v2057 = vsel %vm2056, %v2055, 0
        %v2058 = vshrl.u32 %v2057, 5
        %v2059 = vand.u32 %v2057, 31
        %v2060 = vsub.s32 32, %v2059
        %v2061 = vshrl.u32 683565275, %v2060
        %v2062 = vshll.u32 683565275, %v2059
        %v2063 = vshrl.u32 2475754826, %v2060
        %v2064 = vor.u32 %v2062, %v2063
        %v2065 = vshll.u32 2475754826, %v2059
        %v2066 = vshrl.u32 2131351028, %v2060
        %v2067 = vor.u32 %v2065, %v2066
        %v2068 = vshll.u32 2131351028, %v2059
        %v2069 = vshrl.u32 2102212464, %v2060
        %v2070 = vor.u32 %v2068, %v2069
        %v2071 = vshll.u32 2102212464, %v2059
        %v2072 = vshrl.u32 920167782, %v2060
        %v2073 = vor.u32 %v2071, %v2072
        %v2074 = vshll.u32 920167782, %v2059
        %v2075 = vshrl.u32 1326507024, %v2060
        %v2076 = vor.u32 %v2074, %v2075
        %vm2077 = vcmp.lt.s32.totalorder %v2058, 1
        %vm2078 = vcmp.lt.s32.totalorder %v2058, 2
        %vm2079 = vcmp.lt.s32.totalorder %v2058, 3
        %vm2080 = vcmp.lt.s32.totalorder %v2058, 4
        %v2081 = vsel %vm2077, %v2061, %v2064
        %v2082 = vsel %vm2080, %v2070, 2102212464
        %v2083 = vsel %vm2079, %v2067, %v2082
        %v2084 = vsel %vm2078, %v2081, %v2083
        %v2085 = vsel %vm2077, %v2064, %v2067
        %v2086 = vsel %vm2080, %v2073, 920167782
        %v2087 = vsel %vm2079, %v2070, %v2086
        %v2088 = vsel %vm2078, %v2085, %v2087
        %v2089 = vsel %vm2077, %v2067, %v2070
        %v2090 = vsel %vm2080, %v2076, 1326507024
        %v2091 = vsel %vm2079, %v2073, %v2090
        %v2092 = vsel %vm2078, %v2089, %v2091
        %v2093 = vshll.u32 %v2053, 8
        %v2094 = vand.u32 %v2093, 65535
        %v2095 = vshrl.u32 %v2093, 16
        %v2096 = vand.u32 %v2092, 65535
        %v2097 = vshrl.u32 %v2092, 16
        %v2098 = vmul.u32 %v2094, %v2096
        %v2099 = vmul.u32 %v2094, %v2097
        %v2100 = vmul.u32 %v2095, %v2096
        %v2101 = vmul.u32 %v2095, %v2097
        %v2102 = vshll.u32 %v2099, 16
        %v2103 = vshrl.u32 %v2099, 16
        %v2104 = vshll.u32 %v2100, 16
        %v2105 = vshrl.u32 %v2100, 16
        %vm2106 = vc.u32 %v2098, %v2102
        %v2107 = vsel %vm2106, 1, 0
        %v2108 = vadd.s32 %v2098, %v2102
        %v2109 = vadd.s32 %v2101, %v2107
        %vm2110 = vc.u32 %v2108, %v2104
        %v2111 = vsel %vm2110, 1, 0
        %v2112 = vadd.s32 %v2108, %v2104
        %v2113 = vadd.s32 %v2109, %v2111
        %v2114 = vadd.s32 %v2113, %v2103
        %v2115 = vadd.s32 %v2114, %v2105
        %v2116 = vand.u32 %v2093, 65535
        %v2117 = vshrl.u32 %v2093, 16
        %v2118 = vand.u32 %v2088, 65535
        %v2119 = vshrl.u32 %v2088, 16
        %v2120 = vmul.u32 %v2116, %v2118
        %v2121 = vmul.u32 %v2116, %v2119
        %v2122 = vmul.u32 %v2117, %v2118
        %v2123 = vmul.u32 %v2117, %v2119
        %v2124 = vshll.u32 %v2121, 16
        %v2125 = vshrl.u32 %v2121, 16
        %v2126 = vshll.u32 %v2122, 16
        %v2127 = vshrl.u32 %v2122, 16
        %vm2128 = vc.u32 %v2120, %v2124
        %v2129 = vsel %vm2128, 1, 0
        %v2130 = vadd.s32 %v2120, %v2124
        %v2131 = vadd.s32 %v2123, %v2129
        %vm2132 = vc.u32 %v2130, %v2126
        %v2133 = vsel %vm2132, 1, 0
        %v2134 = vadd.s32 %v2130, %v2126
        %v2135 = vadd.s32 %v2131, %v2133
        %v2136 = vadd.s32 %v2135, %v2125
        %v2137 = vadd.s32 %v2136, %v2127
        %v2138 = vmul.u32 %v2093, %v2084
        %v2139 = vadd.s32 %v2115, %v2134
        %vm2140 = vc.u32 %v2115, %v2134
        %v2141 = vadd.s32 %v2137, 1
        %v2142 = vsel %vm2140, %v2141, %v2137
        %v2143 = vadd.s32 %v2138, %v2142
        %v2144 = vadd.s32 %v2143, 536870912
        %v2145 = vshrl.u32 %v2144, 30
        %v2146 = vshll.u32 %v2145, 30
        %v2147 = vsub.s32 %v2143, %v2146
        %vm2148 = vcmp.lt.s32.totalorder %v2147, 0
        %v2149 = vsub.s32 0, %v2147
        %v2150 = vsel %vm2148, %v2149, %v2147
        %v2151 = vclz %v2150
        %v2152 = vsub.s32 %v2151, 2
        %vm2153 = vcmp.gt.s32.totalorder 0, %v2152
        %v2154 = vsel %vm2153, 0, %v2152
        %v2155 = vsub.s32 32, %v2154
        %v2156 = vshll.u32 %v2147, %v2154
        %v2157 = vshrl.u32 %v2139, %v2155
        %v2158 = vor.u32 %v2156, %v2157
        %v2159 = vsub.s32 4294967266, %v2154
        %v2160 = vadd.s32 %v2159, 127
        %v2161 = vshll.u32 %v2160, 23
        %v2162 = vor.u32 4788187, %v2161
        %v2163 = vand.u32 2147483647, %v2162
        %v2165 = vcvt.s32.f32 %v2158
        %v2166 = vmul.f32 %v2165, %v2163
        %v2167 = vxor.u32 %v2166, 2147483648
        %v2168 = vsel %vm2047, %v2167, %v2166
        %v2169 = vsub.s32 4, %v2145
        %v2170 = vsel %vm2047, %v2169, %v2145
        %v2171 = vsel %vm2046, %v477, %v2168
        %v2172 = vsel %vm2046, 0, %v2170
        %v2173 = vmul.f32 %v2171, %v2171
        %v2174 = vmul.f32 %v2173, -0.001358992
        %v2175 = vadd.f32 %v2174, 0.041655596
        %v2176 = vmul.f32 %v2173, %v2175
        %v2177 = vadd.f32 %v2176, -0.4999988
        %v2178 = vmul.f32 %v2173, %v2177
        %v2179 = vadd.f32 1.0, %v2178
        %v2180 = vmul.f32 %v2171, %v2171
        %v2181 = vmul.f32 %v2180, -0.00019511016
        %v2182 = vadd.f32 %v2181, 0.008332121
        %v2183 = vmul.f32 %v2180, %v2182
        %v2184 = vadd.f32 %v2183, -0.16666654
        %v2185 = vmul.f32 %v2180, %v2184
        %v2186 = vadd.f32 %v2185, 1.0
        %v2187 = vmul.f32 %v2186, %v2171
        %vm2188 = vweird.f32 %v477
        %v2189 = vadd.s32 %v2172, 3
        %v2190 = vand.u32 %v2189, 3
        %vm2191 = vcmp.lt.s32.totalorder %v2190, 2
        %vm2192 = vcmp.eq.s32.totalorder %v2190, 0
        %v2193 = vxor.u32 %v2187, 2147483648
        %v2194 = vsel %vm2192, %v2179, %v2193
        %vm2195 = vcmp.eq.s32.totalorder %v2190, 2
        %v2196 = vxor.u32 %v2179, 2147483648
        %v2197 = vsel %vm2195, %v2196, %v2187
        %v2198 = vsel %vm2191, %v2194, %v2197
        %v2199 = vsel %vm2188, nan, %v2198
        %v2200 = vand.u32 2147483647, %v478
        %vm2201 = vcmp.le.f32.partialorder %v2200, 0.7853982
        %vm2202 = vcmp.lt.s32.totalorder %v478, 0
        %v2203 = vand.u32 %v478, 2139095040
        %v2204 = vshrl.u32 %v2203, 23
        %v2205 = vsub.s32 %v2204, 127
        %v2206 = vand.u32 2147483647, %v478
        %v2207 = vand.u32 %v2206, 8388607
        %v2208 = vor.u32 %v2207, 8388608
        %v2209 = vsub.s32 0, %v2208
        %v2210 = vadd.s32 %v2205, 1
        %vm2211 = vcmp.gt.s32.totalorder %v2210, 0
        %v2212 = vsel %vm2211, %v2210, 0
        %v2213 = vshrl.u32 %v2212, 5
        %v2214 = vand.u32 %v2212, 31
        %v2215 = vsub.s32 32, %v2214
        %v2216 = vshrl.u32 683565275, %v2215
        %v2217 = vshll.u32 683565275, %v2214
        %v2218 = vshrl.u32 2475754826, %v2215
        %v2219 = vor.u32 %v2217, %v2218
        %v2220 = vshll.u32 2475754826, %v2214
        %v2221 = vshrl.u32 2131351028, %v2215
        %v2222 = vor.u32 %v2220, %v2221
        %v2223 = vshll.u32 2131351028, %v2214
        %v2224 = vshrl.u32 2102212464, %v2215
        %v2225 = vor.u32 %v2223, %v2224
        %v2226 = vshll.u32 2102212464, %v2214
        %v2227 = vshrl.u32 920167782, %v2215
        %v2228 = vor.u32 %v2226, %v2227
        %v2229 = vshll.u32 920167782, %v2214
        %v2230 = vshrl.u32 1326507024, %v2215
        %v2231 = vor.u32 %v2229, %v2230
        %vm2232 = vcmp.lt.s32.totalorder %v2213, 1
        %vm2233 = vcmp.lt.s32.totalorder %v2213, 2
        %vm2234 = vcmp.lt.s32.totalorder %v2213, 3
        %vm2235 = vcmp.lt.s32.totalorder %v2213, 4
        %v2236 = vsel %vm2232, %v2216, %v2219
        %v2237 = vsel %vm2235, %v2225, 2102212464
        %v2238 = vsel %vm2234, %v2222, %v2237
        %v2239 = vsel %vm2233, %v2236, %v2238
        %v2240 = vsel %vm2232, %v2219, %v2222
        %v2241 = vsel %vm2235, %v2228, 920167782
        %v2242 = vsel %vm2234, %v2225, %v2241
        %v2243 = vsel %vm2233, %v2240, %v2242
        %v2244 = vsel %vm2232, %v2222, %v2225
        %v2245 = vsel %vm2235, %v2231, 1326507024
        %v2246 = vsel %vm2234, %v2228, %v2245
        %v2247 = vsel %vm2233, %v2244, %v2246
        %v2248 = vshll.u32 %v2208, 8
        %v2249 = vand.u32 %v2248, 65535
        %v2250 = vshrl.u32 %v2248, 16
        %v2251 = vand.u32 %v2247, 65535
        %v2252 = vshrl.u32 %v2247, 16
        %v2253 = vmul.u32 %v2249, %v2251
        %v2254 = vmul.u32 %v2249, %v2252
        %v2255 = vmul.u32 %v2250, %v2251
        %v2256 = vmul.u32 %v2250, %v2252
        %v2257 = vshll.u32 %v2254, 16
        %v2258 = vshrl.u32 %v2254, 16
        %v2259 = vshll.u32 %v2255, 16
        %v2260 = vshrl.u32 %v2255, 16
        %vm2261 = vc.u32 %v2253, %v2257
        %v2262 = vsel %vm2261, 1, 0
        %v2263 = vadd.s32 %v2253, %v2257
        %v2264 = vadd.s32 %v2256, %v2262
        %vm2265 = vc.u32 %v2263, %v2259
        %v2266 = vsel %vm2265, 1, 0
        %v2267 = vadd.s32 %v2263, %v2259
        %v2268 = vadd.s32 %v2264, %v2266
        %v2269 = vadd.s32 %v2268, %v2258
        %v2270 = vadd.s32 %v2269, %v2260
        %v2271 = vand.u32 %v2248, 65535
        %v2272 = vshrl.u32 %v2248, 16
        %v2273 = vand.u32 %v2243, 65535
        %v2274 = vshrl.u32 %v2243, 16
        %v2275 = vmul.u32 %v2271, %v2273
        %v2276 = vmul.u32 %v2271, %v2274
        %v2277 = vmul.u32 %v2272, %v2273
        %v2278 = vmul.u32 %v2272, %v2274
        %v2279 = vshll.u32 %v2276, 16
        %v2280 = vshrl.u32 %v2276, 16
        %v2281 = vshll.u32 %v2277, 16
        %v2282 = vshrl.u32 %v2277, 16
        %vm2283 = vc.u32 %v2275, %v2279
        %v2284 = vsel %vm2283, 1, 0
        %v2285 = vadd.s32 %v2275, %v2279
        %v2286 = vadd.s32 %v2278, %v2284
        %vm2287 = vc.u32 %v2285, %v2281
        %v2288 = vsel %vm2287, 1, 0
        %v2289 = vadd.s32 %v2285, %v2281
        %v2290 = vadd.s32 %v2286, %v2288
        %v2291 = vadd.s32 %v2290, %v2280
        %v2292 = vadd.s32 %v2291, %v2282
        %v2293 = vmul.u32 %v2248, %v2239
        %v2294 = vadd.s32 %v2270, %v2289
        %vm2295 = vc.u32 %v2270, %v2289
        %v2296 = vadd.s32 %v2292, 1
        %v2297 = vsel %vm2295, %v2296, %v2292
        %v2298 = vadd.s32 %v2293, %v2297
        %v2299 = vadd.s32 %v2298, 536870912
        %v2300 = vshrl.u32 %v2299, 30
        %v2301 = vshll.u32 %v2300, 30
        %v2302 = vsub.s32 %v2298, %v2301
        %vm2303 = vcmp.lt.s32.totalorder %v2302, 0
        %v2304 = vsub.s32 0, %v2302
        %v2305 = vsel %vm2303, %v2304, %v2302
        %v2306 = vclz %v2305
        %v2307 = vsub.s32 %v2306, 2
        %vm2308 = vcmp.gt.s32.totalorder 0, %v2307
        %v2309 = vsel %vm2308, 0, %v2307
        %v2310 = vsub.s32 32, %v2309
        %v2311 = vshll.u32 %v2302, %v2309
        %v2312 = vshrl.u32 %v2294, %v2310
        %v2313 = vor.u32 %v2311, %v2312
        %v2314 = vsub.s32 4294967266, %v2309
        %v2315 = vadd.s32 %v2314, 127
        %v2316 = vshll.u32 %v2315, 23
        %v2317 = vor.u32 4788187, %v2316
        %v2318 = vand.u32 2147483647, %v2317
        %v2320 = vcvt.s32.f32 %v2313
        %v2321 = vmul.f32 %v2320, %v2318
        %v2322 = vxor.u32 %v2321, 2147483648
        %v2323 = vsel %vm2202, %v2322, %v2321
        %v2324 = vsub.s32 4, %v2300
        %v2325 = vsel %vm2202, %v2324, %v2300
        %v2326 = vsel %vm2201, %v478, %v2323
        %v2327 = vsel %vm2201, 0, %v2325
        %v2328 = vmul.f32 %v2326, %v2326
        %v2329 = vmul.f32 %v2328, -0.001358992
        %v2330 = vadd.f32 %v2329, 0.041655596
        %v2331 = vmul.f32 %v2328, %v2330
        %v2332 = vadd.f32 %v2331, -0.4999988
        %v2333 = vmul.f32 %v2328, %v2332
        %v2334 = vadd.f32 1.0, %v2333
        %v2335 = vmul.f32 %v2326, %v2326
        %v2336 = vmul.f32 %v2335, -0.00019511016
        %v2337 = vadd.f32 %v2336, 0.008332121
        %v2338 = vmul.f32 %v2335, %v2337
        %v2339 = vadd.f32 %v2338, -0.16666654
        %v2340 = vmul.f32 %v2335, %v2339
        %v2341 = vadd.f32 %v2340, 1.0
        %v2342 = vmul.f32 %v2341, %v2326
        %vm2343 = vweird.f32 %v478
        %v2344 = vadd.s32 %v2327, 3
        %v2345 = vand.u32 %v2344, 3
        %vm2346 = vcmp.lt.s32.totalorder %v2345, 2
        %vm2347 = vcmp.eq.s32.totalorder %v2345, 0
        %v2348 = vxor.u32 %v2342, 2147483648
        %v2349 = vsel %vm2347, %v2334, %v2348
        %vm2350 = vcmp.eq.s32.totalorder %v2345, 2
        %v2351 = vxor.u32 %v2334, 2147483648
        %v2352 = vsel %vm2350, %v2351, %v2342
        %v2353 = vsel %vm2346, %v2349, %v2352
        %v2354 = vsel %vm2343, nan, %v2353
        %v2355 = vand.u32 2147483647, %v479
        %vm2356 = vcmp.le.f32.partialorder %v2355, 0.7853982
        %vm2357 = vcmp.lt.s32.totalorder %v479, 0
        %v2358 = vand.u32 %v479, 2139095040
        %v2359 = vshrl.u32 %v2358, 23
        %v2360 = vsub.s32 %v2359, 127
        %v2361 = vand.u32 2147483647, %v479
        %v2362 = vand.u32 %v2361, 8388607
        %v2363 = vor.u32 %v2362, 8388608
        %v2364 = vsub.s32 0, %v2363
        %v2365 = vadd.s32 %v2360, 1
        %vm2366 = vcmp.gt.s32.totalorder %v2365, 0
        %v2367 = vsel %vm2366, %v2365, 0
        %v2368 = vshrl.u32 %v2367, 5
        %v2369 = vand.u32 %v2367, 31
        %v2370 = vsub.s32 32, %v2369
        %v2371 = vshrl.u32 683565275, %v2370
        %v2372 = vshll.u32 683565275, %v2369
        %v2373 = vshrl.u32 2475754826, %v2370
        %v2374 = vor.u32 %v2372, %v2373
        %v2375 = vshll.u32 2475754826, %v2369
        %v2376 = vshrl.u32 2131351028, %v2370
        %v2377 = vor.u32 %v2375, %v2376
        %v2378 = vshll.u32 2131351028, %v2369
        %v2379 = vshrl.u32 2102212464, %v2370
        %v2380 = vor.u32 %v2378, %v2379
        %v2381 = vshll.u32 2102212464, %v2369
        %v2382 = vshrl.u32 920167782, %v2370
        %v2383 = vor.u32 %v2381, %v2382
        %v2384 = vshll.u32 920167782, %v2369
        %v2385 = vshrl.u32 1326507024, %v2370
        %v2386 = vor.u32 %v2384, %v2385
        %vm2387 = vcmp.lt.s32.totalorder %v2368, 1
        %vm2388 = vcmp.lt.s32.totalorder %v2368, 2
        %vm2389 = vcmp.lt.s32.totalorder %v2368, 3
        %vm2390 = vcmp.lt.s32.totalorder %v2368, 4
        %v2391 = vsel %vm2387, %v2371, %v2374
        %v2392 = vsel %vm2390, %v2380, 2102212464
        %v2393 = vsel %vm2389, %v2377, %v2392
        %v2394 = vsel %vm2388, %v2391, %v2393
        %v2395 = vsel %vm2387, %v2374, %v2377
        %v2396 = vsel %vm2390, %v2383, 920167782
        %v2397 = vsel %vm2389, %v2380, %v2396
        %v2398 = vsel %vm2388, %v2395, %v2397
        %v2399 = vsel %vm2387, %v2377, %v2380
        %v2400 = vsel %vm2390, %v2386, 1326507024
        %v2401 = vsel %vm2389, %v2383, %v2400
        %v2402 = vsel %vm2388, %v2399, %v2401
        %v2403 = vshll.u32 %v2363, 8
        %v2404 = vand.u32 %v2403, 65535
        %v2405 = vshrl.u32 %v2403, 16
        %v2406 = vand.u32 %v2402, 65535
        %v2407 = vshrl.u32 %v2402, 16
        %v2408 = vmul.u32 %v2404, %v2406
        %v2409 = vmul.u32 %v2404, %v2407
        %v2410 = vmul.u32 %v2405, %v2406
        %v2411 = vmul.u32 %v2405, %v2407
        %v2412 = vshll.u32 %v2409, 16
        %v2413 = vshrl.u32 %v2409, 16
        %v2414 = vshll.u32 %v2410, 16
        %v2415 = vshrl.u32 %v2410, 16
        %vm2416 = vc.u32 %v2408, %v2412
        %v2417 = vsel %vm2416, 1, 0
        %v2418 = vadd.s32 %v2408, %v2412
        %v2419 = vadd.s32 %v2411, %v2417
        %vm2420 = vc.u32 %v2418, %v2414
        %v2421 = vsel %vm2420, 1, 0
        %v2422 = vadd.s32 %v2418, %v2414
        %v2423 = vadd.s32 %v2419, %v2421
        %v2424 = vadd.s32 %v2423, %v2413
        %v2425 = vadd.s32 %v2424, %v2415
        %v2426 = vand.u32 %v2403, 65535
        %v2427 = vshrl.u32 %v2403, 16
        %v2428 = vand.u32 %v2398, 65535
        %v2429 = vshrl.u32 %v2398, 16
        %v2430 = vmul.u32 %v2426, %v2428
        %v2431 = vmul.u32 %v2426, %v2429
        %v2432 = vmul.u32 %v2427, %v2428
        %v2433 = vmul.u32 %v2427, %v2429
        %v2434 = vshll.u32 %v2431, 16
        %v2435 = vshrl.u32 %v2431, 16
        %v2436 = vshll.u32 %v2432, 16
        %v2437 = vshrl.u32 %v2432, 16
        %vm2438 = vc.u32 %v2430, %v2434
        %v2439 = vsel %vm2438, 1, 0
        %v2440 = vadd.s32 %v2430, %v2434
        %v2441 = vadd.s32 %v2433, %v2439
        %vm2442 = vc.u32 %v2440, %v2436
        %v2443 = vsel %vm2442, 1, 0
        %v2444 = vadd.s32 %v2440, %v2436
        %v2445 = vadd.s32 %v2441, %v2443
        %v2446 = vadd.s32 %v2445, %v2435
        %v2447 = vadd.s32 %v2446, %v2437
        %v2448 = vmul.u32 %v2403, %v2394
        %v2449 = vadd.s32 %v2425, %v2444
        %vm2450 = vc.u32 %v2425, %v2444
        %v2451 = vadd.s32 %v2447, 1
        %v2452 = vsel %vm2450, %v2451, %v2447
        %v2453 = vadd.s32 %v2448, %v2452
        %v2454 = vadd.s32 %v2453, 536870912
        %v2455 = vshrl.u32 %v2454, 30
        %v2456 = vshll.u32 %v2455, 30
        %v2457 = vsub.s32 %v2453, %v2456
        %vm2458 = vcmp.lt.s32.totalorder %v2457, 0
        %v2459 = vsub.s32 0, %v2457
        %v2460 = vsel %vm2458, %v2459, %v2457
        %v2461 = vclz %v2460
        %v2462 = vsub.s32 %v2461, 2
        %vm2463 = vcmp.gt.s32.totalorder 0, %v2462
        %v2464 = vsel %vm2463, 0, %v2462
        %v2465 = vsub.s32 32, %v2464
        %v2466 = vshll.u32 %v2457, %v2464
        %v2467 = vshrl.u32 %v2449, %v2465
        %v2468 = vor.u32 %v2466, %v2467
        %v2469 = vsub.s32 4294967266, %v2464
        %v2470 = vadd.s32 %v2469, 127
        %v2471 = vshll.u32 %v2470, 23
        %v2472 = vor.u32 4788187, %v2471
        %v2473 = vand.u32 2147483647, %v2472
        %v2475 = vcvt.s32.f32 %v2468
        %v2476 = vmul.f32 %v2475, %v2473
        %v2477 = vxor.u32 %v2476, 2147483648
        %v2478 = vsel %vm2357, %v2477, %v2476
        %v2479 = vsub.s32 4, %v2455
        %v2480 = vsel %vm2357, %v2479, %v2455
        %v2481 = vsel %vm2356, %v479, %v2478
        %v2482 = vsel %vm2356, 0, %v2480
        %v2483 = vmul.f32 %v2481, %v2481
        %v2484 = vmul.f32 %v2483, -0.001358992
        %v2485 = vadd.f32 %v2484, 0.041655596
        %v2486 = vmul.f32 %v2483, %v2485
        %v2487 = vadd.f32 %v2486, -0.4999988
        %v2488 = vmul.f32 %v2483, %v2487
        %v2489 = vadd.f32 1.0, %v2488
        %v2490 = vmul.f32 %v2481, %v2481
        %v2491 = vmul.f32 %v2490, -0.00019511016
        %v2492 = vadd.f32 %v2491, 0.008332121
        %v2493 = vmul.f32 %v2490, %v2492
        %v2494 = vadd.f32 %v2493, -0.16666654
        %v2495 = vmul.f32 %v2490, %v2494
        %v2496 = vadd.f32 %v2495, 1.0
        %v2497 = vmul.f32 %v2496, %v2481
        %vm2498 = vweird.f32 %v479
        %v2499 = vadd.s32 %v2482, 3
        %v2500 = vand.u32 %v2499, 3
        %vm2501 = vcmp.lt.s32.totalorder %v2500, 2
        %vm2502 = vcmp.eq.s32.totalorder %v2500, 0
        %v2503 = vxor.u32 %v2497, 2147483648
        %v2504 = vsel %vm2502, %v2489, %v2503
        %vm2505 = vcmp.eq.s32.totalorder %v2500, 2
        %v2506 = vxor.u32 %v2489, 2147483648
        %v2507 = vsel %vm2505, %v2506, %v2497
        %v2508 = vsel %vm2501, %v2504, %v2507
        %v2509 = vsel %vm2498, nan, %v2508
        %v2510 = vand.u32 2147483647, %v480
        %vm2511 = vcmp.le.f32.partialorder %v2510, 0.7853982
        %vm2512 = vcmp.lt.s32.totalorder %v480, 0
        %v2513 = vand.u32 %v480, 2139095040
        %v2514 = vshrl.u32 %v2513, 23
        %v2515 = vsub.s32 %v2514, 127
        %v2516 = vand.u32 2147483647, %v480
        %v2517 = vand.u32 %v2516, 8388607
        %v2518 = vor.u32 %v2517, 8388608
        %v2519 = vsub.s32 0, %v2518
        %v2520 = vadd.s32 %v2515, 1
        %vm2521 = vcmp.gt.s32.totalorder %v2520, 0
        %v2522 = vsel %vm2521, %v2520, 0
        %v2523 = vshrl.u32 %v2522, 5
        %v2524 = vand.u32 %v2522, 31
        %v2525 = vsub.s32 32, %v2524
        %v2526 = vshrl.u32 683565275, %v2525
        %v2527 = vshll.u32 683565275, %v2524
        %v2528 = vshrl.u32 2475754826, %v2525
        %v2529 = vor.u32 %v2527, %v2528
        %v2530 = vshll.u32 2475754826, %v2524
        %v2531 = vshrl.u32 2131351028, %v2525
        %v2532 = vor.u32 %v2530, %v2531
        %v2533 = vshll.u32 2131351028, %v2524
        %v2534 = vshrl.u32 2102212464, %v2525
        %v2535 = vor.u32 %v2533, %v2534
        %v2536 = vshll.u32 2102212464, %v2524
        %v2537 = vshrl.u32 920167782, %v2525
        %v2538 = vor.u32 %v2536, %v2537
        %v2539 = vshll.u32 920167782, %v2524
        %v2540 = vshrl.u32 1326507024, %v2525
        %v2541 = vor.u32 %v2539, %v2540
        %vm2542 = vcmp.lt.s32.totalorder %v2523, 1
        %vm2543 = vcmp.lt.s32.totalorder %v2523, 2
        %vm2544 = vcmp.lt.s32.totalorder %v2523, 3
        %vm2545 = vcmp.lt.s32.totalorder %v2523, 4
        %v2546 = vsel %vm2542, %v2526, %v2529
        %v2547 = vsel %vm2545, %v2535, 2102212464
        %v2548 = vsel %vm2544, %v2532, %v2547
        %v2549 = vsel %vm2543, %v2546, %v2548
        %v2550 = vsel %vm2542, %v2529, %v2532
        %v2551 = vsel %vm2545, %v2538, 920167782
        %v2552 = vsel %vm2544, %v2535, %v2551
        %v2553 = vsel %vm2543, %v2550, %v2552
        %v2554 = vsel %vm2542, %v2532, %v2535
        %v2555 = vsel %vm2545, %v2541, 1326507024
        %v2556 = vsel %vm2544, %v2538, %v2555
        %v2557 = vsel %vm2543, %v2554, %v2556
        %v2558 = vshll.u32 %v2518, 8
        %v2559 = vand.u32 %v2558, 65535
        %v2560 = vshrl.u32 %v2558, 16
        %v2561 = vand.u32 %v2557, 65535
        %v2562 = vshrl.u32 %v2557, 16
        %v2563 = vmul.u32 %v2559, %v2561
        %v2564 = vmul.u32 %v2559, %v2562
        %v2565 = vmul.u32 %v2560, %v2561
        %v2566 = vmul.u32 %v2560, %v2562
        %v2567 = vshll.u32 %v2564, 16
        %v2568 = vshrl.u32 %v2564, 16
        %v2569 = vshll.u32 %v2565, 16
        %v2570 = vshrl.u32 %v2565, 16
        %vm2571 = vc.u32 %v2563, %v2567
        %v2572 = vsel %vm2571, 1, 0
        %v2573 = vadd.s32 %v2563, %v2567
        %v2574 = vadd.s32 %v2566, %v2572
        %vm2575 = vc.u32 %v2573, %v2569
        %v2576 = vsel %vm2575, 1, 0
        %v2577 = vadd.s32 %v2573, %v2569
        %v2578 = vadd.s32 %v2574, %v2576
        %v2579 = vadd.s32 %v2578, %v2568
        %v2580 = vadd.s32 %v2579, %v2570
        %v2581 = vand.u32 %v2558, 65535
        %v2582 = vshrl.u32 %v2558, 16
        %v2583 = vand.u32 %v2553, 65535
        %v2584 = vshrl.u32 %v2553, 16
        %v2585 = vmul.u32 %v2581, %v2583
        %v2586 = vmul.u32 %v2581, %v2584
        %v2587 = vmul.u32 %v2582, %v2583
        %v2588 = vmul.u32 %v2582, %v2584
        %v2589 = vshll.u32 %v2586, 16
        %v2590 = vshrl.u32 %v2586, 16
        %v2591 = vshll.u32 %v2587, 16
        %v2592 = vshrl.u32 %v2587, 16
        %vm2593 = vc.u32 %v2585, %v2589
        %v2594 = vsel %vm2593, 1, 0
        %v2595 = vadd.s32 %v2585, %v2589
        %v2596 = vadd.s32 %v2588, %v2594
        %vm2597 = vc.u32 %v2595, %v2591
        %v2598 = vsel %vm2597, 1, 0
        %v2599 = vadd.s32 %v2595, %v2591
        %v2600 = vadd.s32 %v2596, %v2598
        %v2601 = vadd.s32 %v2600, %v2590
        %v2602 = vadd.s32 %v2601, %v2592
        %v2603 = vmul.u32 %v2558, %v2549
        %v2604 = vadd.s32 %v2580, %v2599
        %vm2605 = vc.u32 %v2580, %v2599
        %v2606 = vadd.s32 %v2602, 1
        %v2607 = vsel %vm2605, %v2606, %v2602
        %v2608 = vadd.s32 %v2603, %v2607
        %v2609 = vadd.s32 %v2608, 536870912
        %v2610 = vshrl.u32 %v2609, 30
        %v2611 = vshll.u32 %v2610, 30
        %v2612 = vsub.s32 %v2608, %v2611
        %vm2613 = vcmp.lt.s32.totalorder %v2612, 0
        %v2614 = vsub.s32 0, %v2612
        %v2615 = vsel %vm2613, %v2614, %v2612
        %v2616 = vclz %v2615
        %v2617 = vsub.s32 %v2616, 2
        %vm2618 = vcmp.gt.s32.totalorder 0, %v2617
        %v2619 = vsel %vm2618, 0, %v2617
        %v2620 = vsub.s32 32, %v2619
        %v2621 = vshll.u32 %v2612, %v2619
        %v2622 = vshrl.u32 %v2604, %v2620
        %v2623 = vor.u32 %v2621, %v2622
        %v2624 = vsub.s32 4294967266, %v2619
        %v2625 = vadd.s32 %v2624, 127
        %v2626 = vshll.u32 %v2625, 23
        %v2627 = vor.u32 4788187, %v2626
        %v2628 = vand.u32 2147483647, %v2627
        %v2630 = vcvt.s32.f32 %v2623
        %v2631 = vmul.f32 %v2630, %v2628
        %v2632 = vxor.u32 %v2631, 2147483648
        %v2633 = vsel %vm2512, %v2632, %v2631
        %v2634 = vsub.s32 4, %v2610
        %v2635 = vsel %vm2512, %v2634, %v2610
        %v2636 = vsel %vm2511, %v480, %v2633
        %v2637 = vsel %vm2511, 0, %v2635
        %v2638 = vmul.f32 %v2636, %v2636
        %v2639 = vmul.f32 %v2638, -0.001358992
        %v2640 = vadd.f32 %v2639, 0.041655596
        %v2641 = vmul.f32 %v2638, %v2640
        %v2642 = vadd.f32 %v2641, -0.4999988
        %v2643 = vmul.f32 %v2638, %v2642
        %v2644 = vadd.f32 1.0, %v2643
        %v2645 = vmul.f32 %v2636, %v2636
        %v2646 = vmul.f32 %v2645, -0.00019511016
        %v2647 = vadd.f32 %v2646, 0.008332121
        %v2648 = vmul.f32 %v2645, %v2647
        %v2649 = vadd.f32 %v2648, -0.16666654
        %v2650 = vmul.f32 %v2645, %v2649
        %v2651 = vadd.f32 %v2650, 1.0
        %v2652 = vmul.f32 %v2651, %v2636
        %vm2653 = vweird.f32 %v480
        %v2654 = vadd.s32 %v2637, 3
        %v2655 = vand.u32 %v2654, 3
        %vm2656 = vcmp.lt.s32.totalorder %v2655, 2
        %vm2657 = vcmp.eq.s32.totalorder %v2655, 0
        %v2658 = vxor.u32 %v2652, 2147483648
        %v2659 = vsel %vm2657, %v2644, %v2658
        %vm2660 = vcmp.eq.s32.totalorder %v2655, 2
        %v2661 = vxor.u32 %v2644, 2147483648
        %v2662 = vsel %vm2660, %v2661, %v2652
        %v2663 = vsel %vm2656, %v2659, %v2662
        %v2664 = vsel %vm2653, nan, %v2663
        %v2665 = vand.u32 2147483647, %v481
        %vm2666 = vcmp.le.f32.partialorder %v2665, 0.7853982
        %vm2667 = vcmp.lt.s32.totalorder %v481, 0
        %v2668 = vand.u32 %v481, 2139095040
        %v2669 = vshrl.u32 %v2668, 23
        %v2670 = vsub.s32 %v2669, 127
        %v2671 = vand.u32 2147483647, %v481
        %v2672 = vand.u32 %v2671, 8388607
        %v2673 = vor.u32 %v2672, 8388608
        %v2674 = vsub.s32 0, %v2673
        %v2675 = vadd.s32 %v2670, 1
        %vm2676 = vcmp.gt.s32.totalorder %v2675, 0
        %v2677 = vsel %vm2676, %v2675, 0
        %v2678 = vshrl.u32 %v2677, 5
        %v2679 = vand.u32 %v2677, 31
        %v2680 = vsub.s32 32, %v2679
        %v2681 = vshrl.u32 683565275, %v2680
        %v2682 = vshll.u32 683565275, %v2679
        %v2683 = vshrl.u32 2475754826, %v2680
        %v2684 = vor.u32 %v2682, %v2683
        %v2685 = vshll.u32 2475754826, %v2679
        %v2686 = vshrl.u32 2131351028, %v2680
        %v2687 = vor.u32 %v2685, %v2686
        %v2688 = vshll.u32 2131351028, %v2679
        %v2689 = vshrl.u32 2102212464, %v2680
        %v2690 = vor.u32 %v2688, %v2689
        %v2691 = vshll.u32 2102212464, %v2679
        %v2692 = vshrl.u32 920167782, %v2680
        %v2693 = vor.u32 %v2691, %v2692
        %v2694 = vshll.u32 920167782, %v2679
        %v2695 = vshrl.u32 1326507024, %v2680
        %v2696 = vor.u32 %v2694, %v2695
        %vm2697 = vcmp.lt.s32.totalorder %v2678, 1
        %vm2698 = vcmp.lt.s32.totalorder %v2678, 2
        %vm2699 = vcmp.lt.s32.totalorder %v2678, 3
        %vm2700 = vcmp.lt.s32.totalorder %v2678, 4
        %v2701 = vsel %vm2697, %v2681, %v2684
        %v2702 = vsel %vm2700, %v2690, 2102212464
        %v2703 = vsel %vm2699, %v2687, %v2702
        %v2704 = vsel %vm2698, %v2701, %v2703
        %v2705 = vsel %vm2697, %v2684, %v2687
        %v2706 = vsel %vm2700, %v2693, 920167782
        %v2707 = vsel %vm2699, %v2690, %v2706
        %v2708 = vsel %vm2698, %v2705, %v2707
        %v2709 = vsel %vm2697, %v2687, %v2690
        %v2710 = vsel %vm2700, %v2696, 1326507024
        %v2711 = vsel %vm2699, %v2693, %v2710
        %v2712 = vsel %vm2698, %v2709, %v2711
        %v2713 = vshll.u32 %v2673, 8
        %v2714 = vand.u32 %v2713, 65535
        %v2715 = vshrl.u32 %v2713, 16
        %v2716 = vand.u32 %v2712, 65535
        %v2717 = vshrl.u32 %v2712, 16
        %v2718 = vmul.u32 %v2714, %v2716
        %v2719 = vmul.u32 %v2714, %v2717
        %v2720 = vmul.u32 %v2715, %v2716
        %v2721 = vmul.u32 %v2715, %v2717
        %v2722 = vshll.u32 %v2719, 16
        %v2723 = vshrl.u32 %v2719, 16
        %v2724 = vshll.u32 %v2720, 16
        %v2725 = vshrl.u32 %v2720, 16
        %vm2726 = vc.u32 %v2718, %v2722
        %v2727 = vsel %vm2726, 1, 0
        %v2728 = vadd.s32 %v2718, %v2722
        %v2729 = vadd.s32 %v2721, %v2727
        %vm2730 = vc.u32 %v2728, %v2724
        %v2731 = vsel %vm2730, 1, 0
        %v2732 = vadd.s32 %v2728, %v2724
        %v2733 = vadd.s32 %v2729, %v2731
        %v2734 = vadd.s32 %v2733, %v2723
        %v2735 = vadd.s32 %v2734, %v2725
        %v2736 = vand.u32 %v2713, 65535
        %v2737 = vshrl.u32 %v2713, 16
        %v2738 = vand.u32 %v2708, 65535
        %v2739 = vshrl.u32 %v2708, 16
        %v2740 = vmul.u32 %v2736, %v2738
        %v2741 = vmul.u32 %v2736, %v2739
        %v2742 = vmul.u32 %v2737, %v2738
        %v2743 = vmul.u32 %v2737, %v2739
        %v2744 = vshll.u32 %v2741, 16
        %v2745 = vshrl.u32 %v2741, 16
        %v2746 = vshll.u32 %v2742, 16
        %v2747 = vshrl.u32 %v2742, 16
        %vm2748 = vc.u32 %v2740, %v2744
        %v2749 = vsel %vm2748, 1, 0
        %v2750 = vadd.s32 %v2740, %v2744
        %v2751 = vadd.s32 %v2743, %v2749
        %vm2752 = vc.u32 %v2750, %v2746
        %v2753 = vsel %vm2752, 1, 0
        %v2754 = vadd.s32 %v2750, %v2746
        %v2755 = vadd.s32 %v2751, %v2753
        %v2756 = vadd.s32 %v2755, %v2745
        %v2757 = vadd.s32 %v2756, %v2747
        %v2758 = vmul.u32 %v2713, %v2704
        %v2759 = vadd.s32 %v2735, %v2754
        %vm2760 = vc.u32 %v2735, %v2754
        %v2761 = vadd.s32 %v2757, 1
        %v2762 = vsel %vm2760, %v2761, %v2757
        %v2763 = vadd.s32 %v2758, %v2762
        %v2764 = vadd.s32 %v2763, 536870912
        %v2765 = vshrl.u32 %v2764, 30
        %v2766 = vshll.u32 %v2765, 30
        %v2767 = vsub.s32 %v2763, %v2766
        %vm2768 = vcmp.lt.s32.totalorder %v2767, 0
        %v2769 = vsub.s32 0, %v2767
        %v2770 = vsel %vm2768, %v2769, %v2767
        %v2771 = vclz %v2770
        %v2772 = vsub.s32 %v2771, 2
        %vm2773 = vcmp.gt.s32.totalorder 0, %v2772
        %v2774 = vsel %vm2773, 0, %v2772
        %v2775 = vsub.s32 32, %v2774
        %v2776 = vshll.u32 %v2767, %v2774
        %v2777 = vshrl.u32 %v2759, %v2775
        %v2778 = vor.u32 %v2776, %v2777
        %v2779 = vsub.s32 4294967266, %v2774
        %v2780 = vadd.s32 %v2779, 127
        %v2781 = vshll.u32 %v2780, 23
        %v2782 = vor.u32 4788187, %v2781
        %v2783 = vand.u32 2147483647, %v2782
        %v2785 = vcvt.s32.f32 %v2778
        %v2786 = vmul.f32 %v2785, %v2783
        %v2787 = vxor.u32 %v2786, 2147483648
        %v2788 = vsel %vm2667, %v2787, %v2786
        %v2789 = vsub.s32 4, %v2765
        %v2790 = vsel %vm2667, %v2789, %v2765
        %v2791 = vsel %vm2666, %v481, %v2788
        %v2792 = vsel %vm2666, 0, %v2790
        %v2793 = vmul.f32 %v2791, %v2791
        %v2794 = vmul.f32 %v2793, -0.001358992
        %v2795 = vadd.f32 %v2794, 0.041655596
        %v2796 = vmul.f32 %v2793, %v2795
        %v2797 = vadd.f32 %v2796, -0.4999988
        %v2798 = vmul.f32 %v2793, %v2797
        %v2799 = vadd.f32 1.0, %v2798
        %v2800 = vmul.f32 %v2791, %v2791
        %v2801 = vmul.f32 %v2800, -0.00019511016
        %v2802 = vadd.f32 %v2801, 0.008332121
        %v2803 = vmul.f32 %v2800, %v2802
        %v2804 = vadd.f32 %v2803, -0.16666654
        %v2805 = vmul.f32 %v2800, %v2804
        %v2806 = vadd.f32 %v2805, 1.0
        %v2807 = vmul.f32 %v2806, %v2791
        %vm2808 = vweird.f32 %v481
        %v2809 = vadd.s32 %v2792, 3
        %v2810 = vand.u32 %v2809, 3
        %vm2811 = vcmp.lt.s32.totalorder %v2810, 2
        %vm2812 = vcmp.eq.s32.totalorder %v2810, 0
        %v2813 = vxor.u32 %v2807, 2147483648
        %v2814 = vsel %vm2812, %v2799, %v2813
        %vm2815 = vcmp.eq.s32.totalorder %v2810, 2
        %v2816 = vxor.u32 %v2799, 2147483648
        %v2817 = vsel %vm2815, %v2816, %v2807
        %v2818 = vsel %vm2811, %v2814, %v2817
        %v2819 = vsel %vm2808, nan, %v2818
        %v2820 = vand.u32 2147483647, %v482
        %vm2821 = vcmp.le.f32.partialorder %v2820, 0.7853982
        %vm2822 = vcmp.lt.s32.totalorder %v482, 0
        %v2823 = vand.u32 %v482, 2139095040
        %v2824 = vshrl.u32 %v2823, 23
        %v2825 = vsub.s32 %v2824, 127
        %v2826 = vand.u32 2147483647, %v482
        %v2827 = vand.u32 %v2826, 8388607
        %v2828 = vor.u32 %v2827, 8388608
        %v2829 = vsub.s32 0, %v2828
        %v2830 = vadd.s32 %v2825, 1
        %vm2831 = vcmp.gt.s32.totalorder %v2830, 0
        %v2832 = vsel %vm2831, %v2830, 0
        %v2833 = vshrl.u32 %v2832, 5
        %v2834 = vand.u32 %v2832, 31
        %v2835 = vsub.s32 32, %v2834
        %v2836 = vshrl.u32 683565275, %v2835
        %v2837 = vshll.u32 683565275, %v2834
        %v2838 = vshrl.u32 2475754826, %v2835
        %v2839 = vor.u32 %v2837, %v2838
        %v2840 = vshll.u32 2475754826, %v2834
        %v2841 = vshrl.u32 2131351028, %v2835
        %v2842 = vor.u32 %v2840, %v2841
        %v2843 = vshll.u32 2131351028, %v2834
        %v2844 = vshrl.u32 2102212464, %v2835
        %v2845 = vor.u32 %v2843, %v2844
        %v2846 = vshll.u32 2102212464, %v2834
        %v2847 = vshrl.u32 920167782, %v2835
        %v2848 = vor.u32 %v2846, %v2847
        %v2849 = vshll.u32 920167782, %v2834
        %v2850 = vshrl.u32 1326507024, %v2835
        %v2851 = vor.u32 %v2849, %v2850
        %vm2852 = vcmp.lt.s32.totalorder %v2833, 1
        %vm2853 = vcmp.lt.s32.totalorder %v2833, 2
        %vm2854 = vcmp.lt.s32.totalorder %v2833, 3
        %vm2855 = vcmp.lt.s32.totalorder %v2833, 4
        %v2856 = vsel %vm2852, %v2836, %v2839
        %v2857 = vsel %vm2855, %v2845, 2102212464
        %v2858 = vsel %vm2854, %v2842, %v2857
        %v2859 = vsel %vm2853, %v2856, %v2858
        %v2860 = vsel %vm2852, %v2839, %v2842
        %v2861 = vsel %vm2855, %v2848, 920167782
        %v2862 = vsel %vm2854, %v2845, %v2861
        %v2863 = vsel %vm2853, %v2860, %v2862
        %v2864 = vsel %vm2852, %v2842, %v2845
        %v2865 = vsel %vm2855, %v2851, 1326507024
        %v2866 = vsel %vm2854, %v2848, %v2865
        %v2867 = vsel %vm2853, %v2864, %v2866
        %v2868 = vshll.u32 %v2828, 8
        %v2869 = vand.u32 %v2868, 65535
        %v2870 = vshrl.u32 %v2868, 16
        %v2871 = vand.u32 %v2867, 65535
        %v2872 = vshrl.u32 %v2867, 16
        %v2873 = vmul.u32 %v2869, %v2871
        %v2874 = vmul.u32 %v2869, %v2872
        %v2875 = vmul.u32 %v2870, %v2871
        %v2876 = vmul.u32 %v2870, %v2872
        %v2877 = vshll.u32 %v2874, 16
        %v2878 = vshrl.u32 %v2874, 16
        %v2879 = vshll.u32 %v2875, 16
        %v2880 = vshrl.u32 %v2875, 16
        %vm2881 = vc.u32 %v2873, %v2877
        %v2882 = vsel %vm2881, 1, 0
        %v2883 = vadd.s32 %v2873, %v2877
        %v2884 = vadd.s32 %v2876, %v2882
        %vm2885 = vc.u32 %v2883, %v2879
        %v2886 = vsel %vm2885, 1, 0
        %v2887 = vadd.s32 %v2883, %v2879
        %v2888 = vadd.s32 %v2884, %v2886
        %v2889 = vadd.s32 %v2888, %v2878
        %v2890 = vadd.s32 %v2889, %v2880
        %v2891 = vand.u32 %v2868, 65535
        %v2892 = vshrl.u32 %v2868, 16
        %v2893 = vand.u32 %v2863, 65535
        %v2894 = vshrl.u32 %v2863, 16
        %v2895 = vmul.u32 %v2891, %v2893
        %v2896 = vmul.u32 %v2891, %v2894
        %v2897 = vmul.u32 %v2892, %v2893
        %v2898 = vmul.u32 %v2892, %v2894
        %v2899 = vshll.u32 %v2896, 16
        %v2900 = vshrl.u32 %v2896, 16
        %v2901 = vshll.u32 %v2897, 16
        %v2902 = vshrl.u32 %v2897, 16
        %vm2903 = vc.u32 %v2895, %v2899
        %v2904 = vsel %vm2903, 1, 0
        %v2905 = vadd.s32 %v2895, %v2899
        %v2906 = vadd.s32 %v2898, %v2904
        %vm2907 = vc.u32 %v2905, %v2901
        %v2908 = vsel %vm2907, 1, 0
        %v2909 = vadd.s32 %v2905, %v2901
        %v2910 = vadd.s32 %v2906, %v2908
        %v2911 = vadd.s32 %v2910, %v2900
        %v2912 = vadd.s32 %v2911, %v2902
        %v2913 = vmul.u32 %v2868, %v2859
        %v2914 = vadd.s32 %v2890, %v2909
        %vm2915 = vc.u32 %v2890, %v2909
        %v2916 = vadd.s32 %v2912, 1
        %v2917 = vsel %vm2915, %v2916, %v2912
        %v2918 = vadd.s32 %v2913, %v2917
        %v2919 = vadd.s32 %v2918, 536870912
        %v2920 = vshrl.u32 %v2919, 30
        %v2921 = vshll.u32 %v2920, 30
        %v2922 = vsub.s32 %v2918, %v2921
        %vm2923 = vcmp.lt.s32.totalorder %v2922, 0
        %v2924 = vsub.s32 0, %v2922
        %v2925 = vsel %vm2923, %v2924, %v2922
        %v2926 = vclz %v2925
        %v2927 = vsub.s32 %v2926, 2
        %vm2928 = vcmp.gt.s32.totalorder 0, %v2927
        %v2929 = vsel %vm2928, 0, %v2927
        %v2930 = vsub.s32 32, %v2929
        %v2931 = vshll.u32 %v2922, %v2929
        %v2932 = vshrl.u32 %v2914, %v2930
        %v2933 = vor.u32 %v2931, %v2932
        %v2934 = vsub.s32 4294967266, %v2929
        %v2935 = vadd.s32 %v2934, 127
        %v2936 = vshll.u32 %v2935, 23
        %v2937 = vor.u32 4788187, %v2936
        %v2938 = vand.u32 2147483647, %v2937
        %v2940 = vcvt.s32.f32 %v2933
        %v2941 = vmul.f32 %v2940, %v2938
        %v2942 = vxor.u32 %v2941, 2147483648
        %v2943 = vsel %vm2822, %v2942, %v2941
        %v2944 = vsub.s32 4, %v2920
        %v2945 = vsel %vm2822, %v2944, %v2920
        %v2946 = vsel %vm2821, %v482, %v2943
        %v2947 = vsel %vm2821, 0, %v2945
        %v2948 = vmul.f32 %v2946, %v2946
        %v2949 = vmul.f32 %v2948, -0.001358992
        %v2950 = vadd.f32 %v2949, 0.041655596
        %v2951 = vmul.f32 %v2948, %v2950
        %v2952 = vadd.f32 %v2951, -0.4999988
        %v2953 = vmul.f32 %v2948, %v2952
        %v2954 = vadd.f32 1.0, %v2953
        %v2955 = vmul.f32 %v2946, %v2946
        %v2956 = vmul.f32 %v2955, -0.00019511016
        %v2957 = vadd.f32 %v2956, 0.008332121
        %v2958 = vmul.f32 %v2955, %v2957
        %v2959 = vadd.f32 %v2958, -0.16666654
        %v2960 = vmul.f32 %v2955, %v2959
        %v2961 = vadd.f32 %v2960, 1.0
        %v2962 = vmul.f32 %v2961, %v2946
        %vm2963 = vweird.f32 %v482
        %v2964 = vadd.s32 %v2947, 3
        %v2965 = vand.u32 %v2964, 3
        %vm2966 = vcmp.lt.s32.totalorder %v2965, 2
        %vm2967 = vcmp.eq.s32.totalorder %v2965, 0
        %v2968 = vxor.u32 %v2962, 2147483648
        %v2969 = vsel %vm2967, %v2954, %v2968
        %vm2970 = vcmp.eq.s32.totalorder %v2965, 2
        %v2971 = vxor.u32 %v2954, 2147483648
        %v2972 = vsel %vm2970, %v2971, %v2962
        %v2973 = vsel %vm2966, %v2969, %v2972
        %v2974 = vsel %vm2963, nan, %v2973
        %v2975 = vand.u32 2147483647, %v483
        %vm2976 = vcmp.le.f32.partialorder %v2975, 0.7853982
        %vm2977 = vcmp.lt.s32.totalorder %v483, 0
        %v2978 = vand.u32 %v483, 2139095040
        %v2979 = vshrl.u32 %v2978, 23
        %v2980 = vsub.s32 %v2979, 127
        %v2981 = vand.u32 2147483647, %v483
        %v2982 = vand.u32 %v2981, 8388607
        %v2983 = vor.u32 %v2982, 8388608
        %v2984 = vsub.s32 0, %v2983
        %v2985 = vadd.s32 %v2980, 1
        %vm2986 = vcmp.gt.s32.totalorder %v2985, 0
        %v2987 = vsel %vm2986, %v2985, 0
        %v2988 = vshrl.u32 %v2987, 5
        %v2989 = vand.u32 %v2987, 31
        %v2990 = vsub.s32 32, %v2989
        %v2991 = vshrl.u32 683565275, %v2990
        %v2992 = vshll.u32 683565275, %v2989
        %v2993 = vshrl.u32 2475754826, %v2990
        %v2994 = vor.u32 %v2992, %v2993
        %v2995 = vshll.u32 2475754826, %v2989
        %v2996 = vshrl.u32 2131351028, %v2990
        %v2997 = vor.u32 %v2995, %v2996
        %v2998 = vshll.u32 2131351028, %v2989
        %v2999 = vshrl.u32 2102212464, %v2990
        %v3000 = vor.u32 %v2998, %v2999
        %v3001 = vshll.u32 2102212464, %v2989
        %v3002 = vshrl.u32 920167782, %v2990
        %v3003 = vor.u32 %v3001, %v3002
        %v3004 = vshll.u32 920167782, %v2989
        %v3005 = vshrl.u32 1326507024, %v2990
        %v3006 = vor.u32 %v3004, %v3005
        %vm3007 = vcmp.lt.s32.totalorder %v2988, 1
        %vm3008 = vcmp.lt.s32.totalorder %v2988, 2
        %vm3009 = vcmp.lt.s32.totalorder %v2988, 3
        %vm3010 = vcmp.lt.s32.totalorder %v2988, 4
        %v3011 = vsel %vm3007, %v2991, %v2994
        %v3012 = vsel %vm3010, %v3000, 2102212464
        %v3013 = vsel %vm3009, %v2997, %v3012
        %v3014 = vsel %vm3008, %v3011, %v3013
        %v3015 = vsel %vm3007, %v2994, %v2997
        %v3016 = vsel %vm3010, %v3003, 920167782
        %v3017 = vsel %vm3009, %v3000, %v3016
        %v3018 = vsel %vm3008, %v3015, %v3017
        %v3019 = vsel %vm3007, %v2997, %v3000
        %v3020 = vsel %vm3010, %v3006, 1326507024
        %v3021 = vsel %vm3009, %v3003, %v3020
        %v3022 = vsel %vm3008, %v3019, %v3021
        %v3023 = vshll.u32 %v2983, 8
        %v3024 = vand.u32 %v3023, 65535
        %v3025 = vshrl.u32 %v3023, 16
        %v3026 = vand.u32 %v3022, 65535
        %v3027 = vshrl.u32 %v3022, 16
        %v3028 = vmul.u32 %v3024, %v3026
        %v3029 = vmul.u32 %v3024, %v3027
        %v3030 = vmul.u32 %v3025, %v3026
        %v3031 = vmul.u32 %v3025, %v3027
        %v3032 = vshll.u32 %v3029, 16
        %v3033 = vshrl.u32 %v3029, 16
        %v3034 = vshll.u32 %v3030, 16
        %v3035 = vshrl.u32 %v3030, 16
        %vm3036 = vc.u32 %v3028, %v3032
        %v3037 = vsel %vm3036, 1, 0
        %v3038 = vadd.s32 %v3028, %v3032
        %v3039 = vadd.s32 %v3031, %v3037
        %vm3040 = vc.u32 %v3038, %v3034
        %v3041 = vsel %vm3040, 1, 0
        %v3042 = vadd.s32 %v3038, %v3034
        %v3043 = vadd.s32 %v3039, %v3041
        %v3044 = vadd.s32 %v3043, %v3033
        %v3045 = vadd.s32 %v3044, %v3035
        %v3046 = vand.u32 %v3023, 65535
        %v3047 = vshrl.u32 %v3023, 16
        %v3048 = vand.u32 %v3018, 65535
        %v3049 = vshrl.u32 %v3018, 16
        %v3050 = vmul.u32 %v3046, %v3048
        %v3051 = vmul.u32 %v3046, %v3049
        %v3052 = vmul.u32 %v3047, %v3048
        %v3053 = vmul.u32 %v3047, %v3049
        %v3054 = vshll.u32 %v3051, 16
        %v3055 = vshrl.u32 %v3051, 16
        %v3056 = vshll.u32 %v3052, 16
        %v3057 = vshrl.u32 %v3052, 16
        %vm3058 = vc.u32 %v3050, %v3054
        %v3059 = vsel %vm3058, 1, 0
        %v3060 = vadd.s32 %v3050, %v3054
        %v3061 = vadd.s32 %v3053, %v3059
        %vm3062 = vc.u32 %v3060, %v3056
        %v3063 = vsel %vm3062, 1, 0
        %v3064 = vadd.s32 %v3060, %v3056
        %v3065 = vadd.s32 %v3061, %v3063
        %v3066 = vadd.s32 %v3065, %v3055
        %v3067 = vadd.s32 %v3066, %v3057
        %v3068 = vmul.u32 %v3023, %v3014
        %v3069 = vadd.s32 %v3045, %v3064
        %vm3070 = vc.u32 %v3045, %v3064
        %v3071 = vadd.s32 %v3067, 1
        %v3072 = vsel %vm3070, %v3071, %v3067
        %v3073 = vadd.s32 %v3068, %v3072
        %v3074 = vadd.s32 %v3073, 536870912
        %v3075 = vshrl.u32 %v3074, 30
        %v3076 = vshll.u32 %v3075, 30
        %v3077 = vsub.s32 %v3073, %v3076
        %vm3078 = vcmp.lt.s32.totalorder %v3077, 0
        %v3079 = vsub.s32 0, %v3077
        %v3080 = vsel %vm3078, %v3079, %v3077
        %v3081 = vclz %v3080
        %v3082 = vsub.s32 %v3081, 2
        %vm3083 = vcmp.gt.s32.totalorder 0, %v3082
        %v3084 = vsel %vm3083, 0, %v3082
        %v3085 = vsub.s32 32, %v3084
        %v3086 = vshll.u32 %v3077, %v3084
        %v3087 = vshrl.u32 %v3069, %v3085
        %v3088 = vor.u32 %v3086, %v3087
        %v3089 = vsub.s32 4294967266, %v3084
        %v3090 = vadd.s32 %v3089, 127
        %v3091 = vshll.u32 %v3090, 23
        %v3092 = vor.u32 4788187, %v3091
        %v3093 = vand.u32 2147483647, %v3092
        %v3095 = vcvt.s32.f32 %v3088
        %v3096 = vmul.f32 %v3095, %v3093
        %v3097 = vxor.u32 %v3096, 2147483648
        %v3098 = vsel %vm2977, %v3097, %v3096
        %v3099 = vsub.s32 4, %v3075
        %v3100 = vsel %vm2977, %v3099, %v3075
        %v3101 = vsel %vm2976, %v483, %v3098
        %v3102 = vsel %vm2976, 0, %v3100
        %v3103 = vmul.f32 %v3101, %v3101
        %v3104 = vmul.f32 %v3103, -0.001358992
        %v3105 = vadd.f32 %v3104, 0.041655596
        %v3106 = vmul.f32 %v3103, %v3105
        %v3107 = vadd.f32 %v3106, -0.4999988
        %v3108 = vmul.f32 %v3103, %v3107
        %v3109 = vadd.f32 1.0, %v3108
        %v3110 = vmul.f32 %v3101, %v3101
        %v3111 = vmul.f32 %v3110, -0.00019511016
        %v3112 = vadd.f32 %v3111, 0.008332121
        %v3113 = vmul.f32 %v3110, %v3112
        %v3114 = vadd.f32 %v3113, -0.16666654
        %v3115 = vmul.f32 %v3110, %v3114
        %v3116 = vadd.f32 %v3115, 1.0
        %v3117 = vmul.f32 %v3116, %v3101
        %vm3118 = vweird.f32 %v483
        %v3119 = vadd.s32 %v3102, 3
        %v3120 = vand.u32 %v3119, 3
        %vm3121 = vcmp.lt.s32.totalorder %v3120, 2
        %vm3122 = vcmp.eq.s32.totalorder %v3120, 0
        %v3123 = vxor.u32 %v3117, 2147483648
        %v3124 = vsel %vm3122, %v3109, %v3123
        %vm3125 = vcmp.eq.s32.totalorder %v3120, 2
        %v3126 = vxor.u32 %v3109, 2147483648
        %v3127 = vsel %vm3125, %v3126, %v3117
        %v3128 = vsel %vm3121, %v3124, %v3127
        %v3129 = vsel %vm3118, nan, %v3128
        %v3130 = vand.u32 2147483647, %v484
        %vm3131 = vcmp.le.f32.partialorder %v3130, 0.7853982
        %vm3132 = vcmp.lt.s32.totalorder %v484, 0
        %v3133 = vand.u32 %v484, 2139095040
        %v3134 = vshrl.u32 %v3133, 23
        %v3135 = vsub.s32 %v3134, 127
        %v3136 = vand.u32 2147483647, %v484
        %v3137 = vand.u32 %v3136, 8388607
        %v3138 = vor.u32 %v3137, 8388608
        %v3139 = vsub.s32 0, %v3138
        %v3140 = vadd.s32 %v3135, 1
        %vm3141 = vcmp.gt.s32.totalorder %v3140, 0
        %v3142 = vsel %vm3141, %v3140, 0
        %v3143 = vshrl.u32 %v3142, 5
        %v3144 = vand.u32 %v3142, 31
        %v3145 = vsub.s32 32, %v3144
        %v3146 = vshrl.u32 683565275, %v3145
        %v3147 = vshll.u32 683565275, %v3144
        %v3148 = vshrl.u32 2475754826, %v3145
        %v3149 = vor.u32 %v3147, %v3148
        %v3150 = vshll.u32 2475754826, %v3144
        %v3151 = vshrl.u32 2131351028, %v3145
        %v3152 = vor.u32 %v3150, %v3151
        %v3153 = vshll.u32 2131351028, %v3144
        %v3154 = vshrl.u32 2102212464, %v3145
        %v3155 = vor.u32 %v3153, %v3154
        %v3156 = vshll.u32 2102212464, %v3144
        %v3157 = vshrl.u32 920167782, %v3145
        %v3158 = vor.u32 %v3156, %v3157
        %v3159 = vshll.u32 920167782, %v3144
        %v3160 = vshrl.u32 1326507024, %v3145
        %v3161 = vor.u32 %v3159, %v3160
        %vm3162 = vcmp.lt.s32.totalorder %v3143, 1
        %vm3163 = vcmp.lt.s32.totalorder %v3143, 2
        %vm3164 = vcmp.lt.s32.totalorder %v3143, 3
        %vm3165 = vcmp.lt.s32.totalorder %v3143, 4
        %v3166 = vsel %vm3162, %v3146, %v3149
        %v3167 = vsel %vm3165, %v3155, 2102212464
        %v3168 = vsel %vm3164, %v3152, %v3167
        %v3169 = vsel %vm3163, %v3166, %v3168
        %v3170 = vsel %vm3162, %v3149, %v3152
        %v3171 = vsel %vm3165, %v3158, 920167782
        %v3172 = vsel %vm3164, %v3155, %v3171
        %v3173 = vsel %vm3163, %v3170, %v3172
        %v3174 = vsel %vm3162, %v3152, %v3155
        %v3175 = vsel %vm3165, %v3161, 1326507024
        %v3176 = vsel %vm3164, %v3158, %v3175
        %v3177 = vsel %vm3163, %v3174, %v3176
        %v3178 = vshll.u32 %v3138, 8
        %v3179 = vand.u32 %v3178, 65535
        %v3180 = vshrl.u32 %v3178, 16
        %v3181 = vand.u32 %v3177, 65535
        %v3182 = vshrl.u32 %v3177, 16
        %v3183 = vmul.u32 %v3179, %v3181
        %v3184 = vmul.u32 %v3179, %v3182
        %v3185 = vmul.u32 %v3180, %v3181
        %v3186 = vmul.u32 %v3180, %v3182
        %v3187 = vshll.u32 %v3184, 16
        %v3188 = vshrl.u32 %v3184, 16
        %v3189 = vshll.u32 %v3185, 16
        %v3190 = vshrl.u32 %v3185, 16
        %vm3191 = vc.u32 %v3183, %v3187
        %v3192 = vsel %vm3191, 1, 0
        %v3193 = vadd.s32 %v3183, %v3187
        %v3194 = vadd.s32 %v3186, %v3192
        %vm3195 = vc.u32 %v3193, %v3189
        %v3196 = vsel %vm3195, 1, 0
        %v3197 = vadd.s32 %v3193, %v3189
        %v3198 = vadd.s32 %v3194, %v3196
        %v3199 = vadd.s32 %v3198, %v3188
        %v3200 = vadd.s32 %v3199, %v3190
        %v3201 = vand.u32 %v3178, 65535
        %v3202 = vshrl.u32 %v3178, 16
        %v3203 = vand.u32 %v3173, 65535
        %v3204 = vshrl.u32 %v3173, 16
        %v3205 = vmul.u32 %v3201, %v3203
        %v3206 = vmul.u32 %v3201, %v3204
        %v3207 = vmul.u32 %v3202, %v3203
        %v3208 = vmul.u32 %v3202, %v3204
        %v3209 = vshll.u32 %v3206, 16
        %v3210 = vshrl.u32 %v3206, 16
        %v3211 = vshll.u32 %v3207, 16
        %v3212 = vshrl.u32 %v3207, 16
        %vm3213 = vc.u32 %v3205, %v3209
        %v3214 = vsel %vm3213, 1, 0
        %v3215 = vadd.s32 %v3205, %v3209
        %v3216 = vadd.s32 %v3208, %v3214
        %vm3217 = vc.u32 %v3215, %v3211
        %v3218 = vsel %vm3217, 1, 0
        %v3219 = vadd.s32 %v3215, %v3211
        %v3220 = vadd.s32 %v3216, %v3218
        %v3221 = vadd.s32 %v3220, %v3210
        %v3222 = vadd.s32 %v3221, %v3212
        %v3223 = vmul.u32 %v3178, %v3169
        %v3224 = vadd.s32 %v3200, %v3219
        %vm3225 = vc.u32 %v3200, %v3219
        %v3226 = vadd.s32 %v3222, 1
        %v3227 = vsel %vm3225, %v3226, %v3222
        %v3228 = vadd.s32 %v3223, %v3227
        %v3229 = vadd.s32 %v3228, 536870912
        %v3230 = vshrl.u32 %v3229, 30
        %v3231 = vshll.u32 %v3230, 30
        %v3232 = vsub.s32 %v3228, %v3231
        %vm3233 = vcmp.lt.s32.totalorder %v3232, 0
        %v3234 = vsub.s32 0, %v3232
        %v3235 = vsel %vm3233, %v3234, %v3232
        %v3236 = vclz %v3235
        %v3237 = vsub.s32 %v3236, 2
        %vm3238 = vcmp.gt.s32.totalorder 0, %v3237
        %v3239 = vsel %vm3238, 0, %v3237
        %v3240 = vsub.s32 32, %v3239
        %v3241 = vshll.u32 %v3232, %v3239
        %v3242 = vshrl.u32 %v3224, %v3240
        %v3243 = vor.u32 %v3241, %v3242
        %v3244 = vsub.s32 4294967266, %v3239
        %v3245 = vadd.s32 %v3244, 127
        %v3246 = vshll.u32 %v3245, 23
        %v3247 = vor.u32 4788187, %v3246
        %v3248 = vand.u32 2147483647, %v3247
        %v3250 = vcvt.s32.f32 %v3243
        %v3251 = vmul.f32 %v3250, %v3248
        %v3252 = vxor.u32 %v3251, 2147483648
        %v3253 = vsel %vm3132, %v3252, %v3251
        %v3254 = vsub.s32 4, %v3230
        %v3255 = vsel %vm3132, %v3254, %v3230
        %v3256 = vsel %vm3131, %v484, %v3253
        %v3257 = vsel %vm3131, 0, %v3255
        %v3258 = vmul.f32 %v3256, %v3256
        %v3259 = vmul.f32 %v3258, -0.001358992
        %v3260 = vadd.f32 %v3259, 0.041655596
        %v3261 = vmul.f32 %v3258, %v3260
        %v3262 = vadd.f32 %v3261, -0.4999988
        %v3263 = vmul.f32 %v3258, %v3262
        %v3264 = vadd.f32 1.0, %v3263
        %v3265 = vmul.f32 %v3256, %v3256
        %v3266 = vmul.f32 %v3265, -0.00019511016
        %v3267 = vadd.f32 %v3266, 0.008332121
        %v3268 = vmul.f32 %v3265, %v3267
        %v3269 = vadd.f32 %v3268, -0.16666654
        %v3270 = vmul.f32 %v3265, %v3269
        %v3271 = vadd.f32 %v3270, 1.0
        %v3272 = vmul.f32 %v3271, %v3256
        %vm3273 = vweird.f32 %v484
        %v3274 = vadd.s32 %v3257, 3
        %v3275 = vand.u32 %v3274, 3
        %vm3276 = vcmp.lt.s32.totalorder %v3275, 2
        %vm3277 = vcmp.eq.s32.totalorder %v3275, 0
        %v3278 = vxor.u32 %v3272, 2147483648
        %v3279 = vsel %vm3277, %v3264, %v3278
        %vm3280 = vcmp.eq.s32.totalorder %v3275, 2
        %v3281 = vxor.u32 %v3264, 2147483648
        %v3282 = vsel %vm3280, %v3281, %v3272
        %v3283 = vsel %vm3276, %v3279, %v3282
        %v3284 = vsel %vm3273, nan, %v3283
        %v3285 = vand.u32 2147483647, %v485
        %vm3286 = vcmp.le.f32.partialorder %v3285, 0.7853982
        %vm3287 = vcmp.lt.s32.totalorder %v485, 0
        %v3288 = vand.u32 %v485, 2139095040
        %v3289 = vshrl.u32 %v3288, 23
        %v3290 = vsub.s32 %v3289, 127
        %v3291 = vand.u32 2147483647, %v485
        %v3292 = vand.u32 %v3291, 8388607
        %v3293 = vor.u32 %v3292, 8388608
        %v3294 = vsub.s32 0, %v3293
        %v3295 = vadd.s32 %v3290, 1
        %vm3296 = vcmp.gt.s32.totalorder %v3295, 0
        %v3297 = vsel %vm3296, %v3295, 0
        %v3298 = vshrl.u32 %v3297, 5
        %v3299 = vand.u32 %v3297, 31
        %v3300 = vsub.s32 32, %v3299
        %v3301 = vshrl.u32 683565275, %v3300
        %v3302 = vshll.u32 683565275, %v3299
        %v3303 = vshrl.u32 2475754826, %v3300
        %v3304 = vor.u32 %v3302, %v3303
        %v3305 = vshll.u32 2475754826, %v3299
        %v3306 = vshrl.u32 2131351028, %v3300
        %v3307 = vor.u32 %v3305, %v3306
        %v3308 = vshll.u32 2131351028, %v3299
        %v3309 = vshrl.u32 2102212464, %v3300
        %v3310 = vor.u32 %v3308, %v3309
        %v3311 = vshll.u32 2102212464, %v3299
        %v3312 = vshrl.u32 920167782, %v3300
        %v3313 = vor.u32 %v3311, %v3312
        %v3314 = vshll.u32 920167782, %v3299
        %v3315 = vshrl.u32 1326507024, %v3300
        %v3316 = vor.u32 %v3314, %v3315
        %vm3317 = vcmp.lt.s32.totalorder %v3298, 1
        %vm3318 = vcmp.lt.s32.totalorder %v3298, 2
        %vm3319 = vcmp.lt.s32.totalorder %v3298, 3
        %vm3320 = vcmp.lt.s32.totalorder %v3298, 4
        %v3321 = vsel %vm3317, %v3301, %v3304
        %v3322 = vsel %vm3320, %v3310, 2102212464
        %v3323 = vsel %vm3319, %v3307, %v3322
        %v3324 = vsel %vm3318, %v3321, %v3323
        %v3325 = vsel %vm3317, %v3304, %v3307
        %v3326 = vsel %vm3320, %v3313, 920167782
        %v3327 = vsel %vm3319, %v3310, %v3326
        %v3328 = vsel %vm3318, %v3325, %v3327
        %v3329 = vsel %vm3317, %v3307, %v3310
        %v3330 = vsel %vm3320, %v3316, 1326507024
        %v3331 = vsel %vm3319, %v3313, %v3330
        %v3332 = vsel %vm3318, %v3329, %v3331
        %v3333 = vshll.u32 %v3293, 8
        %v3334 = vand.u32 %v3333, 65535
        %v3335 = vshrl.u32 %v3333, 16
        %v3336 = vand.u32 %v3332, 65535
        %v3337 = vshrl.u32 %v3332, 16
        %v3338 = vmul.u32 %v3334, %v3336
        %v3339 = vmul.u32 %v3334, %v3337
        %v3340 = vmul.u32 %v3335, %v3336
        %v3341 = vmul.u32 %v3335, %v3337
        %v3342 = vshll.u32 %v3339, 16
        %v3343 = vshrl.u32 %v3339, 16
        %v3344 = vshll.u32 %v3340, 16
        %v3345 = vshrl.u32 %v3340, 16
        %vm3346 = vc.u32 %v3338, %v3342
        %v3347 = vsel %vm3346, 1, 0
        %v3348 = vadd.s32 %v3338, %v3342
        %v3349 = vadd.s32 %v3341, %v3347
        %vm3350 = vc.u32 %v3348, %v3344
        %v3351 = vsel %vm3350, 1, 0
        %v3352 = vadd.s32 %v3348, %v3344
        %v3353 = vadd.s32 %v3349, %v3351
        %v3354 = vadd.s32 %v3353, %v3343
        %v3355 = vadd.s32 %v3354, %v3345
        %v3356 = vand.u32 %v3333, 65535
        %v3357 = vshrl.u32 %v3333, 16
        %v3358 = vand.u32 %v3328, 65535
        %v3359 = vshrl.u32 %v3328, 16
        %v3360 = vmul.u32 %v3356, %v3358
        %v3361 = vmul.u32 %v3356, %v3359
        %v3362 = vmul.u32 %v3357, %v3358
        %v3363 = vmul.u32 %v3357, %v3359
        %v3364 = vshll.u32 %v3361, 16
        %v3365 = vshrl.u32 %v3361, 16
        %v3366 = vshll.u32 %v3362, 16
        %v3367 = vshrl.u32 %v3362, 16
        %vm3368 = vc.u32 %v3360, %v3364
        %v3369 = vsel %vm3368, 1, 0
        %v3370 = vadd.s32 %v3360, %v3364
        %v3371 = vadd.s32 %v3363, %v3369
        %vm3372 = vc.u32 %v3370, %v3366
        %v3373 = vsel %vm3372, 1, 0
        %v3374 = vadd.s32 %v3370, %v3366
        %v3375 = vadd.s32 %v3371, %v3373
        %v3376 = vadd.s32 %v3375, %v3365
        %v3377 = vadd.s32 %v3376, %v3367
        %v3378 = vmul.u32 %v3333, %v3324
        %v3379 = vadd.s32 %v3355, %v3374
        %vm3380 = vc.u32 %v3355, %v3374
        %v3381 = vadd.s32 %v3377, 1
        %v3382 = vsel %vm3380, %v3381, %v3377
        %v3383 = vadd.s32 %v3378, %v3382
        %v3384 = vadd.s32 %v3383, 536870912
        %v3385 = vshrl.u32 %v3384, 30
        %v3386 = vshll.u32 %v3385, 30
        %v3387 = vsub.s32 %v3383, %v3386
        %vm3388 = vcmp.lt.s32.totalorder %v3387, 0
        %v3389 = vsub.s32 0, %v3387
        %v3390 = vsel %vm3388, %v3389, %v3387
        %v3391 = vclz %v3390
        %v3392 = vsub.s32 %v3391, 2
        %vm3393 = vcmp.gt.s32.totalorder 0, %v3392
        %v3394 = vsel %vm3393, 0, %v3392
        %v3395 = vsub.s32 32, %v3394
        %v3396 = vshll.u32 %v3387, %v3394
        %v3397 = vshrl.u32 %v3379, %v3395
        %v3398 = vor.u32 %v3396, %v3397
        %v3399 = vsub.s32 4294967266, %v3394
        %v3400 = vadd.s32 %v3399, 127
        %v3401 = vshll.u32 %v3400, 23
        %v3402 = vor.u32 4788187, %v3401
        %v3403 = vand.u32 2147483647, %v3402
        %v3405 = vcvt.s32.f32 %v3398
        %v3406 = vmul.f32 %v3405, %v3403
        %v3407 = vxor.u32 %v3406, 2147483648
        %v3408 = vsel %vm3287, %v3407, %v3406
        %v3409 = vsub.s32 4, %v3385
        %v3410 = vsel %vm3287, %v3409, %v3385
        %v3411 = vsel %vm3286, %v485, %v3408
        %v3412 = vsel %vm3286, 0, %v3410
        %v3413 = vmul.f32 %v3411, %v3411
        %v3414 = vmul.f32 %v3413, -0.001358992
        %v3415 = vadd.f32 %v3414, 0.041655596
        %v3416 = vmul.f32 %v3413, %v3415
        %v3417 = vadd.f32 %v3416, -0.4999988
        %v3418 = vmul.f32 %v3413, %v3417
        %v3419 = vadd.f32 1.0, %v3418
        %v3420 = vmul.f32 %v3411, %v3411
        %v3421 = vmul.f32 %v3420, -0.00019511016
        %v3422 = vadd.f32 %v3421, 0.008332121
        %v3423 = vmul.f32 %v3420, %v3422
        %v3424 = vadd.f32 %v3423, -0.16666654
        %v3425 = vmul.f32 %v3420, %v3424
        %v3426 = vadd.f32 %v3425, 1.0
        %v3427 = vmul.f32 %v3426, %v3411
        %vm3428 = vweird.f32 %v485
        %v3429 = vadd.s32 %v3412, 3
        %v3430 = vand.u32 %v3429, 3
        %vm3431 = vcmp.lt.s32.totalorder %v3430, 2
        %vm3432 = vcmp.eq.s32.totalorder %v3430, 0
        %v3433 = vxor.u32 %v3427, 2147483648
        %v3434 = vsel %vm3432, %v3419, %v3433
        %vm3435 = vcmp.eq.s32.totalorder %v3430, 2
        %v3436 = vxor.u32 %v3419, 2147483648
        %v3437 = vsel %vm3435, %v3436, %v3427
        %v3438 = vsel %vm3431, %v3434, %v3437
        %v3439 = vsel %vm3428, nan, %v3438
        %v3440 = vand.u32 2147483647, %v486
        %vm3441 = vcmp.le.f32.partialorder %v3440, 0.7853982
        %vm3442 = vcmp.lt.s32.totalorder %v486, 0
        %v3443 = vand.u32 %v486, 2139095040
        %v3444 = vshrl.u32 %v3443, 23
        %v3445 = vsub.s32 %v3444, 127
        %v3446 = vand.u32 2147483647, %v486
        %v3447 = vand.u32 %v3446, 8388607
        %v3448 = vor.u32 %v3447, 8388608
        %v3449 = vsub.s32 0, %v3448
        %v3450 = vadd.s32 %v3445, 1
        %vm3451 = vcmp.gt.s32.totalorder %v3450, 0
        %v3452 = vsel %vm3451, %v3450, 0
        %v3453 = vshrl.u32 %v3452, 5
        %v3454 = vand.u32 %v3452, 31
        %v3455 = vsub.s32 32, %v3454
        %v3456 = vshrl.u32 683565275, %v3455
        %v3457 = vshll.u32 683565275, %v3454
        %v3458 = vshrl.u32 2475754826, %v3455
        %v3459 = vor.u32 %v3457, %v3458
        %v3460 = vshll.u32 2475754826, %v3454
        %v3461 = vshrl.u32 2131351028, %v3455
        %v3462 = vor.u32 %v3460, %v3461
        %v3463 = vshll.u32 2131351028, %v3454
        %v3464 = vshrl.u32 2102212464, %v3455
        %v3465 = vor.u32 %v3463, %v3464
        %v3466 = vshll.u32 2102212464, %v3454
        %v3467 = vshrl.u32 920167782, %v3455
        %v3468 = vor.u32 %v3466, %v3467
        %v3469 = vshll.u32 920167782, %v3454
        %v3470 = vshrl.u32 1326507024, %v3455
        %v3471 = vor.u32 %v3469, %v3470
        %vm3472 = vcmp.lt.s32.totalorder %v3453, 1
        %vm3473 = vcmp.lt.s32.totalorder %v3453, 2
        %vm3474 = vcmp.lt.s32.totalorder %v3453, 3
        %vm3475 = vcmp.lt.s32.totalorder %v3453, 4
        %v3476 = vsel %vm3472, %v3456, %v3459
        %v3477 = vsel %vm3475, %v3465, 2102212464
        %v3478 = vsel %vm3474, %v3462, %v3477
        %v3479 = vsel %vm3473, %v3476, %v3478
        %v3480 = vsel %vm3472, %v3459, %v3462
        %v3481 = vsel %vm3475, %v3468, 920167782
        %v3482 = vsel %vm3474, %v3465, %v3481
        %v3483 = vsel %vm3473, %v3480, %v3482
        %v3484 = vsel %vm3472, %v3462, %v3465
        %v3485 = vsel %vm3475, %v3471, 1326507024
        %v3486 = vsel %vm3474, %v3468, %v3485
        %v3487 = vsel %vm3473, %v3484, %v3486
        %v3488 = vshll.u32 %v3448, 8
        %v3489 = vand.u32 %v3488, 65535
        %v3490 = vshrl.u32 %v3488, 16
        %v3491 = vand.u32 %v3487, 65535
        %v3492 = vshrl.u32 %v3487, 16
        %v3493 = vmul.u32 %v3489, %v3491
        %v3494 = vmul.u32 %v3489, %v3492
        %v3495 = vmul.u32 %v3490, %v3491
        %v3496 = vmul.u32 %v3490, %v3492
        %v3497 = vshll.u32 %v3494, 16
        %v3498 = vshrl.u32 %v3494, 16
        %v3499 = vshll.u32 %v3495, 16
        %v3500 = vshrl.u32 %v3495, 16
        %vm3501 = vc.u32 %v3493, %v3497
        %v3502 = vsel %vm3501, 1, 0
        %v3503 = vadd.s32 %v3493, %v3497
        %v3504 = vadd.s32 %v3496, %v3502
        %vm3505 = vc.u32 %v3503, %v3499
        %v3506 = vsel %vm3505, 1, 0
        %v3507 = vadd.s32 %v3503, %v3499
        %v3508 = vadd.s32 %v3504, %v3506
        %v3509 = vadd.s32 %v3508, %v3498
        %v3510 = vadd.s32 %v3509, %v3500
        %v3511 = vand.u32 %v3488, 65535
        %v3512 = vshrl.u32 %v3488, 16
        %v3513 = vand.u32 %v3483, 65535
        %v3514 = vshrl.u32 %v3483, 16
        %v3515 = vmul.u32 %v3511, %v3513
        %v3516 = vmul.u32 %v3511, %v3514
        %v3517 = vmul.u32 %v3512, %v3513
        %v3518 = vmul.u32 %v3512, %v3514
        %v3519 = vshll.u32 %v3516, 16
        %v3520 = vshrl.u32 %v3516, 16
        %v3521 = vshll.u32 %v3517, 16
        %v3522 = vshrl.u32 %v3517, 16
        %vm3523 = vc.u32 %v3515, %v3519
        %v3524 = vsel %vm3523, 1, 0
        %v3525 = vadd.s32 %v3515, %v3519
        %v3526 = vadd.s32 %v3518, %v3524
        %vm3527 = vc.u32 %v3525, %v3521
        %v3528 = vsel %vm3527, 1, 0
        %v3529 = vadd.s32 %v3525, %v3521
        %v3530 = vadd.s32 %v3526, %v3528
        %v3531 = vadd.s32 %v3530, %v3520
        %v3532 = vadd.s32 %v3531, %v3522
        %v3533 = vmul.u32 %v3488, %v3479
        %v3534 = vadd.s32 %v3510, %v3529
        %vm3535 = vc.u32 %v3510, %v3529
        %v3536 = vadd.s32 %v3532, 1
        %v3537 = vsel %vm3535, %v3536, %v3532
        %v3538 = vadd.s32 %v3533, %v3537
        %v3539 = vadd.s32 %v3538, 536870912
        %v3540 = vshrl.u32 %v3539, 30
        %v3541 = vshll.u32 %v3540, 30
        %v3542 = vsub.s32 %v3538, %v3541
        %vm3543 = vcmp.lt.s32.totalorder %v3542, 0
        %v3544 = vsub.s32 0, %v3542
        %v3545 = vsel %vm3543, %v3544, %v3542
        %v3546 = vclz %v3545
        %v3547 = vsub.s32 %v3546, 2
        %vm3548 = vcmp.gt.s32.totalorder 0, %v3547
        %v3549 = vsel %vm3548, 0, %v3547
        %v3550 = vsub.s32 32, %v3549
        %v3551 = vshll.u32 %v3542, %v3549
        %v3552 = vshrl.u32 %v3534, %v3550
        %v3553 = vor.u32 %v3551, %v3552
        %v3554 = vsub.s32 4294967266, %v3549
        %v3555 = vadd.s32 %v3554, 127
        %v3556 = vshll.u32 %v3555, 23
        %v3557 = vor.u32 4788187, %v3556
        %v3558 = vand.u32 2147483647, %v3557
        %v3560 = vcvt.s32.f32 %v3553
        %v3561 = vmul.f32 %v3560, %v3558
        %v3562 = vxor.u32 %v3561, 2147483648
        %v3563 = vsel %vm3442, %v3562, %v3561
        %v3564 = vsub.s32 4, %v3540
        %v3565 = vsel %vm3442, %v3564, %v3540
        %v3566 = vsel %vm3441, %v486, %v3563
        %v3567 = vsel %vm3441, 0, %v3565
        %v3568 = vmul.f32 %v3566, %v3566
        %v3569 = vmul.f32 %v3568, -0.001358992
        %v3570 = vadd.f32 %v3569, 0.041655596
        %v3571 = vmul.f32 %v3568, %v3570
        %v3572 = vadd.f32 %v3571, -0.4999988
        %v3573 = vmul.f32 %v3568, %v3572
        %v3574 = vadd.f32 1.0, %v3573
        %v3575 = vmul.f32 %v3566, %v3566
        %v3576 = vmul.f32 %v3575, -0.00019511016
        %v3577 = vadd.f32 %v3576, 0.008332121
        %v3578 = vmul.f32 %v3575, %v3577
        %v3579 = vadd.f32 %v3578, -0.16666654
        %v3580 = vmul.f32 %v3575, %v3579
        %v3581 = vadd.f32 %v3580, 1.0
        %v3582 = vmul.f32 %v3581, %v3566
        %vm3583 = vweird.f32 %v486
        %v3584 = vadd.s32 %v3567, 3
        %v3585 = vand.u32 %v3584, 3
        %vm3586 = vcmp.lt.s32.totalorder %v3585, 2
        %vm3587 = vcmp.eq.s32.totalorder %v3585, 0
        %v3588 = vxor.u32 %v3582, 2147483648
        %v3589 = vsel %vm3587, %v3574, %v3588
        %vm3590 = vcmp.eq.s32.totalorder %v3585, 2
        %v3591 = vxor.u32 %v3574, 2147483648
        %v3592 = vsel %vm3590, %v3591, %v3582
        %v3593 = vsel %vm3586, %v3589, %v3592
        %v3594 = vsel %vm3583, nan, %v3593
        %v3595 = vand.u32 2147483647, %v487
        %vm3596 = vcmp.le.f32.partialorder %v3595, 0.7853982
        %vm3597 = vcmp.lt.s32.totalorder %v487, 0
        %v3598 = vand.u32 %v487, 2139095040
        %v3599 = vshrl.u32 %v3598, 23
        %v3600 = vsub.s32 %v3599, 127
        %v3601 = vand.u32 2147483647, %v487
        %v3602 = vand.u32 %v3601, 8388607
        %v3603 = vor.u32 %v3602, 8388608
        %v3604 = vsub.s32 0, %v3603
        %v3605 = vadd.s32 %v3600, 1
        %vm3606 = vcmp.gt.s32.totalorder %v3605, 0
        %v3607 = vsel %vm3606, %v3605, 0
        %v3608 = vshrl.u32 %v3607, 5
        %v3609 = vand.u32 %v3607, 31
        %v3610 = vsub.s32 32, %v3609
        %v3611 = vshrl.u32 683565275, %v3610
        %v3612 = vshll.u32 683565275, %v3609
        %v3613 = vshrl.u32 2475754826, %v3610
        %v3614 = vor.u32 %v3612, %v3613
        %v3615 = vshll.u32 2475754826, %v3609
        %v3616 = vshrl.u32 2131351028, %v3610
        %v3617 = vor.u32 %v3615, %v3616
        %v3618 = vshll.u32 2131351028, %v3609
        %v3619 = vshrl.u32 2102212464, %v3610
        %v3620 = vor.u32 %v3618, %v3619
        %v3621 = vshll.u32 2102212464, %v3609
        %v3622 = vshrl.u32 920167782, %v3610
        %v3623 = vor.u32 %v3621, %v3622
        %v3624 = vshll.u32 920167782, %v3609
        %v3625 = vshrl.u32 1326507024, %v3610
        %v3626 = vor.u32 %v3624, %v3625
        %vm3627 = vcmp.lt.s32.totalorder %v3608, 1
        %vm3628 = vcmp.lt.s32.totalorder %v3608, 2
        %vm3629 = vcmp.lt.s32.totalorder %v3608, 3
        %vm3630 = vcmp.lt.s32.totalorder %v3608, 4
        %v3631 = vsel %vm3627, %v3611, %v3614
        %v3632 = vsel %vm3630, %v3620, 2102212464
        %v3633 = vsel %vm3629, %v3617, %v3632
        %v3634 = vsel %vm3628, %v3631, %v3633
        %v3635 = vsel %vm3627, %v3614, %v3617
        %v3636 = vsel %vm3630, %v3623, 920167782
        %v3637 = vsel %vm3629, %v3620, %v3636
        %v3638 = vsel %vm3628, %v3635, %v3637
        %v3639 = vsel %vm3627, %v3617, %v3620
        %v3640 = vsel %vm3630, %v3626, 1326507024
        %v3641 = vsel %vm3629, %v3623, %v3640
        %v3642 = vsel %vm3628, %v3639, %v3641
        %v3643 = vshll.u32 %v3603, 8
        %v3644 = vand.u32 %v3643, 65535
        %v3645 = vshrl.u32 %v3643, 16
        %v3646 = vand.u32 %v3642, 65535
        %v3647 = vshrl.u32 %v3642, 16
        %v3648 = vmul.u32 %v3644, %v3646
        %v3649 = vmul.u32 %v3644, %v3647
        %v3650 = vmul.u32 %v3645, %v3646
        %v3651 = vmul.u32 %v3645, %v3647
        %v3652 = vshll.u32 %v3649, 16
        %v3653 = vshrl.u32 %v3649, 16
        %v3654 = vshll.u32 %v3650, 16
        %v3655 = vshrl.u32 %v3650, 16
        %vm3656 = vc.u32 %v3648, %v3652
        %v3657 = vsel %vm3656, 1, 0
        %v3658 = vadd.s32 %v3648, %v3652
        %v3659 = vadd.s32 %v3651, %v3657
        %vm3660 = vc.u32 %v3658, %v3654
        %v3661 = vsel %vm3660, 1, 0
        %v3662 = vadd.s32 %v3658, %v3654
        %v3663 = vadd.s32 %v3659, %v3661
        %v3664 = vadd.s32 %v3663, %v3653
        %v3665 = vadd.s32 %v3664, %v3655
        %v3666 = vand.u32 %v3643, 65535
        %v3667 = vshrl.u32 %v3643, 16
        %v3668 = vand.u32 %v3638, 65535
        %v3669 = vshrl.u32 %v3638, 16
        %v3670 = vmul.u32 %v3666, %v3668
        %v3671 = vmul.u32 %v3666, %v3669
        %v3672 = vmul.u32 %v3667, %v3668
        %v3673 = vmul.u32 %v3667, %v3669
        %v3674 = vshll.u32 %v3671, 16
        %v3675 = vshrl.u32 %v3671, 16
        %v3676 = vshll.u32 %v3672, 16
        %v3677 = vshrl.u32 %v3672, 16
        %vm3678 = vc.u32 %v3670, %v3674
        %v3679 = vsel %vm3678, 1, 0
        %v3680 = vadd.s32 %v3670, %v3674
        %v3681 = vadd.s32 %v3673, %v3679
        %vm3682 = vc.u32 %v3680, %v3676
        %v3683 = vsel %vm3682, 1, 0
        %v3684 = vadd.s32 %v3680, %v3676
        %v3685 = vadd.s32 %v3681, %v3683
        %v3686 = vadd.s32 %v3685, %v3675
        %v3687 = vadd.s32 %v3686, %v3677
        %v3688 = vmul.u32 %v3643, %v3634
        %v3689 = vadd.s32 %v3665, %v3684
        %vm3690 = vc.u32 %v3665, %v3684
        %v3691 = vadd.s32 %v3687, 1
        %v3692 = vsel %vm3690, %v3691, %v3687
        %v3693 = vadd.s32 %v3688, %v3692
        %v3694 = vadd.s32 %v3693, 536870912
        %v3695 = vshrl.u32 %v3694, 30
        %v3696 = vshll.u32 %v3695, 30
        %v3697 = vsub.s32 %v3693, %v3696
        %vm3698 = vcmp.lt.s32.totalorder %v3697, 0
        %v3699 = vsub.s32 0, %v3697
        %v3700 = vsel %vm3698, %v3699, %v3697
        %v3701 = vclz %v3700
        %v3702 = vsub.s32 %v3701, 2
        %vm3703 = vcmp.gt.s32.totalorder 0, %v3702
        %v3704 = vsel %vm3703, 0, %v3702
        %v3705 = vsub.s32 32, %v3704
        %v3706 = vshll.u32 %v3697, %v3704
        %v3707 = vshrl.u32 %v3689, %v3705
        %v3708 = vor.u32 %v3706, %v3707
        %v3709 = vsub.s32 4294967266, %v3704
        %v3710 = vadd.s32 %v3709, 127
        %v3711 = vshll.u32 %v3710, 23
        %v3712 = vor.u32 4788187, %v3711
        %v3713 = vand.u32 2147483647, %v3712
        %v3715 = vcvt.s32.f32 %v3708
        %v3716 = vmul.f32 %v3715, %v3713
        %v3717 = vxor.u32 %v3716, 2147483648
        %v3718 = vsel %vm3597, %v3717, %v3716
        %v3719 = vsub.s32 4, %v3695
        %v3720 = vsel %vm3597, %v3719, %v3695
        %v3721 = vsel %vm3596, %v487, %v3718
        %v3722 = vsel %vm3596, 0, %v3720
        %v3723 = vmul.f32 %v3721, %v3721
        %v3724 = vmul.f32 %v3723, -0.001358992
        %v3725 = vadd.f32 %v3724, 0.041655596
        %v3726 = vmul.f32 %v3723, %v3725
        %v3727 = vadd.f32 %v3726, -0.4999988
        %v3728 = vmul.f32 %v3723, %v3727
        %v3729 = vadd.f32 1.0, %v3728
        %v3730 = vmul.f32 %v3721, %v3721
        %v3731 = vmul.f32 %v3730, -0.00019511016
        %v3732 = vadd.f32 %v3731, 0.008332121
        %v3733 = vmul.f32 %v3730, %v3732
        %v3734 = vadd.f32 %v3733, -0.16666654
        %v3735 = vmul.f32 %v3730, %v3734
        %v3736 = vadd.f32 %v3735, 1.0
        %v3737 = vmul.f32 %v3736, %v3721
        %vm3738 = vweird.f32 %v487
        %v3739 = vadd.s32 %v3722, 3
        %v3740 = vand.u32 %v3739, 3
        %vm3741 = vcmp.lt.s32.totalorder %v3740, 2
        %vm3742 = vcmp.eq.s32.totalorder %v3740, 0
        %v3743 = vxor.u32 %v3737, 2147483648
        %v3744 = vsel %vm3742, %v3729, %v3743
        %vm3745 = vcmp.eq.s32.totalorder %v3740, 2
        %v3746 = vxor.u32 %v3729, 2147483648
        %v3747 = vsel %vm3745, %v3746, %v3737
        %v3748 = vsel %vm3741, %v3744, %v3747
        %v3749 = vsel %vm3738, nan, %v3748
        %v3750 = vand.u32 2147483647, %v488
        %vm3751 = vcmp.le.f32.partialorder %v3750, 0.7853982
        %vm3752 = vcmp.lt.s32.totalorder %v488, 0
        %v3753 = vand.u32 %v488, 2139095040
        %v3754 = vshrl.u32 %v3753, 23
        %v3755 = vsub.s32 %v3754, 127
        %v3756 = vand.u32 2147483647, %v488
        %v3757 = vand.u32 %v3756, 8388607
        %v3758 = vor.u32 %v3757, 8388608
        %v3759 = vsub.s32 0, %v3758
        %v3760 = vadd.s32 %v3755, 1
        %vm3761 = vcmp.gt.s32.totalorder %v3760, 0
        %v3762 = vsel %vm3761, %v3760, 0
        %v3763 = vshrl.u32 %v3762, 5
        %v3764 = vand.u32 %v3762, 31
        %v3765 = vsub.s32 32, %v3764
        %v3766 = vshrl.u32 683565275, %v3765
        %v3767 = vshll.u32 683565275, %v3764
        %v3768 = vshrl.u32 2475754826, %v3765
        %v3769 = vor.u32 %v3767, %v3768
        %v3770 = vshll.u32 2475754826, %v3764
        %v3771 = vshrl.u32 2131351028, %v3765
        %v3772 = vor.u32 %v3770, %v3771
        %v3773 = vshll.u32 2131351028, %v3764
        %v3774 = vshrl.u32 2102212464, %v3765
        %v3775 = vor.u32 %v3773, %v3774
        %v3776 = vshll.u32 2102212464, %v3764
        %v3777 = vshrl.u32 920167782, %v3765
        %v3778 = vor.u32 %v3776, %v3777
        %v3779 = vshll.u32 920167782, %v3764
        %v3780 = vshrl.u32 1326507024, %v3765
        %v3781 = vor.u32 %v3779, %v3780
        %vm3782 = vcmp.lt.s32.totalorder %v3763, 1
        %vm3783 = vcmp.lt.s32.totalorder %v3763, 2
        %vm3784 = vcmp.lt.s32.totalorder %v3763, 3
        %vm3785 = vcmp.lt.s32.totalorder %v3763, 4
        %v3786 = vsel %vm3782, %v3766, %v3769
        %v3787 = vsel %vm3785, %v3775, 2102212464
        %v3788 = vsel %vm3784, %v3772, %v3787
        %v3789 = vsel %vm3783, %v3786, %v3788
        %v3790 = vsel %vm3782, %v3769, %v3772
        %v3791 = vsel %vm3785, %v3778, 920167782
        %v3792 = vsel %vm3784, %v3775, %v3791
        %v3793 = vsel %vm3783, %v3790, %v3792
        %v3794 = vsel %vm3782, %v3772, %v3775
        %v3795 = vsel %vm3785, %v3781, 1326507024
        %v3796 = vsel %vm3784, %v3778, %v3795
        %v3797 = vsel %vm3783, %v3794, %v3796
        %v3798 = vshll.u32 %v3758, 8
        %v3799 = vand.u32 %v3798, 65535
        %v3800 = vshrl.u32 %v3798, 16
        %v3801 = vand.u32 %v3797, 65535
        %v3802 = vshrl.u32 %v3797, 16
        %v3803 = vmul.u32 %v3799, %v3801
        %v3804 = vmul.u32 %v3799, %v3802
        %v3805 = vmul.u32 %v3800, %v3801
        %v3806 = vmul.u32 %v3800, %v3802
        %v3807 = vshll.u32 %v3804, 16
        %v3808 = vshrl.u32 %v3804, 16
        %v3809 = vshll.u32 %v3805, 16
        %v3810 = vshrl.u32 %v3805, 16
        %vm3811 = vc.u32 %v3803, %v3807
        %v3812 = vsel %vm3811, 1, 0
        %v3813 = vadd.s32 %v3803, %v3807
        %v3814 = vadd.s32 %v3806, %v3812
        %vm3815 = vc.u32 %v3813, %v3809
        %v3816 = vsel %vm3815, 1, 0
        %v3817 = vadd.s32 %v3813, %v3809
        %v3818 = vadd.s32 %v3814, %v3816
        %v3819 = vadd.s32 %v3818, %v3808
        %v3820 = vadd.s32 %v3819, %v3810
        %v3821 = vand.u32 %v3798, 65535
        %v3822 = vshrl.u32 %v3798, 16
        %v3823 = vand.u32 %v3793, 65535
        %v3824 = vshrl.u32 %v3793, 16
        %v3825 = vmul.u32 %v3821, %v3823
        %v3826 = vmul.u32 %v3821, %v3824
        %v3827 = vmul.u32 %v3822, %v3823
        %v3828 = vmul.u32 %v3822, %v3824
        %v3829 = vshll.u32 %v3826, 16
        %v3830 = vshrl.u32 %v3826, 16
        %v3831 = vshll.u32 %v3827, 16
        %v3832 = vshrl.u32 %v3827, 16
        %vm3833 = vc.u32 %v3825, %v3829
        %v3834 = vsel %vm3833, 1, 0
        %v3835 = vadd.s32 %v3825, %v3829
        %v3836 = vadd.s32 %v3828, %v3834
        %vm3837 = vc.u32 %v3835, %v3831
        %v3838 = vsel %vm3837, 1, 0
        %v3839 = vadd.s32 %v3835, %v3831
        %v3840 = vadd.s32 %v3836, %v3838
        %v3841 = vadd.s32 %v3840, %v3830
        %v3842 = vadd.s32 %v3841, %v3832
        %v3843 = vmul.u32 %v3798, %v3789
        %v3844 = vadd.s32 %v3820, %v3839
        %vm3845 = vc.u32 %v3820, %v3839
        %v3846 = vadd.s32 %v3842, 1
        %v3847 = vsel %vm3845, %v3846, %v3842
        %v3848 = vadd.s32 %v3843, %v3847
        %v3849 = vadd.s32 %v3848, 536870912
        %v3850 = vshrl.u32 %v3849, 30
        %v3851 = vshll.u32 %v3850, 30
        %v3852 = vsub.s32 %v3848, %v3851
        %vm3853 = vcmp.lt.s32.totalorder %v3852, 0
        %v3854 = vsub.s32 0, %v3852
        %v3855 = vsel %vm3853, %v3854, %v3852
        %v3856 = vclz %v3855
        %v3857 = vsub.s32 %v3856, 2
        %vm3858 = vcmp.gt.s32.totalorder 0, %v3857
        %v3859 = vsel %vm3858, 0, %v3857
        %v3860 = vsub.s32 32, %v3859
        %v3861 = vshll.u32 %v3852, %v3859
        %v3862 = vshrl.u32 %v3844, %v3860
        %v3863 = vor.u32 %v3861, %v3862
        %v3864 = vsub.s32 4294967266, %v3859
        %v3865 = vadd.s32 %v3864, 127
        %v3866 = vshll.u32 %v3865, 23
        %v3867 = vor.u32 4788187, %v3866
        %v3868 = vand.u32 2147483647, %v3867
        %v3870 = vcvt.s32.f32 %v3863
        %v3871 = vmul.f32 %v3870, %v3868
        %v3872 = vxor.u32 %v3871, 2147483648
        %v3873 = vsel %vm3752, %v3872, %v3871
        %v3874 = vsub.s32 4, %v3850
        %v3875 = vsel %vm3752, %v3874, %v3850
        %v3876 = vsel %vm3751, %v488, %v3873
        %v3877 = vsel %vm3751, 0, %v3875
        %v3878 = vmul.f32 %v3876, %v3876
        %v3879 = vmul.f32 %v3878, -0.001358992
        %v3880 = vadd.f32 %v3879, 0.041655596
        %v3881 = vmul.f32 %v3878, %v3880
        %v3882 = vadd.f32 %v3881, -0.4999988
        %v3883 = vmul.f32 %v3878, %v3882
        %v3884 = vadd.f32 1.0, %v3883
        %v3885 = vmul.f32 %v3876, %v3876
        %v3886 = vmul.f32 %v3885, -0.00019511016
        %v3887 = vadd.f32 %v3886, 0.008332121
        %v3888 = vmul.f32 %v3885, %v3887
        %v3889 = vadd.f32 %v3888, -0.16666654
        %v3890 = vmul.f32 %v3885, %v3889
        %v3891 = vadd.f32 %v3890, 1.0
        %v3892 = vmul.f32 %v3891, %v3876
        %vm3893 = vweird.f32 %v488
        %v3894 = vadd.s32 %v3877, 3
        %v3895 = vand.u32 %v3894, 3
        %vm3896 = vcmp.lt.s32.totalorder %v3895, 2
        %vm3897 = vcmp.eq.s32.totalorder %v3895, 0
        %v3898 = vxor.u32 %v3892, 2147483648
        %v3899 = vsel %vm3897, %v3884, %v3898
        %vm3900 = vcmp.eq.s32.totalorder %v3895, 2
        %v3901 = vxor.u32 %v3884, 2147483648
        %v3902 = vsel %vm3900, %v3901, %v3892
        %v3903 = vsel %vm3896, %v3899, %v3902
        %v3904 = vsel %vm3893, nan, %v3903
        %v3905 = vand.u32 2147483647, %v489
        %vm3906 = vcmp.le.f32.partialorder %v3905, 0.7853982
        %vm3907 = vcmp.lt.s32.totalorder %v489, 0
        %v3908 = vand.u32 %v489, 2139095040
        %v3909 = vshrl.u32 %v3908, 23
        %v3910 = vsub.s32 %v3909, 127
        %v3911 = vand.u32 2147483647, %v489
        %v3912 = vand.u32 %v3911, 8388607
        %v3913 = vor.u32 %v3912, 8388608
        %v3914 = vsub.s32 0, %v3913
        %v3915 = vadd.s32 %v3910, 1
        %vm3916 = vcmp.gt.s32.totalorder %v3915, 0
        %v3917 = vsel %vm3916, %v3915, 0
        %v3918 = vshrl.u32 %v3917, 5
        %v3919 = vand.u32 %v3917, 31
        %v3920 = vsub.s32 32, %v3919
        %v3921 = vshrl.u32 683565275, %v3920
        %v3922 = vshll.u32 683565275, %v3919
        %v3923 = vshrl.u32 2475754826, %v3920
        %v3924 = vor.u32 %v3922, %v3923
        %v3925 = vshll.u32 2475754826, %v3919
        %v3926 = vshrl.u32 2131351028, %v3920
        %v3927 = vor.u32 %v3925, %v3926
        %v3928 = vshll.u32 2131351028, %v3919
        %v3929 = vshrl.u32 2102212464, %v3920
        %v3930 = vor.u32 %v3928, %v3929
        %v3931 = vshll.u32 2102212464, %v3919
        %v3932 = vshrl.u32 920167782, %v3920
        %v3933 = vor.u32 %v3931, %v3932
        %v3934 = vshll.u32 920167782, %v3919
        %v3935 = vshrl.u32 1326507024, %v3920
        %v3936 = vor.u32 %v3934, %v3935
        %vm3937 = vcmp.lt.s32.totalorder %v3918, 1
        %vm3938 = vcmp.lt.s32.totalorder %v3918, 2
        %vm3939 = vcmp.lt.s32.totalorder %v3918, 3
        %vm3940 = vcmp.lt.s32.totalorder %v3918, 4
        %v3941 = vsel %vm3937, %v3921, %v3924
        %v3942 = vsel %vm3940, %v3930, 2102212464
        %v3943 = vsel %vm3939, %v3927, %v3942
        %v3944 = vsel %vm3938, %v3941, %v3943
        %v3945 = vsel %vm3937, %v3924, %v3927
        %v3946 = vsel %vm3940, %v3933, 920167782
        %v3947 = vsel %vm3939, %v3930, %v3946
        %v3948 = vsel %vm3938, %v3945, %v3947
        %v3949 = vsel %vm3937, %v3927, %v3930
        %v3950 = vsel %vm3940, %v3936, 1326507024
        %v3951 = vsel %vm3939, %v3933, %v3950
        %v3952 = vsel %vm3938, %v3949, %v3951
        %v3953 = vshll.u32 %v3913, 8
        %v3954 = vand.u32 %v3953, 65535
        %v3955 = vshrl.u32 %v3953, 16
        %v3956 = vand.u32 %v3952, 65535
        %v3957 = vshrl.u32 %v3952, 16
        %v3958 = vmul.u32 %v3954, %v3956
        %v3959 = vmul.u32 %v3954, %v3957
        %v3960 = vmul.u32 %v3955, %v3956
        %v3961 = vmul.u32 %v3955, %v3957
        %v3962 = vshll.u32 %v3959, 16
        %v3963 = vshrl.u32 %v3959, 16
        %v3964 = vshll.u32 %v3960, 16
        %v3965 = vshrl.u32 %v3960, 16
        %vm3966 = vc.u32 %v3958, %v3962
        %v3967 = vsel %vm3966, 1, 0
        %v3968 = vadd.s32 %v3958, %v3962
        %v3969 = vadd.s32 %v3961, %v3967
        %vm3970 = vc.u32 %v3968, %v3964
        %v3971 = vsel %vm3970, 1, 0
        %v3972 = vadd.s32 %v3968, %v3964
        %v3973 = vadd.s32 %v3969, %v3971
        %v3974 = vadd.s32 %v3973, %v3963
        %v3975 = vadd.s32 %v3974, %v3965
        %v3976 = vand.u32 %v3953, 65535
        %v3977 = vshrl.u32 %v3953, 16
        %v3978 = vand.u32 %v3948, 65535
        %v3979 = vshrl.u32 %v3948, 16
        %v3980 = vmul.u32 %v3976, %v3978
        %v3981 = vmul.u32 %v3976, %v3979
        %v3982 = vmul.u32 %v3977, %v3978
        %v3983 = vmul.u32 %v3977, %v3979
        %v3984 = vshll.u32 %v3981, 16
        %v3985 = vshrl.u32 %v3981, 16
        %v3986 = vshll.u32 %v3982, 16
        %v3987 = vshrl.u32 %v3982, 16
        %vm3988 = vc.u32 %v3980, %v3984
        %v3989 = vsel %vm3988, 1, 0
        %v3990 = vadd.s32 %v3980, %v3984
        %v3991 = vadd.s32 %v3983, %v3989
        %vm3992 = vc.u32 %v3990, %v3986
        %v3993 = vsel %vm3992, 1, 0
        %v3994 = vadd.s32 %v3990, %v3986
        %v3995 = vadd.s32 %v3991, %v3993
        %v3996 = vadd.s32 %v3995, %v3985
        %v3997 = vadd.s32 %v3996, %v3987
        %v3998 = vmul.u32 %v3953, %v3944
        %v3999 = vadd.s32 %v3975, %v3994
        %vm4000 = vc.u32 %v3975, %v3994
        %v4001 = vadd.s32 %v3997, 1
        %v4002 = vsel %vm4000, %v4001, %v3997
        %v4003 = vadd.s32 %v3998, %v4002
        %v4004 = vadd.s32 %v4003, 536870912
        %v4005 = vshrl.u32 %v4004, 30
        %v4006 = vshll.u32 %v4005, 30
        %v4007 = vsub.s32 %v4003, %v4006
        %vm4008 = vcmp.lt.s32.totalorder %v4007, 0
        %v4009 = vsub.s32 0, %v4007
        %v4010 = vsel %vm4008, %v4009, %v4007
        %v4011 = vclz %v4010
        %v4012 = vsub.s32 %v4011, 2
        %vm4013 = vcmp.gt.s32.totalorder 0, %v4012
        %v4014 = vsel %vm4013, 0, %v4012
        %v4015 = vsub.s32 32, %v4014
        %v4016 = vshll.u32 %v4007, %v4014
        %v4017 = vshrl.u32 %v3999, %v4015
        %v4018 = vor.u32 %v4016, %v4017
        %v4019 = vsub.s32 4294967266, %v4014
        %v4020 = vadd.s32 %v4019, 127
        %v4021 = vshll.u32 %v4020, 23
        %v4022 = vor.u32 4788187, %v4021
        %v4023 = vand.u32 2147483647, %v4022
        %v4025 = vcvt.s32.f32 %v4018
        %v4026 = vmul.f32 %v4025, %v4023
        %v4027 = vxor.u32 %v4026, 2147483648
        %v4028 = vsel %vm3907, %v4027, %v4026
        %v4029 = vsub.s32 4, %v4005
        %v4030 = vsel %vm3907, %v4029, %v4005
        %v4031 = vsel %vm3906, %v489, %v4028
        %v4032 = vsel %vm3906, 0, %v4030
        %v4033 = vmul.f32 %v4031, %v4031
        %v4034 = vmul.f32 %v4033, -0.001358992
        %v4035 = vadd.f32 %v4034, 0.041655596
        %v4036 = vmul.f32 %v4033, %v4035
        %v4037 = vadd.f32 %v4036, -0.4999988
        %v4038 = vmul.f32 %v4033, %v4037
        %v4039 = vadd.f32 1.0, %v4038
        %v4040 = vmul.f32 %v4031, %v4031
        %v4041 = vmul.f32 %v4040, -0.00019511016
        %v4042 = vadd.f32 %v4041, 0.008332121
        %v4043 = vmul.f32 %v4040, %v4042
        %v4044 = vadd.f32 %v4043, -0.16666654
        %v4045 = vmul.f32 %v4040, %v4044
        %v4046 = vadd.f32 %v4045, 1.0
        %v4047 = vmul.f32 %v4046, %v4031
        %vm4048 = vweird.f32 %v489
        %v4049 = vadd.s32 %v4032, 3
        %v4050 = vand.u32 %v4049, 3
        %vm4051 = vcmp.lt.s32.totalorder %v4050, 2
        %vm4052 = vcmp.eq.s32.totalorder %v4050, 0
        %v4053 = vxor.u32 %v4047, 2147483648
        %v4054 = vsel %vm4052, %v4039, %v4053
        %vm4055 = vcmp.eq.s32.totalorder %v4050, 2
        %v4056 = vxor.u32 %v4039, 2147483648
        %v4057 = vsel %vm4055, %v4056, %v4047
        %v4058 = vsel %vm4051, %v4054, %v4057
        %v4059 = vsel %vm4048, nan, %v4058
        %v4060 = vand.u32 2147483647, %v490
        %vm4061 = vcmp.le.f32.partialorder %v4060, 0.7853982
        %vm4062 = vcmp.lt.s32.totalorder %v490, 0
        %v4063 = vand.u32 %v490, 2139095040
        %v4064 = vshrl.u32 %v4063, 23
        %v4065 = vsub.s32 %v4064, 127
        %v4066 = vand.u32 2147483647, %v490
        %v4067 = vand.u32 %v4066, 8388607
        %v4068 = vor.u32 %v4067, 8388608
        %v4069 = vsub.s32 0, %v4068
        %v4070 = vadd.s32 %v4065, 1
        %vm4071 = vcmp.gt.s32.totalorder %v4070, 0
        %v4072 = vsel %vm4071, %v4070, 0
        %v4073 = vshrl.u32 %v4072, 5
        %v4074 = vand.u32 %v4072, 31
        %v4075 = vsub.s32 32, %v4074
        %v4076 = vshrl.u32 683565275, %v4075
        %v4077 = vshll.u32 683565275, %v4074
        %v4078 = vshrl.u32 2475754826, %v4075
        %v4079 = vor.u32 %v4077, %v4078
        %v4080 = vshll.u32 2475754826, %v4074
        %v4081 = vshrl.u32 2131351028, %v4075
        %v4082 = vor.u32 %v4080, %v4081
        %v4083 = vshll.u32 2131351028, %v4074
        %v4084 = vshrl.u32 2102212464, %v4075
        %v4085 = vor.u32 %v4083, %v4084
        %v4086 = vshll.u32 2102212464, %v4074
        %v4087 = vshrl.u32 920167782, %v4075
        %v4088 = vor.u32 %v4086, %v4087
        %v4089 = vshll.u32 920167782, %v4074
        %v4090 = vshrl.u32 1326507024, %v4075
        %v4091 = vor.u32 %v4089, %v4090
        %vm4092 = vcmp.lt.s32.totalorder %v4073, 1
        %vm4093 = vcmp.lt.s32.totalorder %v4073, 2
        %vm4094 = vcmp.lt.s32.totalorder %v4073, 3
        %vm4095 = vcmp.lt.s32.totalorder %v4073, 4
        %v4096 = vsel %vm4092, %v4076, %v4079
        %v4097 = vsel %vm4095, %v4085, 2102212464
        %v4098 = vsel %vm4094, %v4082, %v4097
        %v4099 = vsel %vm4093, %v4096, %v4098
        %v4100 = vsel %vm4092, %v4079, %v4082
        %v4101 = vsel %vm4095, %v4088, 920167782
        %v4102 = vsel %vm4094, %v4085, %v4101
        %v4103 = vsel %vm4093, %v4100, %v4102
        %v4104 = vsel %vm4092, %v4082, %v4085
        %v4105 = vsel %vm4095, %v4091, 1326507024
        %v4106 = vsel %vm4094, %v4088, %v4105
        %v4107 = vsel %vm4093, %v4104, %v4106
        %v4108 = vshll.u32 %v4068, 8
        %v4109 = vand.u32 %v4108, 65535
        %v4110 = vshrl.u32 %v4108, 16
        %v4111 = vand.u32 %v4107, 65535
        %v4112 = vshrl.u32 %v4107, 16
        %v4113 = vmul.u32 %v4109, %v4111
        %v4114 = vmul.u32 %v4109, %v4112
        %v4115 = vmul.u32 %v4110, %v4111
        %v4116 = vmul.u32 %v4110, %v4112
        %v4117 = vshll.u32 %v4114, 16
        %v4118 = vshrl.u32 %v4114, 16
        %v4119 = vshll.u32 %v4115, 16
        %v4120 = vshrl.u32 %v4115, 16
        %vm4121 = vc.u32 %v4113, %v4117
        %v4122 = vsel %vm4121, 1, 0
        %v4123 = vadd.s32 %v4113, %v4117
        %v4124 = vadd.s32 %v4116, %v4122
        %vm4125 = vc.u32 %v4123, %v4119
        %v4126 = vsel %vm4125, 1, 0
        %v4127 = vadd.s32 %v4123, %v4119
        %v4128 = vadd.s32 %v4124, %v4126
        %v4129 = vadd.s32 %v4128, %v4118
        %v4130 = vadd.s32 %v4129, %v4120
        %v4131 = vand.u32 %v4108, 65535
        %v4132 = vshrl.u32 %v4108, 16
        %v4133 = vand.u32 %v4103, 65535
        %v4134 = vshrl.u32 %v4103, 16
        %v4135 = vmul.u32 %v4131, %v4133
        %v4136 = vmul.u32 %v4131, %v4134
        %v4137 = vmul.u32 %v4132, %v4133
        %v4138 = vmul.u32 %v4132, %v4134
        %v4139 = vshll.u32 %v4136, 16
        %v4140 = vshrl.u32 %v4136, 16
        %v4141 = vshll.u32 %v4137, 16
        %v4142 = vshrl.u32 %v4137, 16
        %vm4143 = vc.u32 %v4135, %v4139
        %v4144 = vsel %vm4143, 1, 0
        %v4145 = vadd.s32 %v4135, %v4139
        %v4146 = vadd.s32 %v4138, %v4144
        %vm4147 = vc.u32 %v4145, %v4141
        %v4148 = vsel %vm4147, 1, 0
        %v4149 = vadd.s32 %v4145, %v4141
        %v4150 = vadd.s32 %v4146, %v4148
        %v4151 = vadd.s32 %v4150, %v4140
        %v4152 = vadd.s32 %v4151, %v4142
        %v4153 = vmul.u32 %v4108, %v4099
        %v4154 = vadd.s32 %v4130, %v4149
        %vm4155 = vc.u32 %v4130, %v4149
        %v4156 = vadd.s32 %v4152, 1
        %v4157 = vsel %vm4155, %v4156, %v4152
        %v4158 = vadd.s32 %v4153, %v4157
        %v4159 = vadd.s32 %v4158, 536870912
        %v4160 = vshrl.u32 %v4159, 30
        %v4161 = vshll.u32 %v4160, 30
        %v4162 = vsub.s32 %v4158, %v4161
        %vm4163 = vcmp.lt.s32.totalorder %v4162, 0
        %v4164 = vsub.s32 0, %v4162
        %v4165 = vsel %vm4163, %v4164, %v4162
        %v4166 = vclz %v4165
        %v4167 = vsub.s32 %v4166, 2
        %vm4168 = vcmp.gt.s32.totalorder 0, %v4167
        %v4169 = vsel %vm4168, 0, %v4167
        %v4170 = vsub.s32 32, %v4169
        %v4171 = vshll.u32 %v4162, %v4169
        %v4172 = vshrl.u32 %v4154, %v4170
        %v4173 = vor.u32 %v4171, %v4172
        %v4174 = vsub.s32 4294967266, %v4169
        %v4175 = vadd.s32 %v4174, 127
        %v4176 = vshll.u32 %v4175, 23
        %v4177 = vor.u32 4788187, %v4176
        %v4178 = vand.u32 2147483647, %v4177
        %v4180 = vcvt.s32.f32 %v4173
        %v4181 = vmul.f32 %v4180, %v4178
        %v4182 = vxor.u32 %v4181, 2147483648
        %v4183 = vsel %vm4062, %v4182, %v4181
        %v4184 = vsub.s32 4, %v4160
        %v4185 = vsel %vm4062, %v4184, %v4160
        %v4186 = vsel %vm4061, %v490, %v4183
        %v4187 = vsel %vm4061, 0, %v4185
        %v4188 = vmul.f32 %v4186, %v4186
        %v4189 = vmul.f32 %v4188, -0.001358992
        %v4190 = vadd.f32 %v4189, 0.041655596
        %v4191 = vmul.f32 %v4188, %v4190
        %v4192 = vadd.f32 %v4191, -0.4999988
        %v4193 = vmul.f32 %v4188, %v4192
        %v4194 = vadd.f32 1.0, %v4193
        %v4195 = vmul.f32 %v4186, %v4186
        %v4196 = vmul.f32 %v4195, -0.00019511016
        %v4197 = vadd.f32 %v4196, 0.008332121
        %v4198 = vmul.f32 %v4195, %v4197
        %v4199 = vadd.f32 %v4198, -0.16666654
        %v4200 = vmul.f32 %v4195, %v4199
        %v4201 = vadd.f32 %v4200, 1.0
        %v4202 = vmul.f32 %v4201, %v4186
        %vm4203 = vweird.f32 %v490
        %v4204 = vadd.s32 %v4187, 3
        %v4205 = vand.u32 %v4204, 3
        %vm4206 = vcmp.lt.s32.totalorder %v4205, 2
        %vm4207 = vcmp.eq.s32.totalorder %v4205, 0
        %v4208 = vxor.u32 %v4202, 2147483648
        %v4209 = vsel %vm4207, %v4194, %v4208
        %vm4210 = vcmp.eq.s32.totalorder %v4205, 2
        %v4211 = vxor.u32 %v4194, 2147483648
        %v4212 = vsel %vm4210, %v4211, %v4202
        %v4213 = vsel %vm4206, %v4209, %v4212
        %v4214 = vsel %vm4203, nan, %v4213
        %v4215 = vand.u32 2147483647, %v491
        %vm4216 = vcmp.le.f32.partialorder %v4215, 0.7853982
        %vm4217 = vcmp.lt.s32.totalorder %v491, 0
        %v4218 = vand.u32 %v491, 2139095040
        %v4219 = vshrl.u32 %v4218, 23
        %v4220 = vsub.s32 %v4219, 127
        %v4221 = vand.u32 2147483647, %v491
        %v4222 = vand.u32 %v4221, 8388607
        %v4223 = vor.u32 %v4222, 8388608
        %v4224 = vsub.s32 0, %v4223
        %v4225 = vadd.s32 %v4220, 1
        %vm4226 = vcmp.gt.s32.totalorder %v4225, 0
        %v4227 = vsel %vm4226, %v4225, 0
        %v4228 = vshrl.u32 %v4227, 5
        %v4229 = vand.u32 %v4227, 31
        %v4230 = vsub.s32 32, %v4229
        %v4231 = vshrl.u32 683565275, %v4230
        %v4232 = vshll.u32 683565275, %v4229
        %v4233 = vshrl.u32 2475754826, %v4230
        %v4234 = vor.u32 %v4232, %v4233
        %v4235 = vshll.u32 2475754826, %v4229
        %v4236 = vshrl.u32 2131351028, %v4230
        %v4237 = vor.u32 %v4235, %v4236
        %v4238 = vshll.u32 2131351028, %v4229
        %v4239 = vshrl.u32 2102212464, %v4230
        %v4240 = vor.u32 %v4238, %v4239
        %v4241 = vshll.u32 2102212464, %v4229
        %v4242 = vshrl.u32 920167782, %v4230
        %v4243 = vor.u32 %v4241, %v4242
        %v4244 = vshll.u32 920167782, %v4229
        %v4245 = vshrl.u32 1326507024, %v4230
        %v4246 = vor.u32 %v4244, %v4245
        %vm4247 = vcmp.lt.s32.totalorder %v4228, 1
        %vm4248 = vcmp.lt.s32.totalorder %v4228, 2
        %vm4249 = vcmp.lt.s32.totalorder %v4228, 3
        %vm4250 = vcmp.lt.s32.totalorder %v4228, 4
        %v4251 = vsel %vm4247, %v4231, %v4234
        %v4252 = vsel %vm4250, %v4240, 2102212464
        %v4253 = vsel %vm4249, %v4237, %v4252
        %v4254 = vsel %vm4248, %v4251, %v4253
        %v4255 = vsel %vm4247, %v4234, %v4237
        %v4256 = vsel %vm4250, %v4243, 920167782
        %v4257 = vsel %vm4249, %v4240, %v4256
        %v4258 = vsel %vm4248, %v4255, %v4257
        %v4259 = vsel %vm4247, %v4237, %v4240
        %v4260 = vsel %vm4250, %v4246, 1326507024
        %v4261 = vsel %vm4249, %v4243, %v4260
        %v4262 = vsel %vm4248, %v4259, %v4261
        %v4263 = vshll.u32 %v4223, 8
        %v4264 = vand.u32 %v4263, 65535
        %v4265 = vshrl.u32 %v4263, 16
        %v4266 = vand.u32 %v4262, 65535
        %v4267 = vshrl.u32 %v4262, 16
        %v4268 = vmul.u32 %v4264, %v4266
        %v4269 = vmul.u32 %v4264, %v4267
        %v4270 = vmul.u32 %v4265, %v4266
        %v4271 = vmul.u32 %v4265, %v4267
        %v4272 = vshll.u32 %v4269, 16
        %v4273 = vshrl.u32 %v4269, 16
        %v4274 = vshll.u32 %v4270, 16
        %v4275 = vshrl.u32 %v4270, 16
        %vm4276 = vc.u32 %v4268, %v4272
        %v4277 = vsel %vm4276, 1, 0
        %v4278 = vadd.s32 %v4268, %v4272
        %v4279 = vadd.s32 %v4271, %v4277
        %vm4280 = vc.u32 %v4278, %v4274
        %v4281 = vsel %vm4280, 1, 0
        %v4282 = vadd.s32 %v4278, %v4274
        %v4283 = vadd.s32 %v4279, %v4281
        %v4284 = vadd.s32 %v4283, %v4273
        %v4285 = vadd.s32 %v4284, %v4275
        %v4286 = vand.u32 %v4263, 65535
        %v4287 = vshrl.u32 %v4263, 16
        %v4288 = vand.u32 %v4258, 65535
        %v4289 = vshrl.u32 %v4258, 16
        %v4290 = vmul.u32 %v4286, %v4288
        %v4291 = vmul.u32 %v4286, %v4289
        %v4292 = vmul.u32 %v4287, %v4288
        %v4293 = vmul.u32 %v4287, %v4289
        %v4294 = vshll.u32 %v4291, 16
        %v4295 = vshrl.u32 %v4291, 16
        %v4296 = vshll.u32 %v4292, 16
        %v4297 = vshrl.u32 %v4292, 16
        %vm4298 = vc.u32 %v4290, %v4294
        %v4299 = vsel %vm4298, 1, 0
        %v4300 = vadd.s32 %v4290, %v4294
        %v4301 = vadd.s32 %v4293, %v4299
        %vm4302 = vc.u32 %v4300, %v4296
        %v4303 = vsel %vm4302, 1, 0
        %v4304 = vadd.s32 %v4300, %v4296
        %v4305 = vadd.s32 %v4301, %v4303
        %v4306 = vadd.s32 %v4305, %v4295
        %v4307 = vadd.s32 %v4306, %v4297
        %v4308 = vmul.u32 %v4263, %v4254
        %v4309 = vadd.s32 %v4285, %v4304
        %vm4310 = vc.u32 %v4285, %v4304
        %v4311 = vadd.s32 %v4307, 1
        %v4312 = vsel %vm4310, %v4311, %v4307
        %v4313 = vadd.s32 %v4308, %v4312
        %v4314 = vadd.s32 %v4313, 536870912
        %v4315 = vshrl.u32 %v4314, 30
        %v4316 = vshll.u32 %v4315, 30
        %v4317 = vsub.s32 %v4313, %v4316
        %vm4318 = vcmp.lt.s32.totalorder %v4317, 0
        %v4319 = vsub.s32 0, %v4317
        %v4320 = vsel %vm4318, %v4319, %v4317
        %v4321 = vclz %v4320
        %v4322 = vsub.s32 %v4321, 2
        %vm4323 = vcmp.gt.s32.totalorder 0, %v4322
        %v4324 = vsel %vm4323, 0, %v4322
        %v4325 = vsub.s32 32, %v4324
        %v4326 = vshll.u32 %v4317, %v4324
        %v4327 = vshrl.u32 %v4309, %v4325
        %v4328 = vor.u32 %v4326, %v4327
        %v4329 = vsub.s32 4294967266, %v4324
        %v4330 = vadd.s32 %v4329, 127
        %v4331 = vshll.u32 %v4330, 23
        %v4332 = vor.u32 4788187, %v4331
        %v4333 = vand.u32 2147483647, %v4332
        %v4335 = vcvt.s32.f32 %v4328
        %v4336 = vmul.f32 %v4335, %v4333
        %v4337 = vxor.u32 %v4336, 2147483648
        %v4338 = vsel %vm4217, %v4337, %v4336
        %v4339 = vsub.s32 4, %v4315
        %v4340 = vsel %vm4217, %v4339, %v4315
        %v4341 = vsel %vm4216, %v491, %v4338
        %v4342 = vsel %vm4216, 0, %v4340
        %v4343 = vmul.f32 %v4341, %v4341
        %v4344 = vmul.f32 %v4343, -0.001358992
        %v4345 = vadd.f32 %v4344, 0.041655596
        %v4346 = vmul.f32 %v4343, %v4345
        %v4347 = vadd.f32 %v4346, -0.4999988
        %v4348 = vmul.f32 %v4343, %v4347
        %v4349 = vadd.f32 1.0, %v4348
        %v4350 = vmul.f32 %v4341, %v4341
        %v4351 = vmul.f32 %v4350, -0.00019511016
        %v4352 = vadd.f32 %v4351, 0.008332121
        %v4353 = vmul.f32 %v4350, %v4352
        %v4354 = vadd.f32 %v4353, -0.16666654
        %v4355 = vmul.f32 %v4350, %v4354
        %v4356 = vadd.f32 %v4355, 1.0
        %v4357 = vmul.f32 %v4356, %v4341
        %vm4358 = vweird.f32 %v491
        %v4359 = vadd.s32 %v4342, 3
        %v4360 = vand.u32 %v4359, 3
        %vm4361 = vcmp.lt.s32.totalorder %v4360, 2
        %vm4362 = vcmp.eq.s32.totalorder %v4360, 0
        %v4363 = vxor.u32 %v4357, 2147483648
        %v4364 = vsel %vm4362, %v4349, %v4363
        %vm4365 = vcmp.eq.s32.totalorder %v4360, 2
        %v4366 = vxor.u32 %v4349, 2147483648
        %v4367 = vsel %vm4365, %v4366, %v4357
        %v4368 = vsel %vm4361, %v4364, %v4367
        %v4369 = vsel %vm4358, nan, %v4368
        %v4370 = vand.u32 2147483647, %v492
        %vm4371 = vcmp.le.f32.partialorder %v4370, 0.7853982
        %vm4372 = vcmp.lt.s32.totalorder %v492, 0
        %v4373 = vand.u32 %v492, 2139095040
        %v4374 = vshrl.u32 %v4373, 23
        %v4375 = vsub.s32 %v4374, 127
        %v4376 = vand.u32 2147483647, %v492
        %v4377 = vand.u32 %v4376, 8388607
        %v4378 = vor.u32 %v4377, 8388608
        %v4379 = vsub.s32 0, %v4378
        %v4380 = vadd.s32 %v4375, 1
        %vm4381 = vcmp.gt.s32.totalorder %v4380, 0
        %v4382 = vsel %vm4381, %v4380, 0
        %v4383 = vshrl.u32 %v4382, 5
        %v4384 = vand.u32 %v4382, 31
        %v4385 = vsub.s32 32, %v4384
        %v4386 = vshrl.u32 683565275, %v4385
        %v4387 = vshll.u32 683565275, %v4384
        %v4388 = vshrl.u32 2475754826, %v4385
        %v4389 = vor.u32 %v4387, %v4388
        %v4390 = vshll.u32 2475754826, %v4384
        %v4391 = vshrl.u32 2131351028, %v4385
        %v4392 = vor.u32 %v4390, %v4391
        %v4393 = vshll.u32 2131351028, %v4384
        %v4394 = vshrl.u32 2102212464, %v4385
        %v4395 = vor.u32 %v4393, %v4394
        %v4396 = vshll.u32 2102212464, %v4384
        %v4397 = vshrl.u32 920167782, %v4385
        %v4398 = vor.u32 %v4396, %v4397
        %v4399 = vshll.u32 920167782, %v4384
        %v4400 = vshrl.u32 1326507024, %v4385
        %v4401 = vor.u32 %v4399, %v4400
        %vm4402 = vcmp.lt.s32.totalorder %v4383, 1
        %vm4403 = vcmp.lt.s32.totalorder %v4383, 2
        %vm4404 = vcmp.lt.s32.totalorder %v4383, 3
        %vm4405 = vcmp.lt.s32.totalorder %v4383, 4
        %v4406 = vsel %vm4402, %v4386, %v4389
        %v4407 = vsel %vm4405, %v4395, 2102212464
        %v4408 = vsel %vm4404, %v4392, %v4407
        %v4409 = vsel %vm4403, %v4406, %v4408
        %v4410 = vsel %vm4402, %v4389, %v4392
        %v4411 = vsel %vm4405, %v4398, 920167782
        %v4412 = vsel %vm4404, %v4395, %v4411
        %v4413 = vsel %vm4403, %v4410, %v4412
        %v4414 = vsel %vm4402, %v4392, %v4395
        %v4415 = vsel %vm4405, %v4401, 1326507024
        %v4416 = vsel %vm4404, %v4398, %v4415
        %v4417 = vsel %vm4403, %v4414, %v4416
        %v4418 = vshll.u32 %v4378, 8
        %v4419 = vand.u32 %v4418, 65535
        %v4420 = vshrl.u32 %v4418, 16
        %v4421 = vand.u32 %v4417, 65535
        %v4422 = vshrl.u32 %v4417, 16
        %v4423 = vmul.u32 %v4419, %v4421
        %v4424 = vmul.u32 %v4419, %v4422
        %v4425 = vmul.u32 %v4420, %v4421
        %v4426 = vmul.u32 %v4420, %v4422
        %v4427 = vshll.u32 %v4424, 16
        %v4428 = vshrl.u32 %v4424, 16
        %v4429 = vshll.u32 %v4425, 16
        %v4430 = vshrl.u32 %v4425, 16
        %vm4431 = vc.u32 %v4423, %v4427
        %v4432 = vsel %vm4431, 1, 0
        %v4433 = vadd.s32 %v4423, %v4427
        %v4434 = vadd.s32 %v4426, %v4432
        %vm4435 = vc.u32 %v4433, %v4429
        %v4436 = vsel %vm4435, 1, 0
        %v4437 = vadd.s32 %v4433, %v4429
        %v4438 = vadd.s32 %v4434, %v4436
        %v4439 = vadd.s32 %v4438, %v4428
        %v4440 = vadd.s32 %v4439, %v4430
        %v4441 = vand.u32 %v4418, 65535
        %v4442 = vshrl.u32 %v4418, 16
        %v4443 = vand.u32 %v4413, 65535
        %v4444 = vshrl.u32 %v4413, 16
        %v4445 = vmul.u32 %v4441, %v4443
        %v4446 = vmul.u32 %v4441, %v4444
        %v4447 = vmul.u32 %v4442, %v4443
        %v4448 = vmul.u32 %v4442, %v4444
        %v4449 = vshll.u32 %v4446, 16
        %v4450 = vshrl.u32 %v4446, 16
        %v4451 = vshll.u32 %v4447, 16
        %v4452 = vshrl.u32 %v4447, 16
        %vm4453 = vc.u32 %v4445, %v4449
        %v4454 = vsel %vm4453, 1, 0
        %v4455 = vadd.s32 %v4445, %v4449
        %v4456 = vadd.s32 %v4448, %v4454
        %vm4457 = vc.u32 %v4455, %v4451
        %v4458 = vsel %vm4457, 1, 0
        %v4459 = vadd.s32 %v4455, %v4451
        %v4460 = vadd.s32 %v4456, %v4458
        %v4461 = vadd.s32 %v4460, %v4450
        %v4462 = vadd.s32 %v4461, %v4452
        %v4463 = vmul.u32 %v4418, %v4409
        %v4464 = vadd.s32 %v4440, %v4459
        %vm4465 = vc.u32 %v4440, %v4459
        %v4466 = vadd.s32 %v4462, 1
        %v4467 = vsel %vm4465, %v4466, %v4462
        %v4468 = vadd.s32 %v4463, %v4467
        %v4469 = vadd.s32 %v4468, 536870912
        %v4470 = vshrl.u32 %v4469, 30
        %v4471 = vshll.u32 %v4470, 30
        %v4472 = vsub.s32 %v4468, %v4471
        %vm4473 = vcmp.lt.s32.totalorder %v4472, 0
        %v4474 = vsub.s32 0, %v4472
        %v4475 = vsel %vm4473, %v4474, %v4472
        %v4476 = vclz %v4475
        %v4477 = vsub.s32 %v4476, 2
        %vm4478 = vcmp.gt.s32.totalorder 0, %v4477
        %v4479 = vsel %vm4478, 0, %v4477
        %v4480 = vsub.s32 32, %v4479
        %v4481 = vshll.u32 %v4472, %v4479
        %v4482 = vshrl.u32 %v4464, %v4480
        %v4483 = vor.u32 %v4481, %v4482
        %v4484 = vsub.s32 4294967266, %v4479
        %v4485 = vadd.s32 %v4484, 127
        %v4486 = vshll.u32 %v4485, 23
        %v4487 = vor.u32 4788187, %v4486
        %v4488 = vand.u32 2147483647, %v4487
        %v4490 = vcvt.s32.f32 %v4483
        %v4491 = vmul.f32 %v4490, %v4488
        %v4492 = vxor.u32 %v4491, 2147483648
        %v4493 = vsel %vm4372, %v4492, %v4491
        %v4494 = vsub.s32 4, %v4470
        %v4495 = vsel %vm4372, %v4494, %v4470
        %v4496 = vsel %vm4371, %v492, %v4493
        %v4497 = vsel %vm4371, 0, %v4495
        %v4498 = vmul.f32 %v4496, %v4496
        %v4499 = vmul.f32 %v4498, -0.001358992
        %v4500 = vadd.f32 %v4499, 0.041655596
        %v4501 = vmul.f32 %v4498, %v4500
        %v4502 = vadd.f32 %v4501, -0.4999988
        %v4503 = vmul.f32 %v4498, %v4502
        %v4504 = vadd.f32 1.0, %v4503
        %v4505 = vmul.f32 %v4496, %v4496
        %v4506 = vmul.f32 %v4505, -0.00019511016
        %v4507 = vadd.f32 %v4506, 0.008332121
        %v4508 = vmul.f32 %v4505, %v4507
        %v4509 = vadd.f32 %v4508, -0.16666654
        %v4510 = vmul.f32 %v4505, %v4509
        %v4511 = vadd.f32 %v4510, 1.0
        %v4512 = vmul.f32 %v4511, %v4496
        %vm4513 = vweird.f32 %v492
        %v4514 = vadd.s32 %v4497, 3
        %v4515 = vand.u32 %v4514, 3
        %vm4516 = vcmp.lt.s32.totalorder %v4515, 2
        %vm4517 = vcmp.eq.s32.totalorder %v4515, 0
        %v4518 = vxor.u32 %v4512, 2147483648
        %v4519 = vsel %vm4517, %v4504, %v4518
        %vm4520 = vcmp.eq.s32.totalorder %v4515, 2
        %v4521 = vxor.u32 %v4504, 2147483648
        %v4522 = vsel %vm4520, %v4521, %v4512
        %v4523 = vsel %vm4516, %v4519, %v4522
        %v4524 = vsel %vm4513, nan, %v4523
        %v4525 = vand.u32 2147483647, %v493
        %vm4526 = vcmp.le.f32.partialorder %v4525, 0.7853982
        %vm4527 = vcmp.lt.s32.totalorder %v493, 0
        %v4528 = vand.u32 %v493, 2139095040
        %v4529 = vshrl.u32 %v4528, 23
        %v4530 = vsub.s32 %v4529, 127
        %v4531 = vand.u32 2147483647, %v493
        %v4532 = vand.u32 %v4531, 8388607
        %v4533 = vor.u32 %v4532, 8388608
        %v4534 = vsub.s32 0, %v4533
        %v4535 = vadd.s32 %v4530, 1
        %vm4536 = vcmp.gt.s32.totalorder %v4535, 0
        %v4537 = vsel %vm4536, %v4535, 0
        %v4538 = vshrl.u32 %v4537, 5
        %v4539 = vand.u32 %v4537, 31
        %v4540 = vsub.s32 32, %v4539
        %v4541 = vshrl.u32 683565275, %v4540
        %v4542 = vshll.u32 683565275, %v4539
        %v4543 = vshrl.u32 2475754826, %v4540
        %v4544 = vor.u32 %v4542, %v4543
        %v4545 = vshll.u32 2475754826, %v4539
        %v4546 = vshrl.u32 2131351028, %v4540
        %v4547 = vor.u32 %v4545, %v4546
        %v4548 = vshll.u32 2131351028, %v4539
        %v4549 = vshrl.u32 2102212464, %v4540
        %v4550 = vor.u32 %v4548, %v4549
        %v4551 = vshll.u32 2102212464, %v4539
        %v4552 = vshrl.u32 920167782, %v4540
        %v4553 = vor.u32 %v4551, %v4552
        %v4554 = vshll.u32 920167782, %v4539
        %v4555 = vshrl.u32 1326507024, %v4540
        %v4556 = vor.u32 %v4554, %v4555
        %vm4557 = vcmp.lt.s32.totalorder %v4538, 1
        %vm4558 = vcmp.lt.s32.totalorder %v4538, 2
        %vm4559 = vcmp.lt.s32.totalorder %v4538, 3
        %vm4560 = vcmp.lt.s32.totalorder %v4538, 4
        %v4561 = vsel %vm4557, %v4541, %v4544
        %v4562 = vsel %vm4560, %v4550, 2102212464
        %v4563 = vsel %vm4559, %v4547, %v4562
        %v4564 = vsel %vm4558, %v4561, %v4563
        %v4565 = vsel %vm4557, %v4544, %v4547
        %v4566 = vsel %vm4560, %v4553, 920167782
        %v4567 = vsel %vm4559, %v4550, %v4566
        %v4568 = vsel %vm4558, %v4565, %v4567
        %v4569 = vsel %vm4557, %v4547, %v4550
        %v4570 = vsel %vm4560, %v4556, 1326507024
        %v4571 = vsel %vm4559, %v4553, %v4570
        %v4572 = vsel %vm4558, %v4569, %v4571
        %v4573 = vshll.u32 %v4533, 8
        %v4574 = vand.u32 %v4573, 65535
        %v4575 = vshrl.u32 %v4573, 16
        %v4576 = vand.u32 %v4572, 65535
        %v4577 = vshrl.u32 %v4572, 16
        %v4578 = vmul.u32 %v4574, %v4576
        %v4579 = vmul.u32 %v4574, %v4577
        %v4580 = vmul.u32 %v4575, %v4576
        %v4581 = vmul.u32 %v4575, %v4577
        %v4582 = vshll.u32 %v4579, 16
        %v4583 = vshrl.u32 %v4579, 16
        %v4584 = vshll.u32 %v4580, 16
        %v4585 = vshrl.u32 %v4580, 16
        %vm4586 = vc.u32 %v4578, %v4582
        %v4587 = vsel %vm4586, 1, 0
        %v4588 = vadd.s32 %v4578, %v4582
        %v4589 = vadd.s32 %v4581, %v4587
        %vm4590 = vc.u32 %v4588, %v4584
        %v4591 = vsel %vm4590, 1, 0
        %v4592 = vadd.s32 %v4588, %v4584
        %v4593 = vadd.s32 %v4589, %v4591
        %v4594 = vadd.s32 %v4593, %v4583
        %v4595 = vadd.s32 %v4594, %v4585
        %v4596 = vand.u32 %v4573, 65535
        %v4597 = vshrl.u32 %v4573, 16
        %v4598 = vand.u32 %v4568, 65535
        %v4599 = vshrl.u32 %v4568, 16
        %v4600 = vmul.u32 %v4596, %v4598
        %v4601 = vmul.u32 %v4596, %v4599
        %v4602 = vmul.u32 %v4597, %v4598
        %v4603 = vmul.u32 %v4597, %v4599
        %v4604 = vshll.u32 %v4601, 16
        %v4605 = vshrl.u32 %v4601, 16
        %v4606 = vshll.u32 %v4602, 16
        %v4607 = vshrl.u32 %v4602, 16
        %vm4608 = vc.u32 %v4600, %v4604
        %v4609 = vsel %vm4608, 1, 0
        %v4610 = vadd.s32 %v4600, %v4604
        %v4611 = vadd.s32 %v4603, %v4609
        %vm4612 = vc.u32 %v4610, %v4606
        %v4613 = vsel %vm4612, 1, 0
        %v4614 = vadd.s32 %v4610, %v4606
        %v4615 = vadd.s32 %v4611, %v4613
        %v4616 = vadd.s32 %v4615, %v4605
        %v4617 = vadd.s32 %v4616, %v4607
        %v4618 = vmul.u32 %v4573, %v4564
        %v4619 = vadd.s32 %v4595, %v4614
        %vm4620 = vc.u32 %v4595, %v4614
        %v4621 = vadd.s32 %v4617, 1
        %v4622 = vsel %vm4620, %v4621, %v4617
        %v4623 = vadd.s32 %v4618, %v4622
        %v4624 = vadd.s32 %v4623, 536870912
        %v4625 = vshrl.u32 %v4624, 30
        %v4626 = vshll.u32 %v4625, 30
        %v4627 = vsub.s32 %v4623, %v4626
        %vm4628 = vcmp.lt.s32.totalorder %v4627, 0
        %v4629 = vsub.s32 0, %v4627
        %v4630 = vsel %vm4628, %v4629, %v4627
        %v4631 = vclz %v4630
        %v4632 = vsub.s32 %v4631, 2
        %vm4633 = vcmp.gt.s32.totalorder 0, %v4632
        %v4634 = vsel %vm4633, 0, %v4632
        %v4635 = vsub.s32 32, %v4634
        %v4636 = vshll.u32 %v4627, %v4634
        %v4637 = vshrl.u32 %v4619, %v4635
        %v4638 = vor.u32 %v4636, %v4637
        %v4639 = vsub.s32 4294967266, %v4634
        %v4640 = vadd.s32 %v4639, 127
        %v4641 = vshll.u32 %v4640, 23
        %v4642 = vor.u32 4788187, %v4641
        %v4643 = vand.u32 2147483647, %v4642
        %v4645 = vcvt.s32.f32 %v4638
        %v4646 = vmul.f32 %v4645, %v4643
        %v4647 = vxor.u32 %v4646, 2147483648
        %v4648 = vsel %vm4527, %v4647, %v4646
        %v4649 = vsub.s32 4, %v4625
        %v4650 = vsel %vm4527, %v4649, %v4625
        %v4651 = vsel %vm4526, %v493, %v4648
        %v4652 = vsel %vm4526, 0, %v4650
        %v4653 = vmul.f32 %v4651, %v4651
        %v4654 = vmul.f32 %v4653, -0.001358992
        %v4655 = vadd.f32 %v4654, 0.041655596
        %v4656 = vmul.f32 %v4653, %v4655
        %v4657 = vadd.f32 %v4656, -0.4999988
        %v4658 = vmul.f32 %v4653, %v4657
        %v4659 = vadd.f32 1.0, %v4658
        %v4660 = vmul.f32 %v4651, %v4651
        %v4661 = vmul.f32 %v4660, -0.00019511016
        %v4662 = vadd.f32 %v4661, 0.008332121
        %v4663 = vmul.f32 %v4660, %v4662
        %v4664 = vadd.f32 %v4663, -0.16666654
        %v4665 = vmul.f32 %v4660, %v4664
        %v4666 = vadd.f32 %v4665, 1.0
        %v4667 = vmul.f32 %v4666, %v4651
        %vm4668 = vweird.f32 %v493
        %v4669 = vadd.s32 %v4652, 3
        %v4670 = vand.u32 %v4669, 3
        %vm4671 = vcmp.lt.s32.totalorder %v4670, 2
        %vm4672 = vcmp.eq.s32.totalorder %v4670, 0
        %v4673 = vxor.u32 %v4667, 2147483648
        %v4674 = vsel %vm4672, %v4659, %v4673
        %vm4675 = vcmp.eq.s32.totalorder %v4670, 2
        %v4676 = vxor.u32 %v4659, 2147483648
        %v4677 = vsel %vm4675, %v4676, %v4667
        %v4678 = vsel %vm4671, %v4674, %v4677
        %v4679 = vsel %vm4668, nan, %v4678
        %v4680 = vand.u32 2147483647, %v494
        %vm4681 = vcmp.le.f32.partialorder %v4680, 0.7853982
        %vm4682 = vcmp.lt.s32.totalorder %v494, 0
        %v4683 = vand.u32 %v494, 2139095040
        %v4684 = vshrl.u32 %v4683, 23
        %v4685 = vsub.s32 %v4684, 127
        %v4686 = vand.u32 2147483647, %v494
        %v4687 = vand.u32 %v4686, 8388607
        %v4688 = vor.u32 %v4687, 8388608
        %v4689 = vsub.s32 0, %v4688
        %v4690 = vadd.s32 %v4685, 1
        %vm4691 = vcmp.gt.s32.totalorder %v4690, 0
        %v4692 = vsel %vm4691, %v4690, 0
        %v4693 = vshrl.u32 %v4692, 5
        %v4694 = vand.u32 %v4692, 31
        %v4695 = vsub.s32 32, %v4694
        %v4696 = vshrl.u32 683565275, %v4695
        %v4697 = vshll.u32 683565275, %v4694
        %v4698 = vshrl.u32 2475754826, %v4695
        %v4699 = vor.u32 %v4697, %v4698
        %v4700 = vshll.u32 2475754826, %v4694
        %v4701 = vshrl.u32 2131351028, %v4695
        %v4702 = vor.u32 %v4700, %v4701
        %v4703 = vshll.u32 2131351028, %v4694
        %v4704 = vshrl.u32 2102212464, %v4695
        %v4705 = vor.u32 %v4703, %v4704
        %v4706 = vshll.u32 2102212464, %v4694
        %v4707 = vshrl.u32 920167782, %v4695
        %v4708 = vor.u32 %v4706, %v4707
        %v4709 = vshll.u32 920167782, %v4694
        %v4710 = vshrl.u32 1326507024, %v4695
        %v4711 = vor.u32 %v4709, %v4710
        %vm4712 = vcmp.lt.s32.totalorder %v4693, 1
        %vm4713 = vcmp.lt.s32.totalorder %v4693, 2
        %vm4714 = vcmp.lt.s32.totalorder %v4693, 3
        %vm4715 = vcmp.lt.s32.totalorder %v4693, 4
        %v4716 = vsel %vm4712, %v4696, %v4699
        %v4717 = vsel %vm4715, %v4705, 2102212464
        %v4718 = vsel %vm4714, %v4702, %v4717
        %v4719 = vsel %vm4713, %v4716, %v4718
        %v4720 = vsel %vm4712, %v4699, %v4702
        %v4721 = vsel %vm4715, %v4708, 920167782
        %v4722 = vsel %vm4714, %v4705, %v4721
        %v4723 = vsel %vm4713, %v4720, %v4722
        %v4724 = vsel %vm4712, %v4702, %v4705
        %v4725 = vsel %vm4715, %v4711, 1326507024
        %v4726 = vsel %vm4714, %v4708, %v4725
        %v4727 = vsel %vm4713, %v4724, %v4726
        %v4728 = vshll.u32 %v4688, 8
        %v4729 = vand.u32 %v4728, 65535
        %v4730 = vshrl.u32 %v4728, 16
        %v4731 = vand.u32 %v4727, 65535
        %v4732 = vshrl.u32 %v4727, 16
        %v4733 = vmul.u32 %v4729, %v4731
        %v4734 = vmul.u32 %v4729, %v4732
        %v4735 = vmul.u32 %v4730, %v4731
        %v4736 = vmul.u32 %v4730, %v4732
        %v4737 = vshll.u32 %v4734, 16
        %v4738 = vshrl.u32 %v4734, 16
        %v4739 = vshll.u32 %v4735, 16
        %v4740 = vshrl.u32 %v4735, 16
        %vm4741 = vc.u32 %v4733, %v4737
        %v4742 = vsel %vm4741, 1, 0
        %v4743 = vadd.s32 %v4733, %v4737
        %v4744 = vadd.s32 %v4736, %v4742
        %vm4745 = vc.u32 %v4743, %v4739
        %v4746 = vsel %vm4745, 1, 0
        %v4747 = vadd.s32 %v4743, %v4739
        %v4748 = vadd.s32 %v4744, %v4746
        %v4749 = vadd.s32 %v4748, %v4738
        %v4750 = vadd.s32 %v4749, %v4740
        %v4751 = vand.u32 %v4728, 65535
        %v4752 = vshrl.u32 %v4728, 16
        %v4753 = vand.u32 %v4723, 65535
        %v4754 = vshrl.u32 %v4723, 16
        %v4755 = vmul.u32 %v4751, %v4753
        %v4756 = vmul.u32 %v4751, %v4754
        %v4757 = vmul.u32 %v4752, %v4753
        %v4758 = vmul.u32 %v4752, %v4754
        %v4759 = vshll.u32 %v4756, 16
        %v4760 = vshrl.u32 %v4756, 16
        %v4761 = vshll.u32 %v4757, 16
        %v4762 = vshrl.u32 %v4757, 16
        %vm4763 = vc.u32 %v4755, %v4759
        %v4764 = vsel %vm4763, 1, 0
        %v4765 = vadd.s32 %v4755, %v4759
        %v4766 = vadd.s32 %v4758, %v4764
        %vm4767 = vc.u32 %v4765, %v4761
        %v4768 = vsel %vm4767, 1, 0
        %v4769 = vadd.s32 %v4765, %v4761
        %v4770 = vadd.s32 %v4766, %v4768
        %v4771 = vadd.s32 %v4770, %v4760
        %v4772 = vadd.s32 %v4771, %v4762
        %v4773 = vmul.u32 %v4728, %v4719
        %v4774 = vadd.s32 %v4750, %v4769
        %vm4775 = vc.u32 %v4750, %v4769
        %v4776 = vadd.s32 %v4772, 1
        %v4777 = vsel %vm4775, %v4776, %v4772
        %v4778 = vadd.s32 %v4773, %v4777
        %v4779 = vadd.s32 %v4778, 536870912
        %v4780 = vshrl.u32 %v4779, 30
        %v4781 = vshll.u32 %v4780, 30
        %v4782 = vsub.s32 %v4778, %v4781
        %vm4783 = vcmp.lt.s32.totalorder %v4782, 0
        %v4784 = vsub.s32 0, %v4782
        %v4785 = vsel %vm4783, %v4784, %v4782
        %v4786 = vclz %v4785
        %v4787 = vsub.s32 %v4786, 2
        %vm4788 = vcmp.gt.s32.totalorder 0, %v4787
        %v4789 = vsel %vm4788, 0, %v4787
        %v4790 = vsub.s32 32, %v4789
        %v4791 = vshll.u32 %v4782, %v4789
        %v4792 = vshrl.u32 %v4774, %v4790
        %v4793 = vor.u32 %v4791, %v4792
        %v4794 = vsub.s32 4294967266, %v4789
        %v4795 = vadd.s32 %v4794, 127
        %v4796 = vshll.u32 %v4795, 23
        %v4797 = vor.u32 4788187, %v4796
        %v4798 = vand.u32 2147483647, %v4797
        %v4800 = vcvt.s32.f32 %v4793
        %v4801 = vmul.f32 %v4800, %v4798
        %v4802 = vxor.u32 %v4801, 2147483648
        %v4803 = vsel %vm4682, %v4802, %v4801
        %v4804 = vsub.s32 4, %v4780
        %v4805 = vsel %vm4682, %v4804, %v4780
        %v4806 = vsel %vm4681, %v494, %v4803
        %v4807 = vsel %vm4681, 0, %v4805
        %v4808 = vmul.f32 %v4806, %v4806
        %v4809 = vmul.f32 %v4808, -0.001358992
        %v4810 = vadd.f32 %v4809, 0.041655596
        %v4811 = vmul.f32 %v4808, %v4810
        %v4812 = vadd.f32 %v4811, -0.4999988
        %v4813 = vmul.f32 %v4808, %v4812
        %v4814 = vadd.f32 1.0, %v4813
        %v4815 = vmul.f32 %v4806, %v4806
        %v4816 = vmul.f32 %v4815, -0.00019511016
        %v4817 = vadd.f32 %v4816, 0.008332121
        %v4818 = vmul.f32 %v4815, %v4817
        %v4819 = vadd.f32 %v4818, -0.16666654
        %v4820 = vmul.f32 %v4815, %v4819
        %v4821 = vadd.f32 %v4820, 1.0
        %v4822 = vmul.f32 %v4821, %v4806
        %vm4823 = vweird.f32 %v494
        %v4824 = vadd.s32 %v4807, 3
        %v4825 = vand.u32 %v4824, 3
        %vm4826 = vcmp.lt.s32.totalorder %v4825, 2
        %vm4827 = vcmp.eq.s32.totalorder %v4825, 0
        %v4828 = vxor.u32 %v4822, 2147483648
        %v4829 = vsel %vm4827, %v4814, %v4828
        %vm4830 = vcmp.eq.s32.totalorder %v4825, 2
        %v4831 = vxor.u32 %v4814, 2147483648
        %v4832 = vsel %vm4830, %v4831, %v4822
        %v4833 = vsel %vm4826, %v4829, %v4832
        %v4834 = vsel %vm4823, nan, %v4833
        %4835 = vst [vmem:[%s164] sm:$0xff] %v649
        %4836 = vst [vmem:[%s164 + $0x8] sm:$0xff] %v804
        %4837 = vst [vmem:[%s164 + $0x10] sm:$0xff] %v959
        %4838 = vst [vmem:[%s164 + $0x18] sm:$0xff] %v1114
        %4839 = vst [vmem:[%s164 + $0x20] sm:$0xff] %v1269
        %4840 = vst [vmem:[%s164 + $0x28] sm:$0xff] %v1424
        %4841 = vst [vmem:[%s164 + $0x30] sm:$0xff] %v1579
        %4842 = vst [vmem:[%s164 + $0x38] sm:$0xff] %v1734
        %4843 = vst [vmem:[%s164 + $0x40] sm:$0xff] %v1889
        %4844 = vst [vmem:[%s164 + $0x48] sm:$0xff] %v2044
        %4845 = vst [vmem:[%s164 + $0x50] sm:$0xff] %v2199
        %4846 = vst [vmem:[%s164 + $0x58] sm:$0xff] %v2354
        %4847 = vst [vmem:[%s164 + $0x60] sm:$0xff] %v2509
        %4848 = vst [vmem:[%s164 + $0x68] sm:$0xff] %v2664
        %4849 = vst [vmem:[%s164 + $0x70] sm:$0xff] %v2819
        %4850 = vst [vmem:[%s164 + $0x78] sm:$0xff] %v2974
        %4851 = vst [vmem:[%s164 + $0x80] sm:$0xff] %v3129
        %4852 = vst [vmem:[%s164 + $0x88] sm:$0xff] %v3284
        %4853 = vst [vmem:[%s164 + $0x90] sm:$0xff] %v3439
        %4854 = vst [vmem:[%s164 + $0x98] sm:$0xff] %v3594
        %4855 = vst [vmem:[%s164 + $0xa0] sm:$0xff] %v3749
        %4856 = vst [vmem:[%s164 + $0xa8] sm:$0xff] %v3904
        %4857 = vst [vmem:[%s164 + $0xb0] sm:$0xff] %v4059
        %4858 = vst [vmem:[%s164 + $0xb8] sm:$0xff] %v4214
        %4859 = vst [vmem:[%s164 + $0xc0] sm:$0xff] %v4369
        %4860 = vst [vmem:[%s164 + $0xc8] sm:$0xff] %v4524
        %4861 = vst [vmem:[%s164 + $0xd0] sm:$0xff] %v4679
        %4862 = vst [vmem:[%s164 + $0xd8] sm:$0xff] %v4834
        %s4863 = sand.u32 %s93, 1
        %s4864 = scalar_lea.sflag [#allocation3], %s4863
        %s4865 = sand.u32 %s93, 1
        %s4866 = smul.addr %s4865, 224
        %s4867 = scalar_lea.vmem [#allocation2], %s4866
        // Predicated region
        $region33: #{tpu_custom_call.1} parent=31 // pred_check
          %p4868 = pneg %p103
        $region34: #{tpu_custom_call.1} parent=31 // pred_check_branch
          %4870 = sbr.rel (%p4868) target = $region36
        $region35: #{tpu_custom_call.1} parent=31 // pred_region
          %s4871 = smul.u32 7, %s17
          %4873 = vsyncadd %s4864, 0
          %s4874 = smul.addr %s4871, 4
          %s4875 = smul.addr %s4874, 8
          %s4876 = scalar_lea.hbm %s3, %s4875
          %s4877 = sshll.u32 %s4867, 4
          %s4878 = int_to_ptr.vmem [resolvable:$true] %s4877
          %s4879 = sshll.u32 %s4876, 4
          %s4880 = int_to_ptr.hbm [resolvable:$true] %s4879
          %4885 = dma.vmem_to_hbm [thread:$0]  %s4878, 3584, %s4880, %s4864, 512, 512, 32
        $region36: #{tpu_custom_call.1} parent=31 // pred_fallthru
          _
      $region32: #{tpu_custom_call.1} parent=5 // pred_fallthru
        _
      %p4886 = scmp.le.s32.totalorder 2, %s12
      // Predicated region
      $region37: #{tpu_custom_call.1} parent=5 // pred_check
        %p4887 = pneg %p4886
      $region38: #{tpu_custom_call.1} parent=5 // pred_check_branch
        %4889 = sbr.rel (%p4887) target = $region40
      $region39: #{tpu_custom_call.1} parent=5 // pred_region
        %s4890 = ssub.s32 %s12, 2
        // Predicated region
        $region41: #{tpu_custom_call.1} parent=39 // pred_check
          %p4891 = pneg %p109
        $region42: #{tpu_custom_call.1} parent=39 // pred_check_branch
          %4893 = sbr.rel (%p4891) target = $region44
        $region43: #{tpu_custom_call.1} parent=39 // pred_region
          %s4894 = sand.u32 %s94, 1
          %s4895 = scalar_lea.sflag [#allocation3], %s4894
          %s4896 = sand.u32 %s94, 1
          %s4897 = smul.addr %s4896, 224
          %s4898 = scalar_lea.vmem [#allocation2], %s4897
          %4900 = dma.done %s4895, 3584
        $region44: #{tpu_custom_call.1} parent=39 // pred_fallthru
          _
      $region40: #{tpu_custom_call.1} parent=5 // pred_fallthru
        _
    $region6: #{tpu_custom_call.1} parent=1 // loop_footer
      %s16 = sadd.s32 1, %s12
    $region7: #{tpu_custom_call.1} parent=1 // loop_footer_branch
      %11 = sbr.rel target = $region3
    $region8: #{tpu_custom_call.1} parent=1 // loop_exit
      _
    %4901 = vsyncpa [#allocation3], 1
    %s4902 = scalar_lea.sflag [#allocation3], 1
    %4903 = vsyncpa %s4902, 1

</llo_original>
